<compile_context>
chip_gen: v7x
topology: tpu7x:2x2x1
jax: 0.10.0
libtpu: 0.0.40
codegen_flags: <defaults>
</compile_context>

<pallas_src>
import functools

import jax
import jax.numpy as jnp
from jax.experimental import pallas as pl
from jax.experimental.pallas import tpu as pltpu

EPS = 1e-5            # PyTorch BatchNorm1d default eps
F32 = jnp.float32


# --------------------------------------------------------------------------
# hardware-aware defaults
# --------------------------------------------------------------------------
@functools.lru_cache(maxsize=None)
def _tpu_vmem_capacity():
    """Physical VMEM per core; falls back to the v7x value (the smallest)."""
    try:
        info = pltpu.get_tpu_info()
        cap = int(getattr(info, "vmem_capacity_bytes", 0) or 0)
        if cap > 0:
            return cap
    except Exception:
        pass
    return 64 * 1024 * 1024


def _vmem_limit_bytes():
    # ~25% headroom for Mosaic scratch: ~48 MiB on v7x, ~96 MiB on v5e/v6e.
    return min((_tpu_vmem_capacity() * 3) // 4, 100 * 1024 * 1024)


def _default_max_tile():
    return 512 if _tpu_vmem_capacity() <= 64 * 1024 * 1024 else 1024


def _round_up(x, m):
    return (x + m - 1) // m * m


def _compiler_params(dimension_semantics):
    return pltpu.CompilerParams(dimension_semantics=dimension_semantics,
                                vmem_limit_bytes=_vmem_limit_bytes())


# --------------------------------------------------------------------------
# BlockSpec helpers
# --------------------------------------------------------------------------
def _row2(tile_n, width, tpc):
    # row-tiled operand on the 2-D (core, tile) stats grid
    return pl.BlockSpec((tile_n, width), lambda i, j: (i * tpc + j, 0))


def _const2(shape):
    # TODO(synk): pipeline_mode=pl.Buffered(1) would drop the pointless second
    # buffer for these constant-index operands.
    return pl.BlockSpec(shape, lambda i, j: (0, 0))


def _row1(tile_n, width):
    return pl.BlockSpec((tile_n, width), lambda i: (i, 0))


def _const1(shape):
    return pl.BlockSpec(shape, lambda i: (0, 0))


def _acc_spec(width):
    # one 8-row accumulator slab per core (leading "parallel" grid axis)
    return pl.BlockSpec((8, width), lambda i, j: (i, 0))


# --------------------------------------------------------------------------
# in-kernel compute helpers
# --------------------------------------------------------------------------
def _kgroup_reduce(x, op, group, k):
    """Reduce over the K lane-groups of a (rows, K*group) value.

    Lane index is kk*group + c.  Rolling by multiples of `group` along the lane
    axis permutes kk cyclically and keeps c fixed, so a log-tree (power-of-two K)
    or K-1 cyclic rolls leaves every lane holding the op-reduction over kk for
    its channel c.  Runs on the XLU slot; no (N,K,C) relayout.
    """
    if k == 1:
        return x
    if k & (k - 1) == 0:          # power of two -> log-tree
        r = x
        shift = group
        while shift < group * k:
            r = op(r, pltpu.roll(r, shift=shift, axis=1))
            shift *= 2
        return r
    acc, r = x, x                 # general K fallback
    for _ in range(k - 1):
        r = pltpu.roll(r, shift=group, axis=1)
        acc = op(acc, r)
    return acc


def _accumulate_stats(x, s1_ref, s2_ref, cfg):
    """Per-lane sum / sum-of-squares accumulated over the "arbitrary" tile axis
    into this core's 8-row accumulator slab; padded tail rows masked out."""
    n_valid, tile_n, tiles_per_core, padded = cfg

    @pl.when(pl.program_id(1) == 0)
    def _():
        s1_ref[...] = jnp.zeros(s1_ref.shape, s1_ref.dtype)
        s2_ref[...] = jnp.zeros(s2_ref.shape, s2_ref.dtype)

    if padded:
        start = (pl.program_id(0) * tiles_per_core + pl.program_id(1)) * tile_n
        rows = jax.lax.broadcasted_iota(jnp.int32, x.shape, 0) + start
        x = jnp.where(rows < n_valid, x, 0.0)
    s1_ref[...] += jnp.sum(x, axis=0, keepdims=True)
    s2_ref[...] += jnp.sum(x * x, axis=0, keepdims=True)


# --------------------------------------------------------------------------
# kernels
# --------------------------------------------------------------------------
def _pos_stats_kernel(rel_ref, wp1_ref, s1_ref, s2_ref, *, cfg):
    # batch stats of mlp_pos's first Linear output: h = rel @ kron(I_k, wp1)
    h = jnp.dot(rel_ref[...], wp1_ref[...], preferred_element_type=F32)
    _accumulate_stats(h, s1_ref, s2_ref, cfg)


def _sim_kernel(feat_ref, rel_ref, knnk_ref, wq_ref, wp1s_ref, pshift_ref,
                wp2_ref, vecsim_ref, rpe_ref, s1_ref, s2_ref, *, cfg):
    # BN(3) scale is pre-folded into wp1's columns; only the shift remains here.
    h = jnp.dot(rel_ref[...], wp1s_ref[...], preferred_element_type=F32)
    h = jnp.maximum(h + pshift_ref[...], 0.0)
    rpe = jnp.dot(h.astype(wp2_ref.dtype), wp2_ref[...],
                  preferred_element_type=F32)                     # (T, K*Cout)
    f_q = jnp.dot(feat_ref[...], wq_ref[...], preferred_element_type=F32)
    vec_sim = f_q - knnk_ref[...].astype(F32) + rpe
    rpe_ref[...] = rpe.astype(rpe_ref.dtype)                      # lane-dense store
    vecsim_ref[...] = vec_sim.astype(vecsim_ref.dtype)            # lane-dense store
    _accumulate_stats(vec_sim, s1_ref, s2_ref, cfg)


def _x1_kernel(vecsim_ref, a1s_ref, a1b_ref, wa1_ref, x1_ref, s1_ref, s2_ref,
               *, cfg):
    x = jnp.maximum(vecsim_ref[...].astype(F32) * a1s_ref[...] + a1b_ref[...],
                    0.0)                                          # folded BN + ReLU
    x1 = jnp.dot(x.astype(wa1_ref.dtype), wa1_ref[...],
                 preferred_element_type=F32)                      # block-diag Linear
    x1_ref[...] = x1.astype(x1_ref.dtype)
    _accumulate_stats(x1, s1_ref, s2_ref, cfg)


def _final_kernel(x1_ref, rpe_ref, knnv_ref, a2s_ref, a2b_ref, wa2_ref, ba2_ref,
                  o_ref, *, k, cout):
    x2 = jnp.maximum(x1_ref[...].astype(F32) * a2s_ref[...] + a2b_ref[...], 0.0)
    w = jnp.dot(x2.astype(wa2_ref.dtype), wa2_ref[...],
                preferred_element_type=F32) + ba2_ref[...]
    # softmax over the K neighbours: lane-group (size cout) reductions via rolls
    gmax = _kgroup_reduce(w, jnp.maximum, cout, k)
    e = jnp.exp(w - gmax)
    gsum = _kgroup_reduce(e, jnp.add, cout, k)
    attn = e * pl.reciprocal(gsum, approx=True)        # EUP reciprocal
    weighted = attn * (knnv_ref[...].astype(F32) + rpe_ref[...].astype(F32))
    # full lane-dense (tile, K*Cout) store; every cout-wide group holds the sum,
    # the narrow [:, :cout] slice is taken in XLA (no masked 32-lane stores).
    o_ref[...] = _kgroup_reduce(weighted, jnp.add, cout, k)


# --------------------------------------------------------------------------
# glue: fold global batch stats into per-lane scale / shift
# --------------------------------------------------------------------------
def _bn_fold(s1, s2, count, gamma, beta, groups):
    # s1/s2: (8*ncores, width) slabs, all 8 rows of a slab hold the same partial.
    # Single-pass E[x^2]-E[x]^2 in f32 (fine for roughly zero-centred data);
    # clamp guards tiny negative round-off.
    c = gamma.shape[-1]
    width = s1.shape[-1]
    s1 = s1.reshape(-1, 8, width)[:, 0, :].sum(0).reshape(groups, c).sum(0)
    s2 = s2.reshape(-1, 8, width)[:, 0, :].sum(0).reshape(groups, c).sum(0)
    mean = s1 / count
    var = jnp.maximum(s2 / count - mean * mean, 0.0)   # biased var (training BN)
    scale = gamma * jax.lax.rsqrt(var + EPS)
    shift = beta - mean * scale
    return jnp.tile(scale, groups)[None, :], jnp.tile(shift, groups)[None, :]


# --------------------------------------------------------------------------
# parameters (match the PyTorch module's layers; freshly-initialised BN affine)
# --------------------------------------------------------------------------
def init_params(key, in_channels, out_channels):
    ks = jax.random.split(key, 8)

    def lin(kk, fin, fout):
        return jax.random.normal(kk, (fin, fout), F32) * 0.1

    return dict(
        wq=lin(ks[0], in_channels, out_channels),
        wk=lin(ks[1], in_channels, out_channels),
        wv=lin(ks[2], in_channels, out_channels),
        # mlp_pos: Linear(3,3,nb) -> BN(3) -> ReLU -> Linear(3,Cout,nb)
        wp1=lin(ks[3], 3, 3),
        gp=jnp.ones((3,), F32),
        bp=jnp.zeros((3,), F32),
        wp2=lin(ks[4], 3, out_channels),
        # mlp_attn: BN -> ReLU -> Linear(nb) -> BN -> ReLU -> Linear(+bias)
        ga1=jnp.ones((out_channels,), F32),
        be1=jnp.zeros((out_channels,), F32),
        wa1=lin(ks[5], out_channels, out_channels),
        ga2=jnp.ones((out_channels,), F32),
        be2=jnp.zeros((out_channels,), F32),
        wa2=lin(ks[6], out_channels, out_channels),
        ba2=jax.random.normal(ks[7], (out_channels,), F32) * 0.1,
    )


# --------------------------------------------------------------------------
# forward
# --------------------------------------------------------------------------
def _pad_rows(x, n_pad):
    n = x.shape[0]
    return x if n_pad == n else jnp.pad(x, ((0, n_pad - n), (0, 0)))


@functools.partial(jax.jit, static_argnames=("k", "max_tile_n", "use_bf16"))
def point_transformer_forward(points, features, params, k, max_tile_n=None,
                              use_bf16=False):
    n, cin = features.shape
    cout = params["wq"].shape[1]
    kc = k * cout
    count = n * k                      # rows feeding each BatchNorm
    store = jnp.bfloat16 if use_bf16 else F32

    # ------------- row tiling (generation-aware, padded & masked) ----------
    if max_tile_n is None:
        max_tile_n = _default_max_tile()
    tile_n = min(_round_up(max_tile_n, 8), _round_up(n, 8))
    n_pad = _round_up(n, tile_n)
    num_tiles = n_pad // tile_n
    padded = n_pad != n
    ncores = 2 if num_tiles % 2 == 0 else 1    # 2-way core split of stats passes
    tpc = num_tiles // ncores
    cfg = (n, tile_n, tpc, padded)

    # ---------------- kNN selection + gathers (XLA glue) -------------------
    # TODO(synk): fold the neighbour gather into the Pallas passes via scalar-
    # prefetched knn_idx + manual DMA instead of materialising knn_k/knn_v here.
    d2 = jnp.sum((points[:, None, :] - points[None, :, :]) ** 2, axis=-1)
    _, knn_idx = jax.lax.top_k(-d2, k)                 # (n, k), self included
    flat = knn_idx.reshape(-1)
    # project-then-gather; tiny (n,cin)@(cin,2*cout) matmul stays in XLA.
    f_kv = features @ jnp.concatenate([params["wk"], params["wv"]], axis=1)
    knn_kv = f_kv[flat]                                # (n*k, 2*cout)
    knn_k = knn_kv[:, :cout].reshape(n, kc)            # lane = kk*cout + c
    knn_v = knn_kv[:, cout:].reshape(n, kc)
    rel = (points[:, None, :] - points[flat].reshape(n, k, 3)).reshape(n, 3 * k)

    feats_p = _pad_rows(features, n_pad).astype(store)
    rel_p = _pad_rows(rel, n_pad).astype(store)
    knn_k_p = _pad_rows(knn_k, n_pad).astype(store)
    knn_v_p = _pad_rows(knn_v, n_pad).astype(store)

    # ---------------- lane-dense weights (built once) ----------------------
    eye_k = jnp.eye(k, dtype=F32)
    wq_rep = jnp.tile(params["wq"], (1, k)).astype(store)   # (cin, kc)
    wp1_bd = jnp.kron(eye_k, params["wp1"])                 # (3k, 3k), f32 master
    wp2_bd = jnp.kron(eye_k, params["wp2"]).astype(store)   # (3k, kc)
    wa1_bd = jnp.kron(eye_k, params["wa1"]).astype(store)   # (kc, kc)
    wa2_bd = jnp.kron(eye_k, params["wa2"]).astype(store)   # (kc, kc)
    ba2_kc = jnp.tile(params["ba2"], k)[None, :]            # (1, kc), f32

    stats_grid = (ncores, tpc)
    stats_sem = ("parallel", "arbitrary")
    acc = lambda w: jax.ShapeDtypeStruct((8 * ncores, w), F32)

    # ---- pass 1: batch stats of mlp_pos's first Linear output -------------
    s1, s2 = pl.pallas_call(
        functools.partial(_pos_stats_kernel, cfg=cfg),
        out_shape=(acc(3 * k), acc(3 * k)),
        grid=stats_grid,
        in_specs=[_row2(tile_n, 3 * k, tpc), _const2((3 * k, 3 * k))],
        out_specs=(_acc_spec(3 * k), _acc_spec(3 * k)),
        compiler_params=_compiler_params(stats_sem),
    )(rel_p, wp1_bd.astype(store))
    p_scale, p_shift = _bn_fold(s1, s2, count, params["gp"], params["bp"], k)
    wp1s_bd = (wp1_bd * p_scale).astype(store)      # fold BN scale into columns

    # ---- pass 2: rpe + vec_sim (written lane-dense) + vec_sim batch stats --
    vec_sim, rpe, s1, s2 = pl.pallas_call(
        functools.partial(_sim_kernel, cfg=cfg),
        out_shape=(jax.ShapeDtypeStruct((n_pad, kc), store),
                   jax.ShapeDtypeStruct((n_pad, kc), store),
                   acc(kc), acc(kc)),
        grid=stats_grid,
        in_specs=[_row2(tile_n, cin, tpc), _row2(tile_n, 3 * k, tpc),
                  _row2(tile_n, kc, tpc), _const2(wq_rep.shape),
                  _const2(wp1s_bd.shape), _const2(p_shift.shape),
                  _const2(wp2_bd.shape)],
        out_specs=(_row2(tile_n, kc, tpc), _row2(tile_n, kc, tpc),
                   _acc_spec(kc), _acc_spec(kc)),
        compiler_params=_compiler_params(stats_sem),
    )(feats_p, rel_p, knn_k_p, wq_rep, wp1s_bd, p_shift, wp2_bd)
    a1_scale, a1_shift = _bn_fold(s1, s2, count, params["ga1"], params["be1"], k)

    # ---- pass 3: x1 = ReLU(BN(vec_sim)) @ wa1 (written) + its batch stats ---
    x1, s1, s2 = pl.pallas_call(
        functools.partial(_x1_kernel, cfg=cfg),
        out_shape=(jax.ShapeDtypeStruct((n_pad, kc), store), acc(kc), acc(kc)),
        grid=stats_grid,
        in_specs=[_row2(tile_n, kc, tpc), _const2(a1_scale.shape),
                  _const2(a1_shift.shape), _const2(wa1_bd.shape)],
        out_specs=(_row2(tile_n, kc, tpc), _acc_spec(kc), _acc_spec(kc)),
        compiler_params=_compiler_params(stats_sem),
    )(vec_sim, a1_scale, a1_shift, wa1_bd)
    a2_scale, a2_shift = _bn_fold(s1, s2, count, params["ga2"], params["be2"], k)

    # ---- pass 4: softmax over K + weighted neighbour sum (lane-dense out) ---
    out_full = pl.pallas_call(
        functools.partial(_final_kernel, k=k, cout=cout),
        out_shape=jax.ShapeDtypeStruct((n_pad, kc), F32),
        grid=(num_tiles,),
        in_specs=[_row1(tile_n, kc), _row1(tile_n, kc), _row1(tile_n, kc),
                  _const1(a2_scale.shape), _const1(a2_shift.shape),
                  _const1(wa2_bd.shape), _const1(ba2_kc.shape)],
        out_specs=_row1(tile_n, kc),
        compiler_params=_compiler_params(("parallel",)),
    )(x1, rpe, knn_v_p, a2_scale, a2_shift, wa2_bd, ba2_kc)
    return out_full[:n, :cout]


# --------------------------------------------------------------------------
# pure-JAX reference (mirrors the PyTorch forward, training-mode BatchNorm)
# --------------------------------------------------------------------------
def reference_forward(points, features, params, k):
    n, _ = features.shape
    cout = params["wq"].shape[1]
    d2 = jnp.sum((points[:, None, :] - points[None, :, :]) ** 2, axis=-1)
    _, knn_idx = jax.lax.top_k(-d2, k)
    flat = knn_idx.reshape(-1)
    knn_points = points[flat].reshape(n, k, 3)
    f_q = features @ params["wq"]
    f_k = features @ params["wk"]
    f_v = features @ params["wv"]
    knn_k = f_k[flat].reshape(n, k, cout)
    knn_v = f_v[flat].reshape(n, k, cout)
    rel_pos = (points[:, None, :] - knn_points).reshape(-1, 3)

    def bn(x, g, b):
        mu = x.mean(0, keepdims=True)
        var = ((x - mu) ** 2).mean(0, keepdims=True)
        return (x - mu) / jnp.sqrt(var + EPS) * g + b

    h = rel_pos @ params["wp1"]
    h = jnp.maximum(bn(h, params["gp"], params["bp"]), 0.0)
    rpe = (h @ params["wp2"]).reshape(n, k, cout)
    vec_sim = (f_q[:, None, :] - knn_k + rpe).reshape(-1, cout)
    x = jnp.maximum(bn(vec_sim, params["ga1"], params["be1"]), 0.0)
    x = x @ params["wa1"]
    x = jnp.maximum(bn(x, params["ga2"], params["be2"]), 0.0)
    w = (x @ params["wa2"] + params["ba2"]).reshape(n, k, cout)
    attn = jax.nn.softmax(w, axis=1)
    return (attn * (knn_v + rpe)).sum(axis=1)


if __name__ == "__main__":
    key = jax.random.PRNGKey(0)
    kp, kf, kw = jax.random.split(key, 3)

    N, IN_C, OUT_C, K = 128, 16, 32, 8
    points = jax.random.normal(kp, (N, 3), F32)
    features = jax.random.normal(kf, (N, IN_C), F32)
    params = init_params(kw, IN_C, OUT_C)

    # f32 path: 4 row tiles -> exercises the 2-way core split of the stats
    # passes and the multi-tile pipelines; strict tolerance vs the reference.
    out = point_transformer_forward(points, features, params, K, max_tile_n=32)
    out = jax.block_until_ready(out)
    ref = reference_forward(points, features, params, K)
    assert out.shape == (N, OUT_C)
    assert bool(jnp.all(jnp.isfinite(out)))
    assert bool(jnp.allclose(out, ref, atol=2e-3, rtol=2e-3)), "f32 mismatch vs reference"

    # bf16-MXU path on an awkward point count: exercises the padded-tail masking
    # in the BN-stats kernels; looser tolerance for bf16 operands.
    N2 = 200
    points2 = jax.random.normal(jax.random.PRNGKey(1), (N2, 3), F32)
    features2 = jax.random.normal(jax.random.PRNGKey(2), (N2, IN_C), F32)
    out2 = point_transformer_forward(points2, features2, params, K,
                                     max_tile_n=48, use_bf16=True)
    out2 = jax.block_until_ready(out2)
    ref2 = reference_forward(points2, features2, params, K)
    assert out2.shape == (N2, OUT_C)
    assert bool(jnp.all(jnp.isfinite(out2)))
    assert bool(jnp.allclose(out2, ref2, atol=5e-2, rtol=5e-2)), "bf16 mismatch vs reference"

    print("KERNEL_OK")
</pallas_src>

<mosaic_0001>
module attributes {stable_mosaic.version = 11 : i64} {
  func.func @_pos_stats_kernel(%arg0: i32, %arg1: i32, %arg2: memref<32x24xf32, #tpu.memory_space<vmem>>, %arg3: memref<24x24xf32, #tpu.memory_space<vmem>>, %arg4: memref<8x24xf32, #tpu.memory_space<vmem>>, %arg5: memref<8x24xf32, #tpu.memory_space<vmem>>) attributes {dimension_semantics = [#tpu.dimension_semantics<parallel>, #tpu.dimension_semantics<arbitrary>], iteration_bounds = array<i64: 2, 2>, scalar_prefetch = 0 : i64, scratch_operands = 0 : i64, tpu.core_type = #tpu.core_type<tc>, window_params = [{transform_indices = @transform_0, window_bounds = array<i64: 32, 24>}, {pipeline_mode = #tpu.pipeline_mode<synchronous>, transform_indices = @transform_1, window_bounds = array<i64: 24, 24>}, {transform_indices = @transform_2, window_bounds = array<i64: 8, 24>}, {transform_indices = @transform_3, window_bounds = array<i64: 8, 24>}]} {
    %c0 = arith.constant 0 : index
    %c0_0 = arith.constant 0 : index
    %0 = vector.load %arg2[%c0, %c0_0] : memref<32x24xf32, #tpu.memory_space<vmem>>, vector<32x24xf32>
    %c0_1 = arith.constant 0 : index
    %c0_2 = arith.constant 0 : index
    %1 = vector.load %arg3[%c0_1, %c0_2] : memref<24x24xf32, #tpu.memory_space<vmem>>, vector<24x24xf32>
    %cst = arith.constant dense<0.000000e+00> : vector<32x24xf32>
    %2 = tpu.matmul %0, %1, %cst {dimension_numbers = #tpu.dot_dimension_numbers<[1], [0], [0], [1], [0, 0, 1, 1], [], []>} : vector<32x24xf32>, vector<24x24xf32>, vector<32x24xf32> -> vector<32x24xf32>
    %c0_i32 = arith.constant 0 : i32
    %3 = arith.cmpi eq, %arg1, %c0_i32 : i32
    %4 = arith.extui %3 : i1 to i32
    %c0_i32_3 = arith.constant 0 : i32
    %5 = arith.cmpi ne, %4, %c0_i32_3 : i32
    scf.if %5 {
      %cst_14 = arith.constant 0.000000e+00 : f32
      %19 = vector.broadcast %cst_14 : f32 to vector<8x24xf32>
      %c0_15 = arith.constant 0 : index
      %c0_16 = arith.constant 0 : index
      %20 = vector.load %arg4[%c0_15, %c0_16] : memref<8x24xf32, #tpu.memory_space<vmem>>, vector<8x24xf32>
      tpu.vector_store %arg4[%c0_15, %c0_16], %19 {strides = array<i32>} : memref<8x24xf32, #tpu.memory_space<vmem>>, vector<8x24xf32>,
      %cst_17 = arith.constant 0.000000e+00 : f32
      %21 = vector.broadcast %cst_17 : f32 to vector<8x24xf32>
      %c0_18 = arith.constant 0 : index
      %c0_19 = arith.constant 0 : index
      %22 = vector.load %arg5[%c0_18, %c0_19] : memref<8x24xf32, #tpu.memory_space<vmem>>, vector<8x24xf32>
      tpu.vector_store %arg5[%c0_18, %c0_19], %21 {strides = array<i32>} : memref<8x24xf32, #tpu.memory_space<vmem>>, vector<8x24xf32>,
    } else {
    }
    %c0_4 = arith.constant 0 : index
    %c0_5 = arith.constant 0 : index
    %6 = vector.load %arg4[%c0_4, %c0_5] : memref<8x24xf32, #tpu.memory_space<vmem>>, vector<8x24xf32>
    %cst_6 = arith.constant dense<0.000000e+00> : vector<24xf32>
    %7 = vector.multi_reduction <add>, %2, %cst_6 [0] : vector<32x24xf32> to vector<24xf32>
    %8 = vector.shape_cast %7 : vector<24xf32> to vector<1x24xf32>
    %9 = vector.broadcast %8 : vector<1x24xf32> to vector<8x24xf32>
    %10 = arith.addf %6, %9 : vector<8x24xf32>
    %c0_7 = arith.constant 0 : index
    %c0_8 = arith.constant 0 : index
    %11 = vector.load %arg4[%c0_7, %c0_8] : memref<8x24xf32, #tpu.memory_space<vmem>>, vector<8x24xf32>
    tpu.vector_store %arg4[%c0_7, %c0_8], %10 {strides = array<i32>} : memref<8x24xf32, #tpu.memory_space<vmem>>, vector<8x24xf32>,
    %c0_9 = arith.constant 0 : index
    %c0_10 = arith.constant 0 : index
    %12 = vector.load %arg5[%c0_9, %c0_10] : memref<8x24xf32, #tpu.memory_space<vmem>>, vector<8x24xf32>
    %13 = arith.mulf %2, %2 : vector<32x24xf32>
    %cst_11 = arith.constant dense<0.000000e+00> : vector<24xf32>
    %14 = vector.multi_reduction <add>, %13, %cst_11 [0] : vector<32x24xf32> to vector<24xf32>
    %15 = vector.shape_cast %14 : vector<24xf32> to vector<1x24xf32>
    %16 = vector.broadcast %15 : vector<1x24xf32> to vector<8x24xf32>
    %17 = arith.addf %12, %16 : vector<8x24xf32>
    %c0_12 = arith.constant 0 : index
    %c0_13 = arith.constant 0 : index
    %18 = vector.load %arg5[%c0_12, %c0_13] : memref<8x24xf32, #tpu.memory_space<vmem>>, vector<8x24xf32>
    tpu.vector_store %arg5[%c0_12, %c0_13], %17 {strides = array<i32>} : memref<8x24xf32, #tpu.memory_space<vmem>>, vector<8x24xf32>,
    return
  }
  func.func @transform_0(%arg0: i32, %arg1: i32) -> (i32, i32) {
    %c2_i32 = arith.constant 2 : i32
    %0 = arith.muli %arg0, %c2_i32 : i32
    %1 = arith.addi %0, %arg1 : i32
    %c0_i32 = arith.constant 0 : i32
    %c0_i32_0 = arith.constant 0 : i32
    return %1, %c0_i32 : i32, i32
  }
  func.func @transform_1(%arg0: i32, %arg1: i32) -> (i32, i32) {
    %c0_i32 = arith.constant 0 : i32
    %c0_i32_0 = arith.constant 0 : i32
    %c0_i32_1 = arith.constant 0 : i32
    return %c0_i32, %c0_i32_0 : i32, i32
  }
  func.func @transform_2(%arg0: i32, %arg1: i32) -> (i32, i32) {
    %c0_i32 = arith.constant 0 : i32
    %c0_i32_0 = arith.constant 0 : i32
    return %arg0, %c0_i32 : i32, i32
  }
  func.func @transform_3(%arg0: i32, %arg1: i32) -> (i32, i32) {
    %c0_i32 = arith.constant 0 : i32
    %c0_i32_0 = arith.constant 0 : i32
    return %arg0, %c0_i32 : i32, i32
  }
}

module attributes {stable_mosaic.version = 11 : i64} {
  func.func @_sim_kernel(%arg0: i32, %arg1: i32, %arg2: memref<32x16xf32, #tpu.memory_space<vmem>>, %arg3: memref<32x24xf32, #tpu.memory_space<vmem>>, %arg4: memref<32x256xf32, #tpu.memory_space<vmem>>, %arg5: memref<16x256xf32, #tpu.memory_space<vmem>>, %arg6: memref<24x24xf32, #tpu.memory_space<vmem>>, %arg7: memref<1x24xf32, #tpu.memory_space<vmem>>, %arg8: memref<24x256xf32, #tpu.memory_space<vmem>>, %arg9: memref<32x256xf32, #tpu.memory_space<vmem>>, %arg10: memref<32x256xf32, #tpu.memory_space<vmem>>, %arg11: memref<8x256xf32, #tpu.memory_space<vmem>>, %arg12: memref<8x256xf32, #tpu.memory_space<vmem>>) attributes {dimension_semantics = [#tpu.dimension_semantics<parallel>, #tpu.dimension_semantics<arbitrary>], iteration_bounds = array<i64: 2, 2>, scalar_prefetch = 0 : i64, scratch_operands = 0 : i64, tpu.core_type = #tpu.core_type<tc>, window_params = [{transform_indices = @transform_0, window_bounds = array<i64: 32, 16>}, {transform_indices = @transform_1, window_bounds = array<i64: 32, 24>}, {transform_indices = @transform_2, window_bounds = array<i64: 32, 256>}, {pipeline_mode = #tpu.pipeline_mode<synchronous>, transform_indices = @transform_3, window_bounds = array<i64: 16, 256>}, {pipeline_mode = #tpu.pipeline_mode<synchronous>, transform_indices = @transform_4, window_bounds = array<i64: 24, 24>}, {pipeline_mode = #tpu.pipeline_mode<synchronous>, transform_indices = @transform_5, window_bounds = array<i64: 1, 24>}, {pipeline_mode = #tpu.pipeline_mode<synchronous>, transform_indices = @transform_6, window_bounds = array<i64: 24, 256>}, {transform_indices = @transform_7, window_bounds = array<i64: 32, 256>}, {transform_indices = @transform_8, window_bounds = array<i64: 32, 256>}, {transform_indices = @transform_9, window_bounds = array<i64: 8, 256>}, {transform_indices = @transform_10, window_bounds = array<i64: 8, 256>}]} {
    %c0 = arith.constant 0 : index
    %c0_0 = arith.constant 0 : index
    %0 = vector.load %arg3[%c0, %c0_0] : memref<32x24xf32, #tpu.memory_space<vmem>>, vector<32x24xf32>
    %c0_1 = arith.constant 0 : index
    %c0_2 = arith.constant 0 : index
    %1 = vector.load %arg6[%c0_1, %c0_2] : memref<24x24xf32, #tpu.memory_space<vmem>>, vector<24x24xf32>
    %cst = arith.constant dense<0.000000e+00> : vector<32x24xf32>
    %2 = tpu.matmul %0, %1, %cst {dimension_numbers = #tpu.dot_dimension_numbers<[1], [0], [0], [1], [0, 0, 1, 1], [], []>} : vector<32x24xf32>, vector<24x24xf32>, vector<32x24xf32> -> vector<32x24xf32>
    %c0_3 = arith.constant 0 : index
    %c0_4 = arith.constant 0 : index
    %3 = vector.load %arg7[%c0_3, %c0_4] : memref<1x24xf32, #tpu.memory_space<vmem>>, vector<1x24xf32>
    %4 = vector.broadcast %3 : vector<1x24xf32> to vector<32x24xf32>
    %5 = arith.addf %2, %4 : vector<32x24xf32>
    %cst_5 = arith.constant 0.000000e+00 : f32
    %6 = vector.broadcast %cst_5 : f32 to vector<32x24xf32>
    %7 = arith.maximumf %5, %6 : vector<32x24xf32>
    %c0_6 = arith.constant 0 : index
    %c0_7 = arith.constant 0 : index
    %8 = vector.load %arg8[%c0_6, %c0_7] : memref<24x256xf32, #tpu.memory_space<vmem>>, vector<24x256xf32>
    %cst_8 = arith.constant dense<0.000000e+00> : vector<32x256xf32>
    %9 = tpu.matmul %7, %8, %cst_8 {dimension_numbers = #tpu.dot_dimension_numbers<[1], [0], [0], [1], [0, 0, 1, 1], [], []>} : vector<32x24xf32>, vector<24x256xf32>, vector<32x256xf32> -> vector<32x256xf32>
    %c0_9 = arith.constant 0 : index
    %c0_10 = arith.constant 0 : index
    %10 = vector.load %arg2[%c0_9, %c0_10] : memref<32x16xf32, #tpu.memory_space<vmem>>, vector<32x16xf32>
    %c0_11 = arith.constant 0 : index
    %c0_12 = arith.constant 0 : index
    %11 = vector.load %arg5[%c0_11, %c0_12] : memref<16x256xf32, #tpu.memory_space<vmem>>, vector<16x256xf32>
    %cst_13 = arith.constant dense<0.000000e+00> : vector<32x256xf32>
    %12 = tpu.matmul %10, %11, %cst_13 {dimension_numbers = #tpu.dot_dimension_numbers<[1], [0], [0], [1], [0, 0, 1, 1], [], []>} : vector<32x16xf32>, vector<16x256xf32>, vector<32x256xf32> -> vector<32x256xf32>
    %c0_14 = arith.constant 0 : index
    %c0_15 = arith.constant 0 : index
    %13 = vector.load %arg4[%c0_14, %c0_15] : memref<32x256xf32, #tpu.memory_space<vmem>>, vector<32x256xf32>
    %14 = arith.subf %12, %13 : vector<32x256xf32>
    %15 = arith.addf %14, %9 : vector<32x256xf32>
    %c0_16 = arith.constant 0 : index
    %c0_17 = arith.constant 0 : index
    %16 = vector.load %arg10[%c0_16, %c0_17] : memref<32x256xf32, #tpu.memory_space<vmem>>, vector<32x256xf32>
    tpu.vector_store %arg10[%c0_16, %c0_17], %9 {strides = array<i32>} : memref<32x256xf32, #tpu.memory_space<vmem>>, vector<32x256xf32>,
    %c0_18 = arith.constant 0 : index
    %c0_19 = arith.constant 0 : index
    %17 = vector.load %arg9[%c0_18, %c0_19] : memref<32x256xf32, #tpu.memory_space<vmem>>, vector<32x256xf32>
    tpu.vector_store %arg9[%c0_18, %c0_19], %15 {strides = array<i32>} : memref<32x256xf32, #tpu.memory_space<vmem>>, vector<32x256xf32>,
    %c0_i32 = arith.constant 0 : i32
    %18 = arith.cmpi eq, %arg1, %c0_i32 : i32
    %19 = arith.extui %18 : i1 to i32
    %c0_i32_20 = arith.constant 0 : i32
    %20 = arith.cmpi ne, %19, %c0_i32_20 : i32
    scf.if %20 {
      %cst_31 = arith.constant 0.000000e+00 : f32
      %34 = vector.broadcast %cst_31 : f32 to vector<8x256xf32>
      %c0_32 = arith.constant 0 : index
      %c0_33 = arith.constant 0 : index
      %35 = vector.load %arg11[%c0_32, %c0_33] : memref<8x256xf32, #tpu.memory_space<vmem>>, vector<8x256xf32>
      tpu.vector_store %arg11[%c0_32, %c0_33], %34 {strides = array<i32>} : memref<8x256xf32, #tpu.memory_space<vmem>>, vector<8x256xf32>,
      %cst_34 = arith.constant 0.000000e+00 : f32
      %36 = vector.broadcast %cst_34 : f32 to vector<8x256xf32>
      %c0_35 = arith.constant 0 : index
      %c0_36 = arith.constant 0 : index
      %37 = vector.load %arg12[%c0_35, %c0_36] : memref<8x256xf32, #tpu.memory_space<vmem>>, vector<8x256xf32>
      tpu.vector_store %arg12[%c0_35, %c0_36], %36 {strides = array<i32>} : memref<8x256xf32, #tpu.memory_space<vmem>>, vector<8x256xf32>,
    } else {
    }
    %c0_21 = arith.constant 0 : index
    %c0_22 = arith.constant 0 : index
    %21 = vector.load %arg11[%c0_21, %c0_22] : memref<8x256xf32, #tpu.memory_space<vmem>>, vector<8x256xf32>
    %cst_23 = arith.constant dense<0.000000e+00> : vector<256xf32>
    %22 = vector.multi_reduction <add>, %15, %cst_23 [0] : vector<32x256xf32> to vector<256xf32>
    %23 = vector.shape_cast %22 : vector<256xf32> to vector<1x256xf32>
    %24 = vector.broadcast %23 : vector<1x256xf32> to vector<8x256xf32>
    %25 = arith.addf %21, %24 : vector<8x256xf32>
    %c0_24 = arith.constant 0 : index
    %c0_25 = arith.constant 0 : index
    %26 = vector.load %arg11[%c0_24, %c0_25] : memref<8x256xf32, #tpu.memory_space<vmem>>, vector<8x256xf32>
    tpu.vector_store %arg11[%c0_24, %c0_25], %25 {strides = array<i32>} : memref<8x256xf32, #tpu.memory_space<vmem>>, vector<8x256xf32>,
    %c0_26 = arith.constant 0 : index
    %c0_27 = arith.constant 0 : index
    %27 = vector.load %arg12[%c0_26, %c0_27] : memref<8x256xf32, #tpu.memory_space<vmem>>, vector<8x256xf32>
    %28 = arith.mulf %15, %15 : vector<32x256xf32>
    %cst_28 = arith.constant dense<0.000000e+00> : vector<256xf32>
    %29 = vector.multi_reduction <add>, %28, %cst_28 [0] : vector<32x256xf32> to vector<256xf32>
    %30 = vector.shape_cast %29 : vector<256xf32> to vector<1x256xf32>
    %31 = vector.broadcast %30 : vector<1x256xf32> to vector<8x256xf32>
    %32 = arith.addf %27, %31 : vector<8x256xf32>
    %c0_29 = arith.constant 0 : index
    %c0_30 = arith.constant 0 : index
    %33 = vector.load %arg12[%c0_29, %c0_30] : memref<8x256xf32, #tpu.memory_space<vmem>>, vector<8x256xf32>
    tpu.vector_store %arg12[%c0_29, %c0_30], %32 {strides = array<i32>} : memref<8x256xf32, #tpu.memory_space<vmem>>, vector<8x256xf32>,
    return
  }
  func.func @transform_0(%arg0: i32, %arg1: i32) -> (i32, i32) {
    %c2_i32 = arith.constant 2 : i32
    %0 = arith.muli %arg0, %c2_i32 : i32
    %1 = arith.addi %0, %arg1 : i32
    %c0_i32 = arith.constant 0 : i32
    %c0_i32_0 = arith.constant 0 : i32
    return %1, %c0_i32 : i32, i32
  }
  func.func @transform_1(%arg0: i32, %arg1: i32) -> (i32, i32) {
    %c2_i32 = arith.constant 2 : i32
    %0 = arith.muli %arg0, %c2_i32 : i32
    %1 = arith.addi %0, %arg1 : i32
    %c0_i32 = arith.constant 0 : i32
    %c0_i32_0 = arith.constant 0 : i32
    return %1, %c0_i32 : i32, i32
  }
  func.func @transform_2(%arg0: i32, %arg1: i32) -> (i32, i32) {
    %c2_i32 = arith.constant 2 : i32
    %0 = arith.muli %arg0, %c2_i32 : i32
    %1 = arith.addi %0, %arg1 : i32
    %c0_i32 = arith.constant 0 : i32
    %c0_i32_0 = arith.constant 0 : i32
    return %1, %c0_i32 : i32, i32
  }
  func.func @transform_3(%arg0: i32, %arg1: i32) -> (i32, i32) {
    %c0_i32 = arith.constant 0 : i32
    %c0_i32_0 = arith.constant 0 : i32
    %c0_i32_1 = arith.constant 0 : i32
    return %c0_i32, %c0_i32_0 : i32, i32
  }
  func.func @transform_4(%arg0: i32, %arg1: i32) -> (i32, i32) {
    %c0_i32 = arith.constant 0 : i32
    %c0_i32_0 = arith.constant 0 : i32
    %c0_i32_1 = arith.constant 0 : i32
    return %c0_i32, %c0_i32_0 : i32, i32
  }
  func.func @transform_5(%arg0: i32, %arg1: i32) -> (i32, i32) {
    %c0_i32 = arith.constant 0 : i32
    %c0_i32_0 = arith.constant 0 : i32
    %c0_i32_1 = arith.constant 0 : i32
    return %c0_i32, %c0_i32_0 : i32, i32
  }
  func.func @transform_6(%arg0: i32, %arg1: i32) -> (i32, i32) {
    %c0_i32 = arith.constant 0 : i32
    %c0_i32_0 = arith.constant 0 : i32
    %c0_i32_1 = arith.constant 0 : i32
    return %c0_i32, %c0_i32_0 : i32, i32
  }
  func.func @transform_7(%arg0: i32, %arg1: i32) -> (i32, i32) {
    %c2_i32 = arith.constant 2 : i32
    %0 = arith.muli %arg0, %c2_i32 : i32
    %1 = arith.addi %0, %arg1 : i32
    %c0_i32 = arith.constant 0 : i32
    %c0_i32_0 = arith.constant 0 : i32
    return %1, %c0_i32 : i32, i32
  }
  func.func @transform_8(%arg0: i32, %arg1: i32) -> (i32, i32) {
    %c2_i32 = arith.constant 2 : i32
    %0 = arith.muli %arg0, %c2_i32 : i32
    %1 = arith.addi %0, %arg1 : i32
    %c0_i32 = arith.constant 0 : i32
    %c0_i32_0 = arith.constant 0 : i32
    return %1, %c0_i32 : i32, i32
  }
  func.func @transform_9(%arg0: i32, %arg1: i32) -> (i32, i32) {
    %c0_i32 = arith.constant 0 : i32
    %c0_i32_0 = arith.constant 0 : i32
    return %arg0, %c0_i32 : i32, i32
  }
  func.func @transform_10(%arg0: i32, %arg1: i32) -> (i32, i32) {
    %c0_i32 = arith.constant 0 : i32
    %c0_i32_0 = arith.constant 0 : i32
    return %arg0, %c0_i32 : i32, i32
  }
}

module attributes {stable_mosaic.version = 11 : i64} {
  func.func @_x1_kernel(%arg0: i32, %arg1: i32, %arg2: memref<32x256xf32, #tpu.memory_space<vmem>>, %arg3: memref<1x256xf32, #tpu.memory_space<vmem>>, %arg4: memref<1x256xf32, #tpu.memory_space<vmem>>, %arg5: memref<256x256xf32, #tpu.memory_space<vmem>>, %arg6: memref<32x256xf32, #tpu.memory_space<vmem>>, %arg7: memref<8x256xf32, #tpu.memory_space<vmem>>, %arg8: memref<8x256xf32, #tpu.memory_space<vmem>>) attributes {dimension_semantics = [#tpu.dimension_semantics<parallel>, #tpu.dimension_semantics<arbitrary>], iteration_bounds = array<i64: 2, 2>, scalar_prefetch = 0 : i64, scratch_operands = 0 : i64, tpu.core_type = #tpu.core_type<tc>, window_params = [{transform_indices = @transform_0, window_bounds = array<i64: 32, 256>}, {pipeline_mode = #tpu.pipeline_mode<synchronous>, transform_indices = @transform_1, window_bounds = array<i64: 1, 256>}, {pipeline_mode = #tpu.pipeline_mode<synchronous>, transform_indices = @transform_2, window_bounds = array<i64: 1, 256>}, {pipeline_mode = #tpu.pipeline_mode<synchronous>, transform_indices = @transform_3, window_bounds = array<i64: 256, 256>}, {transform_indices = @transform_4, window_bounds = array<i64: 32, 256>}, {transform_indices = @transform_5, window_bounds = array<i64: 8, 256>}, {transform_indices = @transform_6, window_bounds = array<i64: 8, 256>}]} {
    %c0 = arith.constant 0 : index
    %c0_0 = arith.constant 0 : index
    %0 = vector.load %arg2[%c0, %c0_0] : memref<32x256xf32, #tpu.memory_space<vmem>>, vector<32x256xf32>
    %c0_1 = arith.constant 0 : index
    %c0_2 = arith.constant 0 : index
    %1 = vector.load %arg3[%c0_1, %c0_2] : memref<1x256xf32, #tpu.memory_space<vmem>>, vector<1x256xf32>
    %2 = vector.broadcast %1 : vector<1x256xf32> to vector<32x256xf32>
    %3 = arith.mulf %0, %2 : vector<32x256xf32>
    %c0_3 = arith.constant 0 : index
    %c0_4 = arith.constant 0 : index
    %4 = vector.load %arg4[%c0_3, %c0_4] : memref<1x256xf32, #tpu.memory_space<vmem>>, vector<1x256xf32>
    %5 = vector.broadcast %4 : vector<1x256xf32> to vector<32x256xf32>
    %6 = arith.addf %3, %5 : vector<32x256xf32>
    %cst = arith.constant 0.000000e+00 : f32
    %7 = vector.broadcast %cst : f32 to vector<32x256xf32>
    %8 = arith.maximumf %6, %7 : vector<32x256xf32>
    %c0_5 = arith.constant 0 : index
    %c0_6 = arith.constant 0 : index
    %9 = vector.load %arg5[%c0_5, %c0_6] : memref<256x256xf32, #tpu.memory_space<vmem>>, vector<256x256xf32>
    %cst_7 = arith.constant dense<0.000000e+00> : vector<32x256xf32>
    %10 = tpu.matmul %8, %9, %cst_7 {dimension_numbers = #tpu.dot_dimension_numbers<[1], [0], [0], [1], [0, 0, 1, 1], [], []>} : vector<32x256xf32>, vector<256x256xf32>, vector<32x256xf32> -> vector<32x256xf32>
    %c0_8 = arith.constant 0 : index
    %c0_9 = arith.constant 0 : index
    %11 = vector.load %arg6[%c0_8, %c0_9] : memref<32x256xf32, #tpu.memory_space<vmem>>, vector<32x256xf32>
    tpu.vector_store %arg6[%c0_8, %c0_9], %10 {strides = array<i32>} : memref<32x256xf32, #tpu.memory_space<vmem>>, vector<32x256xf32>,
    %c0_i32 = arith.constant 0 : i32
    %12 = arith.cmpi eq, %arg1, %c0_i32 : i32
    %13 = arith.extui %12 : i1 to i32
    %c0_i32_10 = arith.constant 0 : i32
    %14 = arith.cmpi ne, %13, %c0_i32_10 : i32
    scf.if %14 {
      %cst_21 = arith.constant 0.000000e+00 : f32
      %28 = vector.broadcast %cst_21 : f32 to vector<8x256xf32>
      %c0_22 = arith.constant 0 : index
      %c0_23 = arith.constant 0 : index
      %29 = vector.load %arg7[%c0_22, %c0_23] : memref<8x256xf32, #tpu.memory_space<vmem>>, vector<8x256xf32>
      tpu.vector_store %arg7[%c0_22, %c0_23], %28 {strides = array<i32>} : memref<8x256xf32, #tpu.memory_space<vmem>>, vector<8x256xf32>,
      %cst_24 = arith.constant 0.000000e+00 : f32
      %30 = vector.broadcast %cst_24 : f32 to vector<8x256xf32>
      %c0_25 = arith.constant 0 : index
      %c0_26 = arith.constant 0 : index
      %31 = vector.load %arg8[%c0_25, %c0_26] : memref<8x256xf32, #tpu.memory_space<vmem>>, vector<8x256xf32>
      tpu.vector_store %arg8[%c0_25, %c0_26], %30 {strides = array<i32>} : memref<8x256xf32, #tpu.memory_space<vmem>>, vector<8x256xf32>,
    } else {
    }
    %c0_11 = arith.constant 0 : index
    %c0_12 = arith.constant 0 : index
    %15 = vector.load %arg7[%c0_11, %c0_12] : memref<8x256xf32, #tpu.memory_space<vmem>>, vector<8x256xf32>
    %cst_13 = arith.constant dense<0.000000e+00> : vector<256xf32>
    %16 = vector.multi_reduction <add>, %10, %cst_13 [0] : vector<32x256xf32> to vector<256xf32>
    %17 = vector.shape_cast %16 : vector<256xf32> to vector<1x256xf32>
    %18 = vector.broadcast %17 : vector<1x256xf32> to vector<8x256xf32>
    %19 = arith.addf %15, %18 : vector<8x256xf32>
    %c0_14 = arith.constant 0 : index
    %c0_15 = arith.constant 0 : index
    %20 = vector.load %arg7[%c0_14, %c0_15] : memref<8x256xf32, #tpu.memory_space<vmem>>, vector<8x256xf32>
    tpu.vector_store %arg7[%c0_14, %c0_15], %19 {strides = array<i32>} : memref<8x256xf32, #tpu.memory_space<vmem>>, vector<8x256xf32>,
    %c0_16 = arith.constant 0 : index
    %c0_17 = arith.constant 0 : index
    %21 = vector.load %arg8[%c0_16, %c0_17] : memref<8x256xf32, #tpu.memory_space<vmem>>, vector<8x256xf32>
    %22 = arith.mulf %10, %10 : vector<32x256xf32>
    %cst_18 = arith.constant dense<0.000000e+00> : vector<256xf32>
    %23 = vector.multi_reduction <add>, %22, %cst_18 [0] : vector<32x256xf32> to vector<256xf32>
    %24 = vector.shape_cast %23 : vector<256xf32> to vector<1x256xf32>
    %25 = vector.broadcast %24 : vector<1x256xf32> to vector<8x256xf32>
    %26 = arith.addf %21, %25 : vector<8x256xf32>
    %c0_19 = arith.constant 0 : index
    %c0_20 = arith.constant 0 : index
    %27 = vector.load %arg8[%c0_19, %c0_20] : memref<8x256xf32, #tpu.memory_space<vmem>>, vector<8x256xf32>
    tpu.vector_store %arg8[%c0_19, %c0_20], %26 {strides = array<i32>} : memref<8x256xf32, #tpu.memory_space<vmem>>, vector<8x256xf32>,
    return
  }
  func.func @transform_0(%arg0: i32, %arg1: i32) -> (i32, i32) {
    %c2_i32 = arith.constant 2 : i32
    %0 = arith.muli %arg0, %c2_i32 : i32
    %1 = arith.addi %0, %arg1 : i32
    %c0_i32 = arith.constant 0 : i32
    %c0_i32_0 = arith.constant 0 : i32
    return %1, %c0_i32 : i32, i32
  }
  func.func @transform_1(%arg0: i32, %arg1: i32) -> (i32, i32) {
    %c0_i32 = arith.constant 0 : i32
    %c0_i32_0 = arith.constant 0 : i32
    %c0_i32_1 = arith.constant 0 : i32
    return %c0_i32, %c0_i32_0 : i32, i32
  }
  func.func @transform_2(%arg0: i32, %arg1: i32) -> (i32, i32) {
    %c0_i32 = arith.constant 0 : i32
    %c0_i32_0 = arith.constant 0 : i32
    %c0_i32_1 = arith.constant 0 : i32
    return %c0_i32, %c0_i32_0 : i32, i32
  }
  func.func @transform_3(%arg0: i32, %arg1: i32) -> (i32, i32) {
    %c0_i32 = arith.constant 0 : i32
    %c0_i32_0 = arith.constant 0 : i32
    %c0_i32_1 = arith.constant 0 : i32
    return %c0_i32, %c0_i32_0 : i32, i32
  }
  func.func @transform_4(%arg0: i32, %arg1: i32) -> (i32, i32) {
    %c2_i32 = arith.constant 2 : i32
    %0 = arith.muli %arg0, %c2_i32 : i32
    %1 = arith.addi %0, %arg1 : i32
    %c0_i32 = arith.constant 0 : i32
    %c0_i32_0 = arith.constant 0 : i32
    return %1, %c0_i32 : i32, i32
  }
  func.func @transform_5(%arg0: i32, %arg1: i32) -> (i32, i32) {
    %c0_i32 = arith.constant 0 : i32
    %c0_i32_0 = arith.constant 0 : i32
    return %arg0, %c0_i32 : i32, i32
  }
  func.func @transform_6(%arg0: i32, %arg1: i32) -> (i32, i32) {
    %c0_i32 = arith.constant 0 : i32
    %c0_i32_0 = arith.constant 0 : i32
    return %arg0, %c0_i32 : i32, i32
  }
}

module attributes {stable_mosaic.version = 11 : i64} {
  func.func @_final_kernel(%arg0: i32, %arg1: memref<32x256xf32, #tpu.memory_space<vmem>>, %arg2: memref<32x256xf32, #tpu.memory_space<vmem>>, %arg3: memref<32x256xf32, #tpu.memory_space<vmem>>, %arg4: memref<1x256xf32, #tpu.memory_space<vmem>>, %arg5: memref<1x256xf32, #tpu.memory_space<vmem>>, %arg6: memref<256x256xf32, #tpu.memory_space<vmem>>, %arg7: memref<1x256xf32, #tpu.memory_space<vmem>>, %arg8: memref<32x256xf32, #tpu.memory_space<vmem>>) attributes {dimension_semantics = [#tpu.dimension_semantics<parallel>], iteration_bounds = array<i64: 4>, scalar_prefetch = 0 : i64, scratch_operands = 0 : i64, tpu.core_type = #tpu.core_type<tc>, window_params = [{transform_indices = @transform_0, window_bounds = array<i64: 32, 256>}, {transform_indices = @transform_1, window_bounds = array<i64: 32, 256>}, {transform_indices = @transform_2, window_bounds = array<i64: 32, 256>}, {pipeline_mode = #tpu.pipeline_mode<synchronous>, transform_indices = @transform_3, window_bounds = array<i64: 1, 256>}, {pipeline_mode = #tpu.pipeline_mode<synchronous>, transform_indices = @transform_4, window_bounds = array<i64: 1, 256>}, {pipeline_mode = #tpu.pipeline_mode<synchronous>, transform_indices = @transform_5, window_bounds = array<i64: 256, 256>}, {pipeline_mode = #tpu.pipeline_mode<synchronous>, transform_indices = @transform_6, window_bounds = array<i64: 1, 256>}, {transform_indices = @transform_7, window_bounds = array<i64: 32, 256>}]} {
    %c0 = arith.constant 0 : index
    %c0_0 = arith.constant 0 : index
    %0 = vector.load %arg1[%c0, %c0_0] : memref<32x256xf32, #tpu.memory_space<vmem>>, vector<32x256xf32>
    %c0_1 = arith.constant 0 : index
    %c0_2 = arith.constant 0 : index
    %1 = vector.load %arg4[%c0_1, %c0_2] : memref<1x256xf32, #tpu.memory_space<vmem>>, vector<1x256xf32>
    %2 = vector.broadcast %1 : vector<1x256xf32> to vector<32x256xf32>
    %3 = arith.mulf %0, %2 : vector<32x256xf32>
    %c0_3 = arith.constant 0 : index
    %c0_4 = arith.constant 0 : index
    %4 = vector.load %arg5[%c0_3, %c0_4] : memref<1x256xf32, #tpu.memory_space<vmem>>, vector<1x256xf32>
    %5 = vector.broadcast %4 : vector<1x256xf32> to vector<32x256xf32>
    %6 = arith.addf %3, %5 : vector<32x256xf32>
    %cst = arith.constant 0.000000e+00 : f32
    %7 = vector.broadcast %cst : f32 to vector<32x256xf32>
    %8 = arith.maximumf %6, %7 : vector<32x256xf32>
    %c0_5 = arith.constant 0 : index
    %c0_6 = arith.constant 0 : index
    %9 = vector.load %arg6[%c0_5, %c0_6] : memref<256x256xf32, #tpu.memory_space<vmem>>, vector<256x256xf32>
    %cst_7 = arith.constant dense<0.000000e+00> : vector<32x256xf32>
    %10 = tpu.matmul %8, %9, %cst_7 {dimension_numbers = #tpu.dot_dimension_numbers<[1], [0], [0], [1], [0, 0, 1, 1], [], []>} : vector<32x256xf32>, vector<256x256xf32>, vector<32x256xf32> -> vector<32x256xf32>
    %c0_8 = arith.constant 0 : index
    %c0_9 = arith.constant 0 : index
    %11 = vector.load %arg7[%c0_8, %c0_9] : memref<1x256xf32, #tpu.memory_space<vmem>>, vector<1x256xf32>
    %12 = vector.broadcast %11 : vector<1x256xf32> to vector<32x256xf32>
    %13 = arith.addf %10, %12 : vector<32x256xf32>
    %c32_i32 = arith.constant 32 : i32
    %14 = tpu.dynamic_rotate %13 by %c32_i32 dim 1 : vector<32x256xf32>, i32 -> vector<32x256xf32>
    %15 = arith.maximumf %13, %14 : vector<32x256xf32>
    %c64_i32 = arith.constant 64 : i32
    %16 = tpu.dynamic_rotate %15 by %c64_i32 dim 1 : vector<32x256xf32>, i32 -> vector<32x256xf32>
    %17 = arith.maximumf %15, %16 : vector<32x256xf32>
    %c128_i32 = arith.constant 128 : i32
    %18 = tpu.dynamic_rotate %17 by %c128_i32 dim 1 : vector<32x256xf32>, i32 -> vector<32x256xf32>
    %19 = arith.maximumf %17, %18 : vector<32x256xf32>
    %20 = arith.subf %13, %19 : vector<32x256xf32>
    %21 = math.exp %20 : vector<32x256xf32>
    %c32_i32_10 = arith.constant 32 : i32
    %22 = tpu.dynamic_rotate %21 by %c32_i32_10 dim 1 : vector<32x256xf32>, i32 -> vector<32x256xf32>
    %23 = arith.addf %21, %22 : vector<32x256xf32>
    %c64_i32_11 = arith.constant 64 : i32
    %24 = tpu.dynamic_rotate %23 by %c64_i32_11 dim 1 : vector<32x256xf32>, i32 -> vector<32x256xf32>
    %25 = arith.addf %23, %24 : vector<32x256xf32>
    %c128_i32_12 = arith.constant 128 : i32
    %26 = tpu.dynamic_rotate %25 by %c128_i32_12 dim 1 : vector<32x256xf32>, i32 -> vector<32x256xf32>
    %27 = arith.addf %25, %26 : vector<32x256xf32>
    %28 = tpu.reciprocal %27 {approx = true} : vector<32x256xf32> -> vector<32x256xf32>
    %29 = arith.mulf %21, %28 : vector<32x256xf32>
    %c0_13 = arith.constant 0 : index
    %c0_14 = arith.constant 0 : index
    %30 = vector.load %arg3[%c0_13, %c0_14] : memref<32x256xf32, #tpu.memory_space<vmem>>, vector<32x256xf32>
    %c0_15 = arith.constant 0 : index
    %c0_16 = arith.constant 0 : index
    %31 = vector.load %arg2[%c0_15, %c0_16] : memref<32x256xf32, #tpu.memory_space<vmem>>, vector<32x256xf32>
    %32 = arith.addf %30, %31 : vector<32x256xf32>
    %33 = arith.mulf %29, %32 : vector<32x256xf32>
    %c32_i32_17 = arith.constant 32 : i32
    %34 = tpu.dynamic_rotate %33 by %c32_i32_17 dim 1 : vector<32x256xf32>, i32 -> vector<32x256xf32>
    %35 = arith.addf %33, %34 : vector<32x256xf32>
    %c64_i32_18 = arith.constant 64 : i32
    %36 = tpu.dynamic_rotate %35 by %c64_i32_18 dim 1 : vector<32x256xf32>, i32 -> vector<32x256xf32>
    %37 = arith.addf %35, %36 : vector<32x256xf32>
    %c128_i32_19 = arith.constant 128 : i32
    %38 = tpu.dynamic_rotate %37 by %c128_i32_19 dim 1 : vector<32x256xf32>, i32 -> vector<32x256xf32>
    %39 = arith.addf %37, %38 : vector<32x256xf32>
    %c0_20 = arith.constant 0 : index
    %c0_21 = arith.constant 0 : index
    %40 = vector.load %arg8[%c0_20, %c0_21] : memref<32x256xf32, #tpu.memory_space<vmem>>, vector<32x256xf32>
    tpu.vector_store %arg8[%c0_20, %c0_21], %39 {strides = array<i32>} : memref<32x256xf32, #tpu.memory_space<vmem>>, vector<32x256xf32>,
    return
  }
  func.func @transform_0(%arg0: i32) -> (i32, i32) {
    %c0_i32 = arith.constant 0 : i32
    %c0_i32_0 = arith.constant 0 : i32
    return %arg0, %c0_i32 : i32, i32
  }
  func.func @transform_1(%arg0: i32) -> (i32, i32) {
    %c0_i32 = arith.constant 0 : i32
    %c0_i32_0 = arith.constant 0 : i32
    return %arg0, %c0_i32 : i32, i32
  }
  func.func @transform_2(%arg0: i32) -> (i32, i32) {
    %c0_i32 = arith.constant 0 : i32
    %c0_i32_0 = arith.constant 0 : i32
    return %arg0, %c0_i32 : i32, i32
  }
  func.func @transform_3(%arg0: i32) -> (i32, i32) {
    %c0_i32 = arith.constant 0 : i32
    %c0_i32_0 = arith.constant 0 : i32
    %c0_i32_1 = arith.constant 0 : i32
    return %c0_i32, %c0_i32_0 : i32, i32
  }
  func.func @transform_4(%arg0: i32) -> (i32, i32) {
    %c0_i32 = arith.constant 0 : i32
    %c0_i32_0 = arith.constant 0 : i32
    %c0_i32_1 = arith.constant 0 : i32
    return %c0_i32, %c0_i32_0 : i32, i32
  }
  func.func @transform_5(%arg0: i32) -> (i32, i32) {
    %c0_i32 = arith.constant 0 : i32
    %c0_i32_0 = arith.constant 0 : i32
    %c0_i32_1 = arith.constant 0 : i32
    return %c0_i32, %c0_i32_0 : i32, i32
  }
  func.func @transform_6(%arg0: i32) -> (i32, i32) {
    %c0_i32 = arith.constant 0 : i32
    %c0_i32_0 = arith.constant 0 : i32
    %c0_i32_1 = arith.constant 0 : i32
    return %c0_i32, %c0_i32_0 : i32, i32
  }
  func.func @transform_7(%arg0: i32) -> (i32, i32) {
    %c0_i32 = arith.constant 0 : i32
    %c0_i32_0 = arith.constant 0 : i32
    return %arg0, %c0_i32 : i32, i32
  }
}

</mosaic_0001>

<llo_original>
// kernel: tile.49
$region0: #{tile.49}
  %s0 = inlined_call_operand.vmem [shape: f32[8,32], index: 0, kind: input, shape index: {}]
  %s1 = inlined_call_operand.vmem [shape: f32[1,256], index: 1, kind: output, shape index: {}]
  $region1: #{tile.49} parent=0
    #allocation0 [shape = 'u8[8192]{0}', space=vmem, size = 0x2000, scoped, tag = 'scoped mem for output reshape']
    %s2 = smov 3
    %v3 = vld [vmem:[%s0] ss:$4 sm:%s2]
    %vm4 = vcmask 261120
    %5 = vst.msk [vmem:[#allocation0] ss:$8 sm:$0x3] %vm4, %v3
    %s6 = scalar_lea.vmem %s0, 3
    %s7 = smov 3
    %v8 = vld [vmem:[%s6] ss:$4 sm:%s7]
    %9 = vrot.lane.b32.xlu0 %v8, 96
    %v10 = vpop.permute.xlu0 %9
    %vm11 = vcmask 1048320
    %12 = vst.msk [vmem:[#allocation0] ss:$8 sm:$0x3] %vm11, %v10
    %s13 = scalar_lea.vmem %s0, 2
    %s14 = smov 3
    %v15 = vld [vmem:[%s13] ss:$4 sm:%s14]
    %16 = vrot.lane.b32.xlu0 %v15, 64
    %v17 = vpop.permute.xlu0 %16
    %vm18 = vcmask 785920
    %19 = vst.msk [vmem:[#allocation0] ss:$8 sm:$0x3] %vm18, %v17
    %s20 = scalar_lea.vmem %s0, 1
    %s21 = smov 3
    %v22 = vld [vmem:[%s20] ss:$4 sm:%s21]
    %23 = vrot.lane.b32.xlu0 %v22, 32
    %v24 = vpop.permute.xlu0 %23
    %vm25 = vcmask 523520
    %26 = vst.msk [vmem:[#allocation0] ss:$8 sm:$0x3] %vm25, %v24
    %s28 = sshllo.u32 0, 1
    %v30 = vld [vmem:[#allocation0] sm:%s28]
    %s31 = sshllo.u32 0, 1
    %32 = vst [vmem:[%s1] sm:%s31] %v30
    %s33 = scalar_lea.vmem [#allocation0], 8
    %v34 = vld [vmem:[%s33] sm:%s28]
    %s35 = sshllo.u32 0, 1
    %s36 = scalar_lea.vmem %s1, 1
    %37 = vst [vmem:[%s36] sm:%s35] %v34

// kernel: tile.48
$region0: #{tile.48}
  #allocation0 [shape = 's32[1]{0}', space=sflag, size = 0x4, scoped, tag = 'scoped memory for tile.48']
  %s0 = inlined_call_operand.vmem [shape: f32[32], index: 0, kind: input, shape index: {}]
  %s1 = inlined_call_operand.vmem [shape: f32[8,32], index: 1, kind: output, shape index: {}]
  // Predicated region
  $region2: #{tile.48} parent=0 // pred_check
    _
  $region3: #{tile.48} parent=0 // pred_check_branch
    %3 = sbr.rel (0) target = $region5
  $region4: #{tile.48} parent=0 // pred_region
    _
  $region5: #{tile.48} parent=0 // pred_fallthru
    _
  %v4 = vld [vmem:[%s0] ss:$0 sm:$0xff]
  %5 = vst [vmem:[%s1] sm:$0xff] %v4

// kernel: tile.44
$region0: #{tile.44}
  %s0 = inlined_call_operand.vmem [shape: f32[16,8,32], index: 0, kind: input, shape index: {}]
  %s1 = inlined_call_operand.vmem [shape: f32[16,256], index: 1, kind: output, shape index: {}]
  %v2 = vld [vmem:[%s0] ss:$4 sm:$0xff]
  %vm3 = vcmask 261120
  %4 = vst.msk [vmem:[%s1] ss:$8 sm:$0x3] %vm3, %v2
  %s5 = scalar_lea.vmem %s1, 4294967281
  %6 = vst.msk [vmem:[%s5] ss:$8 sm:$0xc] %vm3, %v2
  %s7 = scalar_lea.vmem %s1, 4294967266
  %8 = vst.msk [vmem:[%s7] ss:$8 sm:$0x30] %vm3, %v2
  %s9 = scalar_lea.vmem %s1, 4294967251
  %10 = vst.msk [vmem:[%s9] ss:$8 sm:$0xc0] %vm3, %v2
  %s11 = scalar_lea.vmem %s0, 32
  %v12 = vld [vmem:[%s11] ss:$4 sm:$0xff]
  %vm13 = vcmask 261120
  %s14 = scalar_lea.vmem %s1, 4
  %15 = vst.msk [vmem:[%s14] ss:$8 sm:$0x3] %vm13, %v12
  %s16 = scalar_lea.vmem %s1, 4294967285
  %17 = vst.msk [vmem:[%s16] ss:$8 sm:$0xc] %vm13, %v12
  %s18 = scalar_lea.vmem %s1, 4294967270
  %19 = vst.msk [vmem:[%s18] ss:$8 sm:$0x30] %vm13, %v12
  %s20 = scalar_lea.vmem %s1, 4294967255
  %21 = vst.msk [vmem:[%s20] ss:$8 sm:$0xc0] %vm13, %v12
  %s22 = scalar_lea.vmem %s0, 64
  %v23 = vld [vmem:[%s22] ss:$4 sm:$0xff]
  %vm24 = vcmask 261120
  %s25 = scalar_lea.vmem %s1, 16
  %26 = vst.msk [vmem:[%s25] ss:$8 sm:$0x3] %vm24, %v23
  %s27 = scalar_lea.vmem %s1, 1
  %28 = vst.msk [vmem:[%s27] ss:$8 sm:$0xc] %vm24, %v23
  %s29 = scalar_lea.vmem %s1, 4294967282
  %30 = vst.msk [vmem:[%s29] ss:$8 sm:$0x30] %vm24, %v23
  %s31 = scalar_lea.vmem %s1, 4294967267
  %32 = vst.msk [vmem:[%s31] ss:$8 sm:$0xc0] %vm24, %v23
  %s33 = scalar_lea.vmem %s0, 96
  %v34 = vld [vmem:[%s33] ss:$4 sm:$0xff]
  %vm35 = vcmask 261120
  %s36 = scalar_lea.vmem %s1, 20
  %37 = vst.msk [vmem:[%s36] ss:$8 sm:$0x3] %vm35, %v34
  %s38 = scalar_lea.vmem %s1, 5
  %39 = vst.msk [vmem:[%s38] ss:$8 sm:$0xc] %vm35, %v34
  %s40 = scalar_lea.vmem %s1, 4294967286
  %41 = vst.msk [vmem:[%s40] ss:$8 sm:$0x30] %vm35, %v34
  %s42 = scalar_lea.vmem %s1, 4294967271
  %43 = vst.msk [vmem:[%s42] ss:$8 sm:$0xc0] %vm35, %v34
  %s44 = scalar_lea.vmem %s0, 3
  %v45 = vld [vmem:[%s44] ss:$8 sm:$0xf]
  %s46 = scalar_lea.vmem %s0, 3
  %v47 = vld [vmem:[%s46] ss:$8 sm:$0xf0]
  %vm48 = vcmask 1047556
  %v49 = vsel %vm48, %v47, %v45
  %50 = vrot.lane.b32.xlu0 %v49, 96
  %v51 = vpop.permute.xlu0 %50
  %vm52 = vcmask 1048320
  %53 = vst.msk [vmem:[%s1] sm:$0xff] %vm52, %v51
  %s54 = scalar_lea.vmem %s0, 7
  %v55 = vld [vmem:[%s54] ss:$8 sm:$0xf]
  %s56 = scalar_lea.vmem %s0, 7
  %v57 = vld [vmem:[%s56] ss:$8 sm:$0xf0]
  %vm58 = vcmask 1047556
  %v59 = vsel %vm58, %v57, %v55
  %60 = vrot.lane.b32.xlu0 %v59, 96
  %v61 = vpop.permute.xlu0 %60
  %vm62 = vcmask 1048320
  %s63 = scalar_lea.vmem %s1, 8
  %64 = vst.msk [vmem:[%s63] sm:$0xff] %vm62, %v61
  %s65 = scalar_lea.vmem %s0, 67
  %v66 = vld [vmem:[%s65] ss:$8 sm:$0xf]
  %s67 = scalar_lea.vmem %s0, 67
  %v68 = vld [vmem:[%s67] ss:$8 sm:$0xf0]
  %vm69 = vcmask 1047556
  %v70 = vsel %vm69, %v68, %v66
  %71 = vrot.lane.b32.xlu0 %v70, 96
  %v72 = vpop.permute.xlu0 %71
  %vm73 = vcmask 1048320
  %s74 = scalar_lea.vmem %s1, 16
  %75 = vst.msk [vmem:[%s74] sm:$0xff] %vm73, %v72
  %s76 = scalar_lea.vmem %s0, 71
  %v77 = vld [vmem:[%s76] ss:$8 sm:$0xf]
  %s78 = scalar_lea.vmem %s0, 71
  %v79 = vld [vmem:[%s78] ss:$8 sm:$0xf0]
  %vm80 = vcmask 1047556
  %v81 = vsel %vm80, %v79, %v77
  %82 = vrot.lane.b32.xlu0 %v81, 96
  %v83 = vpop.permute.xlu0 %82
  %vm84 = vcmask 1048320
  %s85 = scalar_lea.vmem %s1, 24
  %86 = vst.msk [vmem:[%s85] sm:$0xff] %vm84, %v83
  %s87 = scalar_lea.vmem %s0, 2
  %v88 = vld [vmem:[%s87] ss:$8 sm:$0xf]
  %s89 = scalar_lea.vmem %s0, 2
  %v90 = vld [vmem:[%s89] ss:$8 sm:$0xf0]
  %vm91 = vcmask 1047556
  %v92 = vsel %vm91, %v90, %v88
  %93 = vrot.lane.b32.xlu0 %v92, 64
  %v94 = vpop.permute.xlu0 %93
  %vm95 = vcmask 785920
  %96 = vst.msk [vmem:[%s1] sm:$0xff] %vm95, %v94
  %s97 = scalar_lea.vmem %s0, 6
  %v98 = vld [vmem:[%s97] ss:$8 sm:$0xf]
  %s99 = scalar_lea.vmem %s0, 6
  %v100 = vld [vmem:[%s99] ss:$8 sm:$0xf0]
  %vm101 = vcmask 1047556
  %v102 = vsel %vm101, %v100, %v98
  %103 = vrot.lane.b32.xlu0 %v102, 64
  %v104 = vpop.permute.xlu0 %103
  %vm105 = vcmask 785920
  %s106 = scalar_lea.vmem %s1, 8
  %107 = vst.msk [vmem:[%s106] sm:$0xff] %vm105, %v104
  %s108 = scalar_lea.vmem %s0, 66
  %v109 = vld [vmem:[%s108] ss:$8 sm:$0xf]
  %s110 = scalar_lea.vmem %s0, 66
  %v111 = vld [vmem:[%s110] ss:$8 sm:$0xf0]
  %vm112 = vcmask 1047556
  %v113 = vsel %vm112, %v111, %v109
  %114 = vrot.lane.b32.xlu0 %v113, 64
  %v115 = vpop.permute.xlu0 %114
  %vm116 = vcmask 785920
  %s117 = scalar_lea.vmem %s1, 16
  %118 = vst.msk [vmem:[%s117] sm:$0xff] %vm116, %v115
  %s119 = scalar_lea.vmem %s0, 70
  %v120 = vld [vmem:[%s119] ss:$8 sm:$0xf]
  %s121 = scalar_lea.vmem %s0, 70
  %v122 = vld [vmem:[%s121] ss:$8 sm:$0xf0]
  %vm123 = vcmask 1047556
  %v124 = vsel %vm123, %v122, %v120
  %125 = vrot.lane.b32.xlu0 %v124, 64
  %v126 = vpop.permute.xlu0 %125
  %vm127 = vcmask 785920
  %s128 = scalar_lea.vmem %s1, 24
  %129 = vst.msk [vmem:[%s128] sm:$0xff] %vm127, %v126
  %s130 = scalar_lea.vmem %s0, 1
  %v131 = vld [vmem:[%s130] ss:$8 sm:$0xf]
  %s132 = scalar_lea.vmem %s0, 1
  %v133 = vld [vmem:[%s132] ss:$8 sm:$0xf0]
  %vm134 = vcmask 1047556
  %v135 = vsel %vm134, %v133, %v131
  %136 = vrot.lane.b32.xlu0 %v135, 32
  %v137 = vpop.permute.xlu0 %136
  %vm138 = vcmask 523520
  %139 = vst.msk [vmem:[%s1] sm:$0xff] %vm138, %v137
  %s140 = scalar_lea.vmem %s0, 5
  %v141 = vld [vmem:[%s140] ss:$8 sm:$0xf]
  %s142 = scalar_lea.vmem %s0, 5
  %v143 = vld [vmem:[%s142] ss:$8 sm:$0xf0]
  %vm144 = vcmask 1047556
  %v145 = vsel %vm144, %v143, %v141
  %146 = vrot.lane.b32.xlu0 %v145, 32
  %v147 = vpop.permute.xlu0 %146
  %vm148 = vcmask 523520
  %s149 = scalar_lea.vmem %s1, 8
  %150 = vst.msk [vmem:[%s149] sm:$0xff] %vm148, %v147
  %s151 = scalar_lea.vmem %s0, 65
  %v152 = vld [vmem:[%s151] ss:$8 sm:$0xf]
  %s153 = scalar_lea.vmem %s0, 65
  %v154 = vld [vmem:[%s153] ss:$8 sm:$0xf0]
  %vm155 = vcmask 1047556
  %v156 = vsel %vm155, %v154, %v152
  %157 = vrot.lane.b32.xlu0 %v156, 32
  %v158 = vpop.permute.xlu0 %157
  %vm159 = vcmask 523520
  %s160 = scalar_lea.vmem %s1, 16
  %161 = vst.msk [vmem:[%s160] sm:$0xff] %vm159, %v158
  %s162 = scalar_lea.vmem %s0, 69
  %v163 = vld [vmem:[%s162] ss:$8 sm:$0xf]
  %s164 = scalar_lea.vmem %s0, 69
  %v165 = vld [vmem:[%s164] ss:$8 sm:$0xf0]
  %vm166 = vcmask 1047556
  %v167 = vsel %vm166, %v165, %v163
  %168 = vrot.lane.b32.xlu0 %v167, 32
  %v169 = vpop.permute.xlu0 %168
  %vm170 = vcmask 523520
  %s171 = scalar_lea.vmem %s1, 24
  %172 = vst.msk [vmem:[%s171] sm:$0xff] %vm170, %v169

// kernel: neg.1
$region0: #{neg.1}
  #allocation0 [shape = 's32[1]{0}', space=sflag, size = 0x4, scoped, tag = 'scoped memory for neg.1']
  %s0 = inlined_call_operand.vmem [shape: f32[128,128], index: 0, kind: input, shape index: {}]
  %s1 = inlined_call_operand.vmem [shape: f32[128,128], index: 1, kind: output, shape index: {}]
  %v2 = vld [vmem:[%s0] sm:$0xff]
  %3 = xla_tuple %v2
  %4 = xla_tuple %3
  %v5 = vxor.u32 %v2, 2147483648
  %6 = xla_tuple %v5
  %7 = vst [vmem:[%s1] sm:$0xff] %v5
  %s8 = scalar_lea.vmem %s0, 8
  %v9 = vld [vmem:[%s8] sm:$0xff]
  %10 = xla_tuple %v9
  %11 = xla_tuple %10
  %v12 = vxor.u32 %v9, 2147483648
  %13 = xla_tuple %v12
  %s14 = scalar_lea.vmem %s1, 8
  %15 = vst [vmem:[%s14] sm:$0xff] %v12
  %s16 = scalar_lea.vmem %s0, 16
  %v17 = vld [vmem:[%s16] sm:$0xff]
  %18 = xla_tuple %v17
  %19 = xla_tuple %18
  %v20 = vxor.u32 %v17, 2147483648
  %21 = xla_tuple %v20
  %s22 = scalar_lea.vmem %s1, 16
  %23 = vst [vmem:[%s22] sm:$0xff] %v20
  %s24 = scalar_lea.vmem %s0, 24
  %v25 = vld [vmem:[%s24] sm:$0xff]
  %26 = xla_tuple %v25
  %27 = xla_tuple %26
  %v28 = vxor.u32 %v25, 2147483648
  %29 = xla_tuple %v28
  %s30 = scalar_lea.vmem %s1, 24
  %31 = vst [vmem:[%s30] sm:$0xff] %v28
  %s32 = scalar_lea.vmem %s0, 32
  %v33 = vld [vmem:[%s32] sm:$0xff]
  %34 = xla_tuple %v33
  %35 = xla_tuple %34
  %v36 = vxor.u32 %v33, 2147483648
  %37 = xla_tuple %v36
  %s38 = scalar_lea.vmem %s1, 32
  %39 = vst [vmem:[%s38] sm:$0xff] %v36
  %s40 = scalar_lea.vmem %s0, 40
  %v41 = vld [vmem:[%s40] sm:$0xff]
  %42 = xla_tuple %v41
  %43 = xla_tuple %42
  %v44 = vxor.u32 %v41, 2147483648
  %45 = xla_tuple %v44
  %s46 = scalar_lea.vmem %s1, 40
  %47 = vst [vmem:[%s46] sm:$0xff] %v44
  %s48 = scalar_lea.vmem %s0, 48
  %v49 = vld [vmem:[%s48] sm:$0xff]
  %50 = xla_tuple %v49
  %51 = xla_tuple %50
  %v52 = vxor.u32 %v49, 2147483648
  %53 = xla_tuple %v52
  %s54 = scalar_lea.vmem %s1, 48
  %55 = vst [vmem:[%s54] sm:$0xff] %v52
  %s56 = scalar_lea.vmem %s0, 56
  %v57 = vld [vmem:[%s56] sm:$0xff]
  %58 = xla_tuple %v57
  %59 = xla_tuple %58
  %v60 = vxor.u32 %v57, 2147483648
  %61 = xla_tuple %v60
  %s62 = scalar_lea.vmem %s1, 56
  %63 = vst [vmem:[%s62] sm:$0xff] %v60
  %s64 = scalar_lea.vmem %s0, 64
  %v65 = vld [vmem:[%s64] sm:$0xff]
  %66 = xla_tuple %v65
  %67 = xla_tuple %66
  %v68 = vxor.u32 %v65, 2147483648
  %69 = xla_tuple %v68
  %s70 = scalar_lea.vmem %s1, 64
  %71 = vst [vmem:[%s70] sm:$0xff] %v68
  %s72 = scalar_lea.vmem %s0, 72
  %v73 = vld [vmem:[%s72] sm:$0xff]
  %74 = xla_tuple %v73
  %75 = xla_tuple %74
  %v76 = vxor.u32 %v73, 2147483648
  %77 = xla_tuple %v76
  %s78 = scalar_lea.vmem %s1, 72
  %79 = vst [vmem:[%s78] sm:$0xff] %v76
  %s80 = scalar_lea.vmem %s0, 80
  %v81 = vld [vmem:[%s80] sm:$0xff]
  %82 = xla_tuple %v81
  %83 = xla_tuple %82
  %v84 = vxor.u32 %v81, 2147483648
  %85 = xla_tuple %v84
  %s86 = scalar_lea.vmem %s1, 80
  %87 = vst [vmem:[%s86] sm:$0xff] %v84
  %s88 = scalar_lea.vmem %s0, 88
  %v89 = vld [vmem:[%s88] sm:$0xff]
  %90 = xla_tuple %v89
  %91 = xla_tuple %90
  %v92 = vxor.u32 %v89, 2147483648
  %93 = xla_tuple %v92
  %s94 = scalar_lea.vmem %s1, 88
  %95 = vst [vmem:[%s94] sm:$0xff] %v92
  %s96 = scalar_lea.vmem %s0, 96
  %v97 = vld [vmem:[%s96] sm:$0xff]
  %98 = xla_tuple %v97
  %99 = xla_tuple %98
  %v100 = vxor.u32 %v97, 2147483648
  %101 = xla_tuple %v100
  %s102 = scalar_lea.vmem %s1, 96
  %103 = vst [vmem:[%s102] sm:$0xff] %v100
  %s104 = scalar_lea.vmem %s0, 104
  %v105 = vld [vmem:[%s104] sm:$0xff]
  %106 = xla_tuple %v105
  %107 = xla_tuple %106
  %v108 = vxor.u32 %v105, 2147483648
  %109 = xla_tuple %v108
  %s110 = scalar_lea.vmem %s1, 104
  %111 = vst [vmem:[%s110] sm:$0xff] %v108
  %s112 = scalar_lea.vmem %s0, 112
  %v113 = vld [vmem:[%s112] sm:$0xff]
  %114 = xla_tuple %v113
  %115 = xla_tuple %114
  %v116 = vxor.u32 %v113, 2147483648
  %117 = xla_tuple %v116
  %s118 = scalar_lea.vmem %s1, 112
  %119 = vst [vmem:[%s118] sm:$0xff] %v116
  %s120 = scalar_lea.vmem %s0, 120
  %v121 = vld [vmem:[%s120] sm:$0xff]
  %122 = xla_tuple %v121
  %123 = xla_tuple %122
  %v124 = vxor.u32 %v121, 2147483648
  %125 = xla_tuple %v124
  %s126 = scalar_lea.vmem %s1, 120
  %127 = vst [vmem:[%s126] sm:$0xff] %v124

// kernel: sub.0
$region0: #{sub.0}
  #allocation0 [shape = 's32[1]{0}', space=sflag, size = 0x4, scoped, tag = 'scoped memory for sub.0']
  %s0 = inlined_call_operand.vmem [shape: f32[128,24], index: 0, kind: input, shape index: {}]
  %s1 = inlined_call_operand.vmem [shape: f32[128,24], index: 1, kind: input, shape index: {}]
  %s2 = inlined_call_operand.vmem [shape: f32[128,24], index: 2, kind: output, shape index: {}]
  %v3 = vld [vmem:[%s0] sm:$0xff]
  %v4 = vld [vmem:[%s1] sm:$0xff]
  %5 = xla_tuple %v3, %v4
  %6 = xla_tuple %5
  %v7 = vsub.f32 %v3, %v4
  %8 = xla_tuple %v7
  %9 = vst [vmem:[%s2] sm:$0xff] %v7
  %s10 = scalar_lea.vmem %s0, 8
  %v11 = vld [vmem:[%s10] sm:$0xff]
  %s12 = scalar_lea.vmem %s1, 8
  %v13 = vld [vmem:[%s12] sm:$0xff]
  %14 = xla_tuple %v11, %v13
  %15 = xla_tuple %14
  %v16 = vsub.f32 %v11, %v13
  %17 = xla_tuple %v16
  %s18 = scalar_lea.vmem %s2, 8
  %19 = vst [vmem:[%s18] sm:$0xff] %v16
  %s20 = scalar_lea.vmem %s0, 16
  %v21 = vld [vmem:[%s20] sm:$0xff]
  %s22 = scalar_lea.vmem %s1, 16
  %v23 = vld [vmem:[%s22] sm:$0xff]
  %24 = xla_tuple %v21, %v23
  %25 = xla_tuple %24
  %v26 = vsub.f32 %v21, %v23
  %27 = xla_tuple %v26
  %s28 = scalar_lea.vmem %s2, 16
  %29 = vst [vmem:[%s28] sm:$0xff] %v26
  %s30 = scalar_lea.vmem %s0, 24
  %v31 = vld [vmem:[%s30] sm:$0xff]
  %s32 = scalar_lea.vmem %s1, 24
  %v33 = vld [vmem:[%s32] sm:$0xff]
  %34 = xla_tuple %v31, %v33
  %35 = xla_tuple %34
  %v36 = vsub.f32 %v31, %v33
  %37 = xla_tuple %v36
  %s38 = scalar_lea.vmem %s2, 24
  %39 = vst [vmem:[%s38] sm:$0xff] %v36
  %s40 = scalar_lea.vmem %s0, 32
  %v41 = vld [vmem:[%s40] sm:$0xff]
  %s42 = scalar_lea.vmem %s1, 32
  %v43 = vld [vmem:[%s42] sm:$0xff]
  %44 = xla_tuple %v41, %v43
  %45 = xla_tuple %44
  %v46 = vsub.f32 %v41, %v43
  %47 = xla_tuple %v46
  %s48 = scalar_lea.vmem %s2, 32
  %49 = vst [vmem:[%s48] sm:$0xff] %v46
  %s50 = scalar_lea.vmem %s0, 40
  %v51 = vld [vmem:[%s50] sm:$0xff]
  %s52 = scalar_lea.vmem %s1, 40
  %v53 = vld [vmem:[%s52] sm:$0xff]
  %54 = xla_tuple %v51, %v53
  %55 = xla_tuple %54
  %v56 = vsub.f32 %v51, %v53
  %57 = xla_tuple %v56
  %s58 = scalar_lea.vmem %s2, 40
  %59 = vst [vmem:[%s58] sm:$0xff] %v56
  %s60 = scalar_lea.vmem %s0, 48
  %v61 = vld [vmem:[%s60] sm:$0xff]
  %s62 = scalar_lea.vmem %s1, 48
  %v63 = vld [vmem:[%s62] sm:$0xff]
  %64 = xla_tuple %v61, %v63
  %65 = xla_tuple %64
  %v66 = vsub.f32 %v61, %v63
  %67 = xla_tuple %v66
  %s68 = scalar_lea.vmem %s2, 48
  %69 = vst [vmem:[%s68] sm:$0xff] %v66
  %s70 = scalar_lea.vmem %s0, 56
  %v71 = vld [vmem:[%s70] sm:$0xff]
  %s72 = scalar_lea.vmem %s1, 56
  %v73 = vld [vmem:[%s72] sm:$0xff]
  %74 = xla_tuple %v71, %v73
  %75 = xla_tuple %74
  %v76 = vsub.f32 %v71, %v73
  %77 = xla_tuple %v76
  %s78 = scalar_lea.vmem %s2, 56
  %79 = vst [vmem:[%s78] sm:$0xff] %v76
  %s80 = scalar_lea.vmem %s0, 64
  %v81 = vld [vmem:[%s80] sm:$0xff]
  %s82 = scalar_lea.vmem %s1, 64
  %v83 = vld [vmem:[%s82] sm:$0xff]
  %84 = xla_tuple %v81, %v83
  %85 = xla_tuple %84
  %v86 = vsub.f32 %v81, %v83
  %87 = xla_tuple %v86
  %s88 = scalar_lea.vmem %s2, 64
  %89 = vst [vmem:[%s88] sm:$0xff] %v86
  %s90 = scalar_lea.vmem %s0, 72
  %v91 = vld [vmem:[%s90] sm:$0xff]
  %s92 = scalar_lea.vmem %s1, 72
  %v93 = vld [vmem:[%s92] sm:$0xff]
  %94 = xla_tuple %v91, %v93
  %95 = xla_tuple %94
  %v96 = vsub.f32 %v91, %v93
  %97 = xla_tuple %v96
  %s98 = scalar_lea.vmem %s2, 72
  %99 = vst [vmem:[%s98] sm:$0xff] %v96
  %s100 = scalar_lea.vmem %s0, 80
  %v101 = vld [vmem:[%s100] sm:$0xff]
  %s102 = scalar_lea.vmem %s1, 80
  %v103 = vld [vmem:[%s102] sm:$0xff]
  %104 = xla_tuple %v101, %v103
  %105 = xla_tuple %104
  %v106 = vsub.f32 %v101, %v103
  %107 = xla_tuple %v106
  %s108 = scalar_lea.vmem %s2, 80
  %109 = vst [vmem:[%s108] sm:$0xff] %v106
  %s110 = scalar_lea.vmem %s0, 88
  %v111 = vld [vmem:[%s110] sm:$0xff]
  %s112 = scalar_lea.vmem %s1, 88
  %v113 = vld [vmem:[%s112] sm:$0xff]
  %114 = xla_tuple %v111, %v113
  %115 = xla_tuple %114
  %v116 = vsub.f32 %v111, %v113
  %117 = xla_tuple %v116
  %s118 = scalar_lea.vmem %s2, 88
  %119 = vst [vmem:[%s118] sm:$0xff] %v116
  %s120 = scalar_lea.vmem %s0, 96
  %v121 = vld [vmem:[%s120] sm:$0xff]
  %s122 = scalar_lea.vmem %s1, 96
  %v123 = vld [vmem:[%s122] sm:$0xff]
  %124 = xla_tuple %v121, %v123
  %125 = xla_tuple %124
  %v126 = vsub.f32 %v121, %v123
  %127 = xla_tuple %v126
  %s128 = scalar_lea.vmem %s2, 96
  %129 = vst [vmem:[%s128] sm:$0xff] %v126
  %s130 = scalar_lea.vmem %s0, 104
  %v131 = vld [vmem:[%s130] sm:$0xff]
  %s132 = scalar_lea.vmem %s1, 104
  %v133 = vld [vmem:[%s132] sm:$0xff]
  %134 = xla_tuple %v131, %v133
  %135 = xla_tuple %134
  %v136 = vsub.f32 %v131, %v133
  %137 = xla_tuple %v136
  %s138 = scalar_lea.vmem %s2, 104
  %139 = vst [vmem:[%s138] sm:$0xff] %v136
  %s140 = scalar_lea.vmem %s0, 112
  %v141 = vld [vmem:[%s140] sm:$0xff]
  %s142 = scalar_lea.vmem %s1, 112
  %v143 = vld [vmem:[%s142] sm:$0xff]
  %144 = xla_tuple %v141, %v143
  %145 = xla_tuple %144
  %v146 = vsub.f32 %v141, %v143
  %147 = xla_tuple %v146
  %s148 = scalar_lea.vmem %s2, 112
  %149 = vst [vmem:[%s148] sm:$0xff] %v146
  %s150 = scalar_lea.vmem %s0, 120
  %v151 = vld [vmem:[%s150] sm:$0xff]
  %s152 = scalar_lea.vmem %s1, 120
  %v153 = vld [vmem:[%s152] sm:$0xff]
  %154 = xla_tuple %v151, %v153
  %155 = xla_tuple %154
  %v156 = vsub.f32 %v151, %v153
  %157 = xla_tuple %v156
  %s158 = scalar_lea.vmem %s2, 120
  %159 = vst [vmem:[%s158] sm:$0xff] %v156

// kernel: tile.58
$region0: #{tile.58}
  #allocation0 [shape = 's32[1]{0}', space=sflag, size = 0x4, scoped, tag = 'scoped memory for tile.58']
  %s0 = inlined_call_operand.vmem [shape: f32[3], index: 0, kind: input, shape index: {}]
  %s1 = inlined_call_operand.vmem [shape: f32[8,3], index: 1, kind: output, shape index: {}]
  // Predicated region
  $region2: #{tile.58} parent=0 // pred_check
    _
  $region3: #{tile.58} parent=0 // pred_check_branch
    %3 = sbr.rel (0) target = $region5
  $region4: #{tile.58} parent=0 // pred_region
    _
  $region5: #{tile.58} parent=0 // pred_fallthru
    _
  %v4 = vld [vmem:[%s0] ss:$0 sm:$0xff]
  %5 = vst [vmem:[%s1] sm:$0xff] %v4

// kernel: tile.59
$region0: #{tile.59}
  %s0 = inlined_call_operand.vmem [shape: f32[8,3], index: 0, kind: input, shape index: {}]
  %s1 = inlined_call_operand.vmem [shape: f32[1,24], index: 1, kind: output, shape index: {}]
  $region1: #{tile.59} parent=0
    #allocation0 [shape = 'u8[4096]{0}', space=vmem, size = 0x1000, scoped, tag = 'scoped mem for output reshape']
    %v2 = vld [vmem:[%s0] sm:$0x1]
    %vm3 = vcmask 23552
    %4 = vst.msk [vmem:[#allocation0] sm:$0x1] %vm3, %v2
    %s5 = scalar_lea.vmem %s0, 7
    %v6 = vld [vmem:[%s5] sm:$0x1]
    %7 = vrot.lane.b32.xlu0 %v6, 21
    %v8 = vpop.permute.xlu0 %7
    %vm9 = vcmask 195752
    %10 = vst.msk [vmem:[#allocation0] sm:$0x1] %vm9, %v8
    %s11 = scalar_lea.vmem %s0, 6
    %v12 = vld [vmem:[%s11] sm:$0x1]
    %13 = vrot.lane.b32.xlu0 %v12, 18
    %v14 = vpop.permute.xlu0 %13
    %vm15 = vcmask 171152
    %16 = vst.msk [vmem:[#allocation0] sm:$0x1] %vm15, %v14
    %s17 = scalar_lea.vmem %s0, 5
    %v18 = vld [vmem:[%s17] sm:$0x1]
    %19 = vrot.lane.b32.xlu0 %v18, 15
    %v20 = vpop.permute.xlu0 %19
    %vm21 = vcmask 146552
    %22 = vst.msk [vmem:[#allocation0] sm:$0x1] %vm21, %v20
    %s23 = scalar_lea.vmem %s0, 4
    %v24 = vld [vmem:[%s23] sm:$0x1]
    %25 = vrot.lane.b32.xlu0 %v24, 12
    %v26 = vpop.permute.xlu0 %25
    %vm27 = vcmask 121952
    %28 = vst.msk [vmem:[#allocation0] sm:$0x1] %vm27, %v26
    %s29 = scalar_lea.vmem %s0, 3
    %v30 = vld [vmem:[%s29] sm:$0x1]
    %31 = vrot.lane.b32.xlu0 %v30, 9
    %v32 = vpop.permute.xlu0 %31
    %vm33 = vcmask 97352
    %34 = vst.msk [vmem:[#allocation0] sm:$0x1] %vm33, %v32
    %s35 = scalar_lea.vmem %s0, 2
    %v36 = vld [vmem:[%s35] sm:$0x1]
    %37 = vrot.lane.b32.xlu0 %v36, 6
    %v38 = vpop.permute.xlu0 %37
    %vm39 = vcmask 72752
    %40 = vst.msk [vmem:[#allocation0] sm:$0x1] %vm39, %v38
    %s41 = scalar_lea.vmem %s0, 1
    %v42 = vld [vmem:[%s41] sm:$0x1]
    %43 = vrot.lane.b32.xlu0 %v42, 3
    %v44 = vpop.permute.xlu0 %43
    %vm45 = vcmask 48152
    %46 = vst.msk [vmem:[#allocation0] sm:$0x1] %vm45, %v44
    %s48 = sshllo.u32 0, 1
    %v50 = vld [vmem:[#allocation0] sm:%s48]
    %s51 = sshllo.u32 0, 1
    %52 = vst [vmem:[%s1] sm:%s51] %v50

// kernel: mul.59
$region0: #{mul.59}
  %s0 = inlined_call_operand.vmem [shape: f32[8,3], index: 0, kind: input, shape index: {}]
  %s1 = inlined_call_operand.vmem [shape: f32[24], index: 1, kind: output, shape index: {}]
  $region1: #{mul.59} parent=0
    #allocation0 [shape = 'u8[4096]{0}', space=vmem, size = 0x1000, scoped, tag = 'scoped mem for output reshape']
    %v2 = vld [vmem:[%s0] sm:$0x1]
    %vm3 = vcmask 23552
    %4 = vst.msk [vmem:[#allocation0] sm:$0x1] %vm3, %v2
    %s5 = scalar_lea.vmem %s0, 7
    %v6 = vld [vmem:[%s5] sm:$0x1]
    %7 = vrot.lane.b32.xlu0 %v6, 21
    %v8 = vpop.permute.xlu0 %7
    %vm9 = vcmask 195752
    %10 = vst.msk [vmem:[#allocation0] sm:$0x1] %vm9, %v8
    %s11 = scalar_lea.vmem %s0, 6
    %v12 = vld [vmem:[%s11] sm:$0x1]
    %13 = vrot.lane.b32.xlu0 %v12, 18
    %v14 = vpop.permute.xlu0 %13
    %vm15 = vcmask 171152
    %16 = vst.msk [vmem:[#allocation0] sm:$0x1] %vm15, %v14
    %s17 = scalar_lea.vmem %s0, 5
    %v18 = vld [vmem:[%s17] sm:$0x1]
    %19 = vrot.lane.b32.xlu0 %v18, 15
    %v20 = vpop.permute.xlu0 %19
    %vm21 = vcmask 146552
    %22 = vst.msk [vmem:[#allocation0] sm:$0x1] %vm21, %v20
    %s23 = scalar_lea.vmem %s0, 4
    %v24 = vld [vmem:[%s23] sm:$0x1]
    %25 = vrot.lane.b32.xlu0 %v24, 12
    %v26 = vpop.permute.xlu0 %25
    %vm27 = vcmask 121952
    %28 = vst.msk [vmem:[#allocation0] sm:$0x1] %vm27, %v26
    %s29 = scalar_lea.vmem %s0, 3
    %v30 = vld [vmem:[%s29] sm:$0x1]
    %31 = vrot.lane.b32.xlu0 %v30, 9
    %v32 = vpop.permute.xlu0 %31
    %vm33 = vcmask 97352
    %34 = vst.msk [vmem:[#allocation0] sm:$0x1] %vm33, %v32
    %s35 = scalar_lea.vmem %s0, 2
    %v36 = vld [vmem:[%s35] sm:$0x1]
    %37 = vrot.lane.b32.xlu0 %v36, 6
    %v38 = vpop.permute.xlu0 %37
    %vm39 = vcmask 72752
    %40 = vst.msk [vmem:[#allocation0] sm:$0x1] %vm39, %v38
    %s41 = scalar_lea.vmem %s0, 1
    %v42 = vld [vmem:[%s41] sm:$0x1]
    %43 = vrot.lane.b32.xlu0 %v42, 3
    %v44 = vpop.permute.xlu0 %43
    %vm45 = vcmask 48152
    %46 = vst.msk [vmem:[#allocation0] sm:$0x1] %vm45, %v44
    %s48 = sshllo.u32 0, 1
    %v50 = vld [vmem:[#allocation0] sm:%s48]
    %s51 = sshllo.u32 0, 1
    %52 = vst [vmem:[%s1] sm:%s51] %v50

// kernel: point_transformer_forward.4
$region0: #{point_transformer_forward.4}
  #allocation0 [shape = 'u32[]', space=smem, size = 0x4, offset = 0x4, fixed_abs, tag = 'smem constant byte address 0x4 - core index']
  #allocation1 [shape = 'u32[144,128]{1,0:T(1,128)}', space=vmem, size = 0x12000, scoped, tag = 'internal scratch']
  %s0 = inlined_call_operand.vmem [shape: f32[128,24], index: 0, kind: input, shape index: {}]
  %s1 = inlined_call_operand.vmem [shape: f32[24,24], index: 1, kind: input, shape index: {}]
  %s2 = inlined_call_operand.vmem [shape: f32[16,24], index: 2, kind: output, shape index: {0}]
  %s3 = inlined_call_operand.vmem [shape: f32[16,24], index: 3, kind: output, shape index: {1}]
  %4 = xla_tuple %s2, %s3
  %s5 = sld [smem:[#allocation0]]
  $region53: #{point_transformer_forward.4} parent=0
    _
  %s7 = ssub.s32 1, %s5
  %s8 = scalar_select 0, %s7, %s5
  loop: start=0, step=1, limit=6
  $region2: #{point_transformer_forward.4} parent=0 // loop_pre_header
    _
  $region3: #{point_transformer_forward.4} parent=0 // loop_header
    %s10 = sphi 0, %s14
    %p11 = scmp.ge.s32.totalorder %s10, 6
    %s17 = sphi 0, %s29
    %s18 = sphi 0, %s25
    %s19 = sphi 0, %s17
    %s20 = sphi 0, %s18
    %s21 = sphi 0, %s19
    %s22 = sphi 0, %s20
    %s36 = sphi 0, %s38
    %s39 = sphi 0, %s36
    %s40 = sphi 0, %s39
    %s56 = sphi 0, %s40
    %s60 = sphi 0, %s60
    %s62 = sphi 0, %s60
    %s63 = sphi 0, %s62
    %s77 = sphi 0, %s63
    %s83 = sphi 0, %s85
    %s86 = sphi 0, %s83
    %s87 = sphi 0, %s86
    %s103 = sphi 0, %s87
    %s109 = sphi 0, %s111
    %s112 = sphi 0, %s109
    %s113 = sphi 0, %s112
    %s129 = sphi 0, %s113
  $region4: #{point_transformer_forward.4} parent=0 // loop_header_branch
    %13 = sbr.rel (%p11) target = $region8
  $region5: #{point_transformer_forward.4} parent=0 // loop_body
    %s15 = ssub.s32 %s10, 1
    %s16 = ssub.s32 %s10, 2
    %s23 = sadd.s32 1, %s18
    %p24 = scmp.ge.s32.totalorder %s23, 2
    %s25 = scalar_select %p24, 0, %s23
    %s26 = sadd.s32 1, %s17
    %s27 = scalar_select %p24, %s26, %s17
    %p28 = scmp.ge.s32.totalorder %s27, 2
    %s29 = scalar_select %p28, 0, %s27
    %s30 = smul.u32 %s17, 2
    %s31 = sadd.s32 %s30, %s18
    %s32 = smul.u32 %s29, 2
    %s33 = sadd.s32 %s32, %s25
    %s34 = ssub.s32 %s31, %s33
    %p35 = scmp.eq.s32.totalorder %s34, 0
    %s37 = sadd.s32 %s36, 1
    %s38 = scalar_select %p35, %s36, %s37
    %p41 = pneg %p35
    %p42 = scmp.eq.s32.totalorder %s10, 3
    %p43 = por %p41, %p42
    %p44 = scmp.ne.s32.totalorder %s36, %s39
    %p45 = scmp.eq.s32.totalorder %s10, 0
    %p46 = por %p44, %p45
    %p47 = scmp.ne.s32.totalorder %s36, %s39
    %p48 = scmp.eq.s32.totalorder %s15, 3
    %p49 = por %p47, %p48
    %p50 = scmp.ne.s32.totalorder %s39, %s40
    %p51 = scmp.eq.s32.totalorder %s15, 0
    %p52 = por %p50, %p51
    %p53 = scmp.ne.s32.totalorder %s39, %s40
    %p54 = scmp.eq.s32.totalorder %s16, 3
    %p55 = por %p53, %p54
    %p57 = scmp.ne.s32.totalorder %s40, %s56
    %p58 = scmp.eq.s32.totalorder %s16, 0
    %p59 = por %p57, %p58
    %s61 = sadd.s32 %s60, 1
    %p64 = scmp.eq.s32.totalorder %s10, 3
    %p65 = scmp.ne.s32.totalorder %s60, %s62
    %p66 = scmp.eq.s32.totalorder %s10, 0
    %p67 = por %p65, %p66
    %p68 = scmp.ne.s32.totalorder %s60, %s62
    %p69 = scmp.eq.s32.totalorder %s15, 3
    %p70 = por %p68, %p69
    %p71 = scmp.ne.s32.totalorder %s62, %s63
    %p72 = scmp.eq.s32.totalorder %s15, 0
    %p73 = por %p71, %p72
    %p74 = scmp.ne.s32.totalorder %s62, %s63
    %p75 = scmp.eq.s32.totalorder %s16, 3
    %p76 = por %p74, %p75
    %p78 = scmp.ne.s32.totalorder %s63, %s77
    %p79 = scmp.eq.s32.totalorder %s16, 0
    %p80 = por %p78, %p79
    %s81 = ssub.s32 %s17, %s29
    %p82 = scmp.eq.s32.totalorder %s81, 0
    %s84 = sadd.s32 %s83, 1
    %s85 = scalar_select %p82, %s83, %s84
    %p88 = pneg %p82
    %p89 = scmp.eq.s32.totalorder %s10, 3
    %p90 = por %p88, %p89
    %p91 = scmp.ne.s32.totalorder %s83, %s86
    %p92 = scmp.eq.s32.totalorder %s10, 0
    %p93 = por %p91, %p92
    %p94 = scmp.ne.s32.totalorder %s83, %s86
    %p95 = scmp.eq.s32.totalorder %s15, 3
    %p96 = por %p94, %p95
    %p97 = scmp.ne.s32.totalorder %s86, %s87
    %p98 = scmp.eq.s32.totalorder %s15, 0
    %p99 = por %p97, %p98
    %p100 = scmp.ne.s32.totalorder %s86, %s87
    %p101 = scmp.eq.s32.totalorder %s16, 3
    %p102 = por %p100, %p101
    %p104 = scmp.ne.s32.totalorder %s87, %s103
    %p105 = scmp.eq.s32.totalorder %s16, 0
    %p106 = por %p104, %p105
    %s107 = ssub.s32 %s17, %s29
    %p108 = scmp.eq.s32.totalorder %s107, 0
    %s110 = sadd.s32 %s109, 1
    %s111 = scalar_select %p108, %s109, %s110
    %p114 = pneg %p108
    %p115 = scmp.eq.s32.totalorder %s10, 3
    %p116 = por %p114, %p115
    %p117 = scmp.ne.s32.totalorder %s109, %s112
    %p118 = scmp.eq.s32.totalorder %s10, 0
    %p119 = por %p117, %p118
    %p120 = scmp.ne.s32.totalorder %s109, %s112
    %p121 = scmp.eq.s32.totalorder %s15, 3
    %p122 = por %p120, %p121
    %p123 = scmp.ne.s32.totalorder %s112, %s113
    %p124 = scmp.eq.s32.totalorder %s15, 0
    %p125 = por %p123, %p124
    %p126 = scmp.ne.s32.totalorder %s112, %s113
    %p127 = scmp.eq.s32.totalorder %s16, 3
    %p128 = por %p126, %p127
    %p130 = scmp.ne.s32.totalorder %s113, %s129
    %p131 = scmp.eq.s32.totalorder %s16, 0
    %p132 = por %p130, %p131
    %p133 = scmp.le.s32.totalorder 1, %s10
    %p134 = scmp.lt.s32.totalorder %s10, 5
    %p135 = pnand %p133, %p134
    %p136 = pneg %p135
    // Predicated region
    $region9: #{point_transformer_forward.4} parent=5 // pred_check
      _
    $region10: #{point_transformer_forward.4} parent=5 // pred_check_branch
      %138 = sbr.rel (%p135) target = $region12
    $region11: #{point_transformer_forward.4} parent=5 // pred_region
      %s139 = ssub.s32 %s10, 1
      // Predicated region
      $region13: #{point_transformer_forward.4} parent=11 // pred_check
        %p140 = pneg %p73
      $region14: #{point_transformer_forward.4} parent=11 // pred_check_branch
        %142 = sbr.rel (%p140) target = $region16
      $region15: #{point_transformer_forward.4} parent=11 // pred_region
        _
      $region16: #{point_transformer_forward.4} parent=11 // pred_fallthru
        _
    $region12: #{point_transformer_forward.4} parent=5 // pred_fallthru
      _
    %p143 = scmp.lt.s32.totalorder %s10, 4
    // Predicated region
    $region17: #{point_transformer_forward.4} parent=5 // pred_check
      %p144 = pneg %p143
    $region18: #{point_transformer_forward.4} parent=5 // pred_check_branch
      %146 = sbr.rel (%p144) target = $region20
    $region19: #{point_transformer_forward.4} parent=5 // pred_region
      // Predicated region
      $region21: #{point_transformer_forward.4} parent=19 // pred_check
        %p147 = pneg %p46
      $region22: #{point_transformer_forward.4} parent=19 // pred_check_branch
        %149 = sbr.rel (%p147) target = $region24
      $region23: #{point_transformer_forward.4} parent=19 // pred_region
        %s150 = smul.u32 %s17, 2
        %s151 = sadd.s32 %s150, %s18
        %s152 = smul.u32 4, %s151
        %p153 = scmp.lt.s32.totalorder %s152, 15
        %s154 = scalar_select %p153, %s152, 15
        %s155 = smul.addr %s154, 8
        %s156 = scalar_lea.vmem %s0, %s155
        %s157 = smul.u32 %s17, 2
        %s158 = sadd.s32 %s157, %s18
        %s159 = smul.u32 4, %s158
      $region24: #{point_transformer_forward.4} parent=19 // pred_fallthru
        _
    $region20: #{point_transformer_forward.4} parent=5 // pred_fallthru
      _
    %p160 = scmp.le.s32.totalorder 1, %s10
    %p161 = scmp.lt.s32.totalorder %s10, 5
    %p162 = pnand %p160, %p161
    %p163 = pneg %p162
    // Predicated region
    $region25: #{point_transformer_forward.4} parent=5 // pred_check
      _
    $region26: #{point_transformer_forward.4} parent=5 // pred_check_branch
      %165 = sbr.rel (%p162) target = $region28
    $region27: #{point_transformer_forward.4} parent=5 // pred_region
      %s166 = ssub.s32 %s10, 1
      %s167 = smul.u32 %s19, 2
      %s168 = sadd.s32 %s167, %s20
      %s169 = smul.u32 4, %s168
      %p170 = scmp.lt.s32.totalorder %s169, 15
      %s171 = scalar_select %p170, %s169, 15
      %s172 = smul.addr %s171, 8
      %s173 = scalar_lea.vmem %s0, %s172
      %p174 = pneg %p52
      %p175 = pneg %p49
      %p176 = pneg %p73
      %p177 = pneg %p70
      %p178 = pneg %p99
      %p179 = pneg %p96
      %p180 = scmp.lt.s32.totalorder %s19, 1
      %s181 = scalar_select %p180, %s19, 1
      %s182 = smul.addr %s181, 8
      %s183 = scalar_lea.vmem %s2, %s182
      %p184 = pneg %p125
      %p185 = pneg %p122
      %p186 = scmp.lt.s32.totalorder %s19, 1
      %s187 = scalar_select %p186, %s19, 1
      %s188 = smul.addr %s187, 8
      %s189 = scalar_lea.vmem %s3, %s188
      %s190 = smul.u32 %s19, 2
      %s191 = sadd.s32 %s190, %s20
      %s192 = smul.u32 4, %s191
      %p193 = scmp.lt.s32.totalorder %s192, 15
      %s194 = scalar_select %p193, %s192, 15
      %s195 = smul.addr %s194, 8
      %s196 = scalar_lea.vmem %s0, %s195
      %s197 = smul.u32 %s19, 2
      %s198 = sadd.s32 %s197, %s20
      %s199 = smul.u32 4, %s198
      %p200 = scmp.lt.s32.totalorder %s19, 1
      %s201 = scalar_select %p200, %s19, 1
      %s202 = smul.addr %s201, 8
      %s203 = scalar_lea.vmem %s2, %s202
      %p204 = scmp.lt.s32.totalorder %s19, 1
      %s205 = scalar_select %p204, %s19, 1
      %s206 = smul.addr %s205, 8
      %s207 = scalar_lea.vmem %s3, %s206
      %v208 = vld [vmem:[%s196] sm:$0xff]
      %v209 = vld [vmem:[%s196 + $0x8] sm:$0xff]
      %v210 = vld [vmem:[%s196 + $0x10] sm:$0xff]
      %v211 = vld [vmem:[%s196 + $0x18] sm:$0xff]
      %v212 = vld [vmem:[%s1] sm:$0xff]
      %v213 = vld [vmem:[%s1 + $0x8] sm:$0xff]
      %v214 = vld [vmem:[%s1 + $0x10] sm:$0xff]
      %vm215 = vcmask 195584
      %v217 = vsel %vm215, %v208, 0
      %v220 = vsel %vm215, %v209, 0
      %v223 = vsel %vm215, %v210, 0
      %v226 = vsel %vm215, %v211, 0
      %228 = vmatprep.subr.mxu0 0.0
      %229 = vmatpush1.msra.mxu0 %v212
      %230 = vmatprep.subr.mxu0 0.0
      %231 = vmatpush1.msra.mxu0 %v213
      %232 = vmatprep.subr.mxu0 0.0
      %233 = vmatpush1.msra.mxu0 %v214
      %234 = vmatprep.subr.mxu0 0.0
      %235 = vmatpush1.msra.mxu0 0.0
      %236 = vmatprep.subr.mxu0 0.0
      %237 = vmatpush1.msra.mxu0 0.0
      %238 = vmatprep.subr.mxu0 0.0
      %239 = vmatpush1.msra.mxu0 0.0
      %240 = vmatprep.subr.mxu0 0.0
      %241 = vmatpush1.msra.mxu0 0.0
      %242 = vmatprep.subr.mxu0 0.0
      %243 = vmatpush1.msra.mxu0 0.0
      %244 = vmatprep.subr.mxu0 0.0
      %245 = vmatpush1.msra.mxu0 0.0
      %246 = vmatprep.subr.mxu0 0.0
      %247 = vmatpush1.msra.mxu0 0.0
      %248 = vmatprep.subr.mxu0 0.0
      %249 = vmatpush1.msra.mxu0 0.0
      %250 = vmatprep.subr.mxu0 0.0
      %251 = vmatpush1.msra.mxu0 0.0
      %252 = vmatprep.subr.mxu0 0.0
      %253 = vmatpush1.msra.mxu0 0.0
      %254 = vmatprep.subr.mxu0 0.0
      %255 = vmatpush1.msra.mxu0 0.0
      %256 = vmatprep.subr.mxu0 0.0
      %257 = vmatpush1.msra.mxu0 0.0
      %258 = vmatprep.subr.mxu0 0.0
      %259 = vmatpush1.msra.mxu0 0.0
      %260 = vmatprep.subr.mxu0 0.0
      %261 = vmatpush1.msra.mxu0 0.0
      %262 = vmatprep.subr.mxu0 0.0
      %263 = vmatpush1.msra.mxu0 0.0
      %264 = vmatprep.subr.mxu0 0.0
      %265 = vmatpush1.msra.mxu0 0.0
      %266 = vmatprep.subr.mxu0 0.0
      %267 = vmatpush1.msra.mxu0 0.0
      %268 = vmatprep.subr.mxu0 0.0
      %269 = vmatpush1.msra.mxu0 0.0
      %270 = vmatprep.subr.mxu0 0.0
      %271 = vmatpush1.msra.mxu0 0.0
      %272 = vmatprep.subr.mxu0 0.0
      %273 = vmatpush1.msra.mxu0 0.0
      %274 = vmatprep.subr.mxu0 0.0
      %275 = vmatpush1.msra.mxu0 0.0
      %276 = vmatprep.subr.mxu0 0.0
      %277 = vmatpush1.msra.mxu0 0.0
      %278 = vmatprep.subr.mxu0 0.0
      %279 = vmatpush1.msra.mxu0 0.0
      %280 = vmatprep.subr.mxu0 0.0
      %281 = vmatpush1.msra.mxu0 0.0
      %282 = vmatprep.subr.mxu0 0.0
      %283 = vmatpush1.msra.mxu0 0.0
      %284 = vmatprep.subr.mxu0 0.0
      %285 = vmatpush1.msra.mxu0 0.0
      %286 = vmatprep.subr.mxu0 0.0
      %287 = vmatpush1.msra.mxu0 0.0
      %288 = vmatprep.subr.mxu0 0.0
      %289 = vmatpush1.msra.mxu0 0.0
      %290 = vmatprep.subr.mxu0 0.0
      %291 = vmatpush1.msra.mxu0 0.0
      %292 = vmatprep.mubr.f32.mxu0 0.0
      %293 = vmatmul.mubr.f32.gmra.mrb[0].mxu0 %v217
      %v294 = vpop.f32.mrb[0].mxu0
      %v295 = vadd.f32 0.0, %v294
      %v296 = vpop.f32.mrb[0].mxu0
      %297 = vmatprep.mubr.f32.mxu0 0.0
      %298 = vmatmul.mubr.f32.gmra.mrb[0].mxu0 %v220
      %v299 = vpop.f32.mrb[0].mxu0
      %v300 = vadd.f32 0.0, %v299
      %v301 = vpop.f32.mrb[0].mxu0
      %302 = vmatprep.mubr.f32.mxu0 0.0
      %303 = vmatmul.mubr.f32.gmra.mrb[0].mxu0 %v223
      %v304 = vpop.f32.mrb[0].mxu0
      %v305 = vadd.f32 0.0, %v304
      %v306 = vpop.f32.mrb[0].mxu0
      %307 = vmatprep.mubr.f32.mxu0 0.0
      %308 = vmatmul.mubr.f32.gmra.mrb[0].mxu0 %v226
      %v309 = vpop.f32.mrb[0].mxu0
      %v310 = vadd.f32 0.0, %v309
      %v311 = vpop.f32.mrb[0].mxu0
      %312 = vdwg.mxu0
      %p313 = scmp.eq.s32.totalorder %s20, 0
      // Predicated region
      $region29: #{point_transformer_forward.4} parent=27 // pred_check
        %p314 = pneg %p313
      $region30: #{point_transformer_forward.4} parent=27 // pred_check_branch
        %316 = sbr.rel (%p314) target = $region32
      $region31: #{point_transformer_forward.4} parent=27 // pred_region
        %317 = vst.msk [vmem:[%s203] sm:$0xff] %vm215, 0.0
        %318 = vst.msk [vmem:[%s207] sm:$0xff] %vm215, 0.0
      $region32: #{point_transformer_forward.4} parent=27 // pred_fallthru
        _
      %v319 = vld [vmem:[%s203] sm:$0xff]
      %v320 = vsel %vm215, %v295, 0.0
      %v321 = vsel %vm215, %v300, 0.0
      %v322 = vadd.f32 %v320, %v321
      %v323 = vsel %vm215, %v305, 0.0
      %v324 = vadd.f32 %v322, %v323
      %v325 = vsel %vm215, %v310, 0.0
      %v326 = vadd.f32 %v324, %v325
      %v327 = vrot.slane %v326, 4
      %v328 = vadd.f32 %v326, %v327
      %v329 = vrot.slane %v328, 2
      %v330 = vadd.f32 %v328, %v329
      %v331 = vrot.slane %v330, 1
      %v332 = vadd.f32 %v330, %v331
      %v333 = vadd.f32 %v319, %v332
      %334 = vst.msk [vmem:[%s203] sm:$0xff] %vm215, %v333
      %v335 = vld [vmem:[%s207] sm:$0xff]
      %v336 = vmul.f32 %v295, %v295
      %v337 = vmul.f32 %v300, %v300
      %v338 = vmul.f32 %v305, %v305
      %v339 = vmul.f32 %v310, %v310
      %v340 = vsel %vm215, %v336, 0.0
      %v341 = vsel %vm215, %v337, 0.0
      %v342 = vadd.f32 %v340, %v341
      %v343 = vsel %vm215, %v338, 0.0
      %v344 = vadd.f32 %v342, %v343
      %v345 = vsel %vm215, %v339, 0.0
      %v346 = vadd.f32 %v344, %v345
      %v347 = vrot.slane %v346, 4
      %v348 = vadd.f32 %v346, %v347
      %v349 = vrot.slane %v348, 2
      %v350 = vadd.f32 %v348, %v349
      %v351 = vrot.slane %v350, 1
      %v352 = vadd.f32 %v350, %v351
      %v353 = vadd.f32 %v335, %v352
      %354 = vst.msk [vmem:[%s207] sm:$0xff] %vm215, %v353
      %p355 = scmp.lt.s32.totalorder %s19, 1
      %s356 = scalar_select %p355, %s19, 1
      %s357 = smul.addr %s356, 8
      %s358 = scalar_lea.vmem %s2, %s357
      %p359 = scmp.lt.s32.totalorder %s19, 1
      %s360 = scalar_select %p359, %s19, 1
      %s361 = smul.addr %s360, 8
      %s362 = scalar_lea.vmem %s3, %s361
      // Predicated region
      $region33: #{point_transformer_forward.4} parent=27 // pred_check
        %p363 = pneg %p96
      $region34: #{point_transformer_forward.4} parent=27 // pred_check_branch
        %365 = sbr.rel (%p363) target = $region36
      $region35: #{point_transformer_forward.4} parent=27 // pred_region
        _
      $region36: #{point_transformer_forward.4} parent=27 // pred_fallthru
        _
      // Predicated region
      $region37: #{point_transformer_forward.4} parent=27 // pred_check
        %p366 = pneg %p122
      $region38: #{point_transformer_forward.4} parent=27 // pred_check_branch
        %368 = sbr.rel (%p366) target = $region40
      $region39: #{point_transformer_forward.4} parent=27 // pred_region
        _
      $region40: #{point_transformer_forward.4} parent=27 // pred_fallthru
        _
    $region28: #{point_transformer_forward.4} parent=5 // pred_fallthru
      _
    %p369 = scmp.le.s32.totalorder 2, %s10
    // Predicated region
    $region41: #{point_transformer_forward.4} parent=5 // pred_check
      %p370 = pneg %p369
    $region42: #{point_transformer_forward.4} parent=5 // pred_check_branch
      %372 = sbr.rel (%p370) target = $region44
    $region43: #{point_transformer_forward.4} parent=5 // pred_region
      %s373 = ssub.s32 %s10, 2
      // Predicated region
      $region45: #{point_transformer_forward.4} parent=43 // pred_check
        %p374 = pneg %p102
      $region46: #{point_transformer_forward.4} parent=43 // pred_check_branch
        %376 = sbr.rel (%p374) target = $region48
      $region47: #{point_transformer_forward.4} parent=43 // pred_region
        %p377 = scmp.lt.s32.totalorder %s21, 1
        %s378 = scalar_select %p377, %s21, 1
        %s379 = smul.addr %s378, 8
        %s380 = scalar_lea.vmem %s2, %s379
      $region48: #{point_transformer_forward.4} parent=43 // pred_fallthru
        _
      // Predicated region
      $region49: #{point_transformer_forward.4} parent=43 // pred_check
        %p381 = pneg %p128
      $region50: #{point_transformer_forward.4} parent=43 // pred_check_branch
        %383 = sbr.rel (%p381) target = $region52
      $region51: #{point_transformer_forward.4} parent=43 // pred_region
        %p384 = scmp.lt.s32.totalorder %s21, 1
        %s385 = scalar_select %p384, %s21, 1
        %s386 = smul.addr %s385, 8
        %s387 = scalar_lea.vmem %s3, %s386
      $region52: #{point_transformer_forward.4} parent=43 // pred_fallthru
        _
    $region44: #{point_transformer_forward.4} parent=5 // pred_fallthru
      _
  $region6: #{point_transformer_forward.4} parent=0 // loop_footer
    %s14 = sadd.s32 1, %s10
  $region7: #{point_transformer_forward.4} parent=0 // loop_footer_branch
    %9 = sbr.rel target = $region3
  $region8: #{point_transformer_forward.4} parent=0 // loop_exit
    _

// kernel: point_transformer_forward.5
$region0: #{point_transformer_forward.5}
  #allocation0 [shape = 'u32[]', space=smem, size = 0x4, offset = 0x4, fixed_abs, tag = 'smem constant byte address 0x4 - core index']
  #allocation1 [shape = 'u32[144,128]{1,0:T(1,128)}', space=vmem, size = 0x12000, scoped, tag = 'internal scratch']
  %s0 = inlined_call_operand.vmem [shape: f32[128,16], index: 0, kind: input, shape index: {}]
  %s1 = inlined_call_operand.vmem [shape: f32[128,24], index: 1, kind: input, shape index: {}]
  %s2 = inlined_call_operand.vmem [shape: f32[128,256], index: 2, kind: input, shape index: {}]
  %s3 = inlined_call_operand.vmem [shape: f32[16,256], index: 3, kind: input, shape index: {}]
  %s4 = inlined_call_operand.vmem [shape: f32[24,24], index: 4, kind: input, shape index: {}]
  %s5 = inlined_call_operand.vmem [shape: f32[1,24], index: 5, kind: input, shape index: {}]
  %s6 = inlined_call_operand.vmem [shape: f32[24,256], index: 6, kind: input, shape index: {}]
  %s7 = inlined_call_operand.vmem [shape: f32[128,256], index: 7, kind: output, shape index: {0}]
  %s8 = inlined_call_operand.vmem [shape: f32[128,256], index: 8, kind: output, shape index: {1}]
  %s9 = inlined_call_operand.vmem [shape: f32[16,256], index: 9, kind: output, shape index: {2}]
  %s10 = inlined_call_operand.vmem [shape: f32[16,256], index: 10, kind: output, shape index: {3}]
  %11 = xla_tuple %s7, %s8, %s9, %s10
  %s12 = sld [smem:[#allocation0]]
  $region89: #{point_transformer_forward.5} parent=0
    _
  %s14 = ssub.s32 1, %s12
  %s15 = scalar_select 0, %s14, %s12
  loop: start=0, step=1, limit=6
  $region2: #{point_transformer_forward.5} parent=0 // loop_pre_header
    _
  $region3: #{point_transformer_forward.5} parent=0 // loop_header
    %s17 = sphi 0, %s21
    %p18 = scmp.ge.s32.totalorder %s17, 6
    %s24 = sphi 0, %s36
    %s25 = sphi 0, %s32
    %s26 = sphi 0, %s24
    %s27 = sphi 0, %s25
    %s28 = sphi 0, %s26
    %s29 = sphi 0, %s27
    %s43 = sphi 0, %s45
    %s46 = sphi 0, %s43
    %s47 = sphi 0, %s46
    %s63 = sphi 0, %s47
    %s73 = sphi 0, %s75
    %s76 = sphi 0, %s73
    %s77 = sphi 0, %s76
    %s93 = sphi 0, %s77
    %s103 = sphi 0, %s105
    %s106 = sphi 0, %s103
    %s107 = sphi 0, %s106
    %s123 = sphi 0, %s107
    %s127 = sphi 0, %s127
    %s129 = sphi 0, %s127
    %s130 = sphi 0, %s129
    %s144 = sphi 0, %s130
    %s148 = sphi 0, %s148
    %s150 = sphi 0, %s148
    %s151 = sphi 0, %s150
    %s165 = sphi 0, %s151
    %s169 = sphi 0, %s169
    %s171 = sphi 0, %s169
    %s172 = sphi 0, %s171
    %s186 = sphi 0, %s172
    %s190 = sphi 0, %s190
    %s192 = sphi 0, %s190
    %s193 = sphi 0, %s192
    %s207 = sphi 0, %s193
    %s217 = sphi 0, %s219
    %s220 = sphi 0, %s217
    %s221 = sphi 0, %s220
    %s237 = sphi 0, %s221
    %s247 = sphi 0, %s249
    %s250 = sphi 0, %s247
    %s251 = sphi 0, %s250
    %s267 = sphi 0, %s251
    %s273 = sphi 0, %s275
    %s276 = sphi 0, %s273
    %s277 = sphi 0, %s276
    %s293 = sphi 0, %s277
    %s299 = sphi 0, %s301
    %s302 = sphi 0, %s299
    %s303 = sphi 0, %s302
    %s319 = sphi 0, %s303
  $region4: #{point_transformer_forward.5} parent=0 // loop_header_branch
    %20 = sbr.rel (%p18) target = $region8
  $region5: #{point_transformer_forward.5} parent=0 // loop_body
    %s22 = ssub.s32 %s17, 1
    %s23 = ssub.s32 %s17, 2
    %s30 = sadd.s32 1, %s25
    %p31 = scmp.ge.s32.totalorder %s30, 2
    %s32 = scalar_select %p31, 0, %s30
    %s33 = sadd.s32 1, %s24
    %s34 = scalar_select %p31, %s33, %s24
    %p35 = scmp.ge.s32.totalorder %s34, 2
    %s36 = scalar_select %p35, 0, %s34
    %s37 = smul.u32 %s24, 2
    %s38 = sadd.s32 %s37, %s25
    %s39 = smul.u32 %s36, 2
    %s40 = sadd.s32 %s39, %s32
    %s41 = ssub.s32 %s38, %s40
    %p42 = scmp.eq.s32.totalorder %s41, 0
    %s44 = sadd.s32 %s43, 1
    %s45 = scalar_select %p42, %s43, %s44
    %p48 = pneg %p42
    %p49 = scmp.eq.s32.totalorder %s17, 3
    %p50 = por %p48, %p49
    %p51 = scmp.ne.s32.totalorder %s43, %s46
    %p52 = scmp.eq.s32.totalorder %s17, 0
    %p53 = por %p51, %p52
    %p54 = scmp.ne.s32.totalorder %s43, %s46
    %p55 = scmp.eq.s32.totalorder %s22, 3
    %p56 = por %p54, %p55
    %p57 = scmp.ne.s32.totalorder %s46, %s47
    %p58 = scmp.eq.s32.totalorder %s22, 0
    %p59 = por %p57, %p58
    %p60 = scmp.ne.s32.totalorder %s46, %s47
    %p61 = scmp.eq.s32.totalorder %s23, 3
    %p62 = por %p60, %p61
    %p64 = scmp.ne.s32.totalorder %s47, %s63
    %p65 = scmp.eq.s32.totalorder %s23, 0
    %p66 = por %p64, %p65
    %s67 = smul.u32 %s24, 2
    %s68 = sadd.s32 %s67, %s25
    %s69 = smul.u32 %s36, 2
    %s70 = sadd.s32 %s69, %s32
    %s71 = ssub.s32 %s68, %s70
    %p72 = scmp.eq.s32.totalorder %s71, 0
    %s74 = sadd.s32 %s73, 1
    %s75 = scalar_select %p72, %s73, %s74
    %p78 = pneg %p72
    %p79 = scmp.eq.s32.totalorder %s17, 3
    %p80 = por %p78, %p79
    %p81 = scmp.ne.s32.totalorder %s73, %s76
    %p82 = scmp.eq.s32.totalorder %s17, 0
    %p83 = por %p81, %p82
    %p84 = scmp.ne.s32.totalorder %s73, %s76
    %p85 = scmp.eq.s32.totalorder %s22, 3
    %p86 = por %p84, %p85
    %p87 = scmp.ne.s32.totalorder %s76, %s77
    %p88 = scmp.eq.s32.totalorder %s22, 0
    %p89 = por %p87, %p88
    %p90 = scmp.ne.s32.totalorder %s76, %s77
    %p91 = scmp.eq.s32.totalorder %s23, 3
    %p92 = por %p90, %p91
    %p94 = scmp.ne.s32.totalorder %s77, %s93
    %p95 = scmp.eq.s32.totalorder %s23, 0
    %p96 = por %p94, %p95
    %s97 = smul.u32 %s24, 2
    %s98 = sadd.s32 %s97, %s25
    %s99 = smul.u32 %s36, 2
    %s100 = sadd.s32 %s99, %s32
    %s101 = ssub.s32 %s98, %s100
    %p102 = scmp.eq.s32.totalorder %s101, 0
    %s104 = sadd.s32 %s103, 1
    %s105 = scalar_select %p102, %s103, %s104
    %p108 = pneg %p102
    %p109 = scmp.eq.s32.totalorder %s17, 3
    %p110 = por %p108, %p109
    %p111 = scmp.ne.s32.totalorder %s103, %s106
    %p112 = scmp.eq.s32.totalorder %s17, 0
    %p113 = por %p111, %p112
    %p114 = scmp.ne.s32.totalorder %s103, %s106
    %p115 = scmp.eq.s32.totalorder %s22, 3
    %p116 = por %p114, %p115
    %p117 = scmp.ne.s32.totalorder %s106, %s107
    %p118 = scmp.eq.s32.totalorder %s22, 0
    %p119 = por %p117, %p118
    %p120 = scmp.ne.s32.totalorder %s106, %s107
    %p121 = scmp.eq.s32.totalorder %s23, 3
    %p122 = por %p120, %p121
    %p124 = scmp.ne.s32.totalorder %s107, %s123
    %p125 = scmp.eq.s32.totalorder %s23, 0
    %p126 = por %p124, %p125
    %s128 = sadd.s32 %s127, 1
    %p131 = scmp.eq.s32.totalorder %s17, 3
    %p132 = scmp.ne.s32.totalorder %s127, %s129
    %p133 = scmp.eq.s32.totalorder %s17, 0
    %p134 = por %p132, %p133
    %p135 = scmp.ne.s32.totalorder %s127, %s129
    %p136 = scmp.eq.s32.totalorder %s22, 3
    %p137 = por %p135, %p136
    %p138 = scmp.ne.s32.totalorder %s129, %s130
    %p139 = scmp.eq.s32.totalorder %s22, 0
    %p140 = por %p138, %p139
    %p141 = scmp.ne.s32.totalorder %s129, %s130
    %p142 = scmp.eq.s32.totalorder %s23, 3
    %p143 = por %p141, %p142
    %p145 = scmp.ne.s32.totalorder %s130, %s144
    %p146 = scmp.eq.s32.totalorder %s23, 0
    %p147 = por %p145, %p146
    %s149 = sadd.s32 %s148, 1
    %p152 = scmp.eq.s32.totalorder %s17, 3
    %p153 = scmp.ne.s32.totalorder %s148, %s150
    %p154 = scmp.eq.s32.totalorder %s17, 0
    %p155 = por %p153, %p154
    %p156 = scmp.ne.s32.totalorder %s148, %s150
    %p157 = scmp.eq.s32.totalorder %s22, 3
    %p158 = por %p156, %p157
    %p159 = scmp.ne.s32.totalorder %s150, %s151
    %p160 = scmp.eq.s32.totalorder %s22, 0
    %p161 = por %p159, %p160
    %p162 = scmp.ne.s32.totalorder %s150, %s151
    %p163 = scmp.eq.s32.totalorder %s23, 3
    %p164 = por %p162, %p163
    %p166 = scmp.ne.s32.totalorder %s151, %s165
    %p167 = scmp.eq.s32.totalorder %s23, 0
    %p168 = por %p166, %p167
    %s170 = sadd.s32 %s169, 1
    %p173 = scmp.eq.s32.totalorder %s17, 3
    %p174 = scmp.ne.s32.totalorder %s169, %s171
    %p175 = scmp.eq.s32.totalorder %s17, 0
    %p176 = por %p174, %p175
    %p177 = scmp.ne.s32.totalorder %s169, %s171
    %p178 = scmp.eq.s32.totalorder %s22, 3
    %p179 = por %p177, %p178
    %p180 = scmp.ne.s32.totalorder %s171, %s172
    %p181 = scmp.eq.s32.totalorder %s22, 0
    %p182 = por %p180, %p181
    %p183 = scmp.ne.s32.totalorder %s171, %s172
    %p184 = scmp.eq.s32.totalorder %s23, 3
    %p185 = por %p183, %p184
    %p187 = scmp.ne.s32.totalorder %s172, %s186
    %p188 = scmp.eq.s32.totalorder %s23, 0
    %p189 = por %p187, %p188
    %s191 = sadd.s32 %s190, 1
    %p194 = scmp.eq.s32.totalorder %s17, 3
    %p195 = scmp.ne.s32.totalorder %s190, %s192
    %p196 = scmp.eq.s32.totalorder %s17, 0
    %p197 = por %p195, %p196
    %p198 = scmp.ne.s32.totalorder %s190, %s192
    %p199 = scmp.eq.s32.totalorder %s22, 3
    %p200 = por %p198, %p199
    %p201 = scmp.ne.s32.totalorder %s192, %s193
    %p202 = scmp.eq.s32.totalorder %s22, 0
    %p203 = por %p201, %p202
    %p204 = scmp.ne.s32.totalorder %s192, %s193
    %p205 = scmp.eq.s32.totalorder %s23, 3
    %p206 = por %p204, %p205
    %p208 = scmp.ne.s32.totalorder %s193, %s207
    %p209 = scmp.eq.s32.totalorder %s23, 0
    %p210 = por %p208, %p209
    %s211 = smul.u32 %s24, 2
    %s212 = sadd.s32 %s211, %s25
    %s213 = smul.u32 %s36, 2
    %s214 = sadd.s32 %s213, %s32
    %s215 = ssub.s32 %s212, %s214
    %p216 = scmp.eq.s32.totalorder %s215, 0
    %s218 = sadd.s32 %s217, 1
    %s219 = scalar_select %p216, %s217, %s218
    %p222 = pneg %p216
    %p223 = scmp.eq.s32.totalorder %s17, 3
    %p224 = por %p222, %p223
    %p225 = scmp.ne.s32.totalorder %s217, %s220
    %p226 = scmp.eq.s32.totalorder %s17, 0
    %p227 = por %p225, %p226
    %p228 = scmp.ne.s32.totalorder %s217, %s220
    %p229 = scmp.eq.s32.totalorder %s22, 3
    %p230 = por %p228, %p229
    %p231 = scmp.ne.s32.totalorder %s220, %s221
    %p232 = scmp.eq.s32.totalorder %s22, 0
    %p233 = por %p231, %p232
    %p234 = scmp.ne.s32.totalorder %s220, %s221
    %p235 = scmp.eq.s32.totalorder %s23, 3
    %p236 = por %p234, %p235
    %p238 = scmp.ne.s32.totalorder %s221, %s237
    %p239 = scmp.eq.s32.totalorder %s23, 0
    %p240 = por %p238, %p239
    %s241 = smul.u32 %s24, 2
    %s242 = sadd.s32 %s241, %s25
    %s243 = smul.u32 %s36, 2
    %s244 = sadd.s32 %s243, %s32
    %s245 = ssub.s32 %s242, %s244
    %p246 = scmp.eq.s32.totalorder %s245, 0
    %s248 = sadd.s32 %s247, 1
    %s249 = scalar_select %p246, %s247, %s248
    %p252 = pneg %p246
    %p253 = scmp.eq.s32.totalorder %s17, 3
    %p254 = por %p252, %p253
    %p255 = scmp.ne.s32.totalorder %s247, %s250
    %p256 = scmp.eq.s32.totalorder %s17, 0
    %p257 = por %p255, %p256
    %p258 = scmp.ne.s32.totalorder %s247, %s250
    %p259 = scmp.eq.s32.totalorder %s22, 3
    %p260 = por %p258, %p259
    %p261 = scmp.ne.s32.totalorder %s250, %s251
    %p262 = scmp.eq.s32.totalorder %s22, 0
    %p263 = por %p261, %p262
    %p264 = scmp.ne.s32.totalorder %s250, %s251
    %p265 = scmp.eq.s32.totalorder %s23, 3
    %p266 = por %p264, %p265
    %p268 = scmp.ne.s32.totalorder %s251, %s267
    %p269 = scmp.eq.s32.totalorder %s23, 0
    %p270 = por %p268, %p269
    %s271 = ssub.s32 %s24, %s36
    %p272 = scmp.eq.s32.totalorder %s271, 0
    %s274 = sadd.s32 %s273, 1
    %s275 = scalar_select %p272, %s273, %s274
    %p278 = pneg %p272
    %p279 = scmp.eq.s32.totalorder %s17, 3
    %p280 = por %p278, %p279
    %p281 = scmp.ne.s32.totalorder %s273, %s276
    %p282 = scmp.eq.s32.totalorder %s17, 0
    %p283 = por %p281, %p282
    %p284 = scmp.ne.s32.totalorder %s273, %s276
    %p285 = scmp.eq.s32.totalorder %s22, 3
    %p286 = por %p284, %p285
    %p287 = scmp.ne.s32.totalorder %s276, %s277
    %p288 = scmp.eq.s32.totalorder %s22, 0
    %p289 = por %p287, %p288
    %p290 = scmp.ne.s32.totalorder %s276, %s277
    %p291 = scmp.eq.s32.totalorder %s23, 3
    %p292 = por %p290, %p291
    %p294 = scmp.ne.s32.totalorder %s277, %s293
    %p295 = scmp.eq.s32.totalorder %s23, 0
    %p296 = por %p294, %p295
    %s297 = ssub.s32 %s24, %s36
    %p298 = scmp.eq.s32.totalorder %s297, 0
    %s300 = sadd.s32 %s299, 1
    %s301 = scalar_select %p298, %s299, %s300
    %p304 = pneg %p298
    %p305 = scmp.eq.s32.totalorder %s17, 3
    %p306 = por %p304, %p305
    %p307 = scmp.ne.s32.totalorder %s299, %s302
    %p308 = scmp.eq.s32.totalorder %s17, 0
    %p309 = por %p307, %p308
    %p310 = scmp.ne.s32.totalorder %s299, %s302
    %p311 = scmp.eq.s32.totalorder %s22, 3
    %p312 = por %p310, %p311
    %p313 = scmp.ne.s32.totalorder %s302, %s303
    %p314 = scmp.eq.s32.totalorder %s22, 0
    %p315 = por %p313, %p314
    %p316 = scmp.ne.s32.totalorder %s302, %s303
    %p317 = scmp.eq.s32.totalorder %s23, 3
    %p318 = por %p316, %p317
    %p320 = scmp.ne.s32.totalorder %s303, %s319
    %p321 = scmp.eq.s32.totalorder %s23, 0
    %p322 = por %p320, %p321
    %p323 = scmp.le.s32.totalorder 1, %s17
    %p324 = scmp.lt.s32.totalorder %s17, 5
    %p325 = pnand %p323, %p324
    %p326 = pneg %p325
    // Predicated region
    $region9: #{point_transformer_forward.5} parent=5 // pred_check
      _
    $region10: #{point_transformer_forward.5} parent=5 // pred_check_branch
      %328 = sbr.rel (%p325) target = $region12
    $region11: #{point_transformer_forward.5} parent=5 // pred_region
      %s329 = ssub.s32 %s17, 1
      // Predicated region
      $region13: #{point_transformer_forward.5} parent=11 // pred_check
        %p330 = pneg %p140
      $region14: #{point_transformer_forward.5} parent=11 // pred_check_branch
        %332 = sbr.rel (%p330) target = $region16
      $region15: #{point_transformer_forward.5} parent=11 // pred_region
        _
      $region16: #{point_transformer_forward.5} parent=11 // pred_fallthru
        _
      // Predicated region
      $region17: #{point_transformer_forward.5} parent=11 // pred_check
        %p333 = pneg %p161
      $region18: #{point_transformer_forward.5} parent=11 // pred_check_branch
        %335 = sbr.rel (%p333) target = $region20
      $region19: #{point_transformer_forward.5} parent=11 // pred_region
        _
      $region20: #{point_transformer_forward.5} parent=11 // pred_fallthru
        _
      // Predicated region
      $region21: #{point_transformer_forward.5} parent=11 // pred_check
        %p336 = pneg %p182
      $region22: #{point_transformer_forward.5} parent=11 // pred_check_branch
        %338 = sbr.rel (%p336) target = $region24
      $region23: #{point_transformer_forward.5} parent=11 // pred_region
        _
      $region24: #{point_transformer_forward.5} parent=11 // pred_fallthru
        _
      // Predicated region
      $region25: #{point_transformer_forward.5} parent=11 // pred_check
        %p339 = pneg %p203
      $region26: #{point_transformer_forward.5} parent=11 // pred_check_branch
        %341 = sbr.rel (%p339) target = $region28
      $region27: #{point_transformer_forward.5} parent=11 // pred_region
        _
      $region28: #{point_transformer_forward.5} parent=11 // pred_fallthru
        _
    $region12: #{point_transformer_forward.5} parent=5 // pred_fallthru
      _
    %p342 = scmp.lt.s32.totalorder %s17, 4
    // Predicated region
    $region29: #{point_transformer_forward.5} parent=5 // pred_check
      %p343 = pneg %p342
    $region30: #{point_transformer_forward.5} parent=5 // pred_check_branch
      %345 = sbr.rel (%p343) target = $region32
    $region31: #{point_transformer_forward.5} parent=5 // pred_region
      // Predicated region
      $region33: #{point_transformer_forward.5} parent=31 // pred_check
        %p346 = pneg %p53
      $region34: #{point_transformer_forward.5} parent=31 // pred_check_branch
        %348 = sbr.rel (%p346) target = $region36
      $region35: #{point_transformer_forward.5} parent=31 // pred_region
        %s349 = smul.u32 %s24, 2
        %s350 = sadd.s32 %s349, %s25
        %s351 = smul.u32 4, %s350
        %p352 = scmp.lt.s32.totalorder %s351, 15
        %s353 = scalar_select %p352, %s351, 15
        %s354 = smul.addr %s353, 8
        %s355 = scalar_lea.vmem %s0, %s354
        %s356 = smul.u32 %s24, 2
        %s357 = sadd.s32 %s356, %s25
        %s358 = smul.u32 4, %s357
      $region36: #{point_transformer_forward.5} parent=31 // pred_fallthru
        _
      // Predicated region
      $region37: #{point_transformer_forward.5} parent=31 // pred_check
        %p359 = pneg %p83
      $region38: #{point_transformer_forward.5} parent=31 // pred_check_branch
        %361 = sbr.rel (%p359) target = $region40
      $region39: #{point_transformer_forward.5} parent=31 // pred_region
        %s362 = smul.u32 %s24, 2
        %s363 = sadd.s32 %s362, %s25
        %s364 = smul.u32 4, %s363
        %p365 = scmp.lt.s32.totalorder %s364, 15
        %s366 = scalar_select %p365, %s364, 15
        %s367 = smul.addr %s366, 8
        %s368 = scalar_lea.vmem %s1, %s367
        %s369 = smul.u32 %s24, 2
        %s370 = sadd.s32 %s369, %s25
        %s371 = smul.u32 4, %s370
      $region40: #{point_transformer_forward.5} parent=31 // pred_fallthru
        _
      // Predicated region
      $region41: #{point_transformer_forward.5} parent=31 // pred_check
        %p372 = pneg %p113
      $region42: #{point_transformer_forward.5} parent=31 // pred_check_branch
        %374 = sbr.rel (%p372) target = $region44
      $region43: #{point_transformer_forward.5} parent=31 // pred_region
        %s375 = smul.u32 %s24, 2
        %s376 = sadd.s32 %s375, %s25
        %s377 = smul.u32 4, %s376
        %p378 = scmp.lt.s32.totalorder %s377, 15
        %s379 = scalar_select %p378, %s377, 15
        %s380 = smul.addr %s379, 2
        %s381 = smul.addr %s380, 8
        %s382 = scalar_lea.vmem %s2, %s381
        %s383 = smul.u32 %s24, 2
        %s384 = sadd.s32 %s383, %s25
        %s385 = smul.u32 4, %s384
      $region44: #{point_transformer_forward.5} parent=31 // pred_fallthru
        _
    $region32: #{point_transformer_forward.5} parent=5 // pred_fallthru
      _
    %p386 = scmp.le.s32.totalorder 1, %s17
    %p387 = scmp.lt.s32.totalorder %s17, 5
    %p388 = pnand %p386, %p387
    %p389 = pneg %p388
    // Predicated region
    $region45: #{point_transformer_forward.5} parent=5 // pred_check
      _
    $region46: #{point_transformer_forward.5} parent=5 // pred_check_branch
      %391 = sbr.rel (%p388) target = $region48
    $region47: #{point_transformer_forward.5} parent=5 // pred_region
      %s392 = ssub.s32 %s17, 1
      %s393 = smul.u32 %s26, 2
      %s394 = sadd.s32 %s393, %s27
      %s395 = smul.u32 4, %s394
      %p396 = scmp.lt.s32.totalorder %s395, 15
      %s397 = scalar_select %p396, %s395, 15
      %s398 = smul.addr %s397, 8
      %s399 = scalar_lea.vmem %s0, %s398
      %p400 = pneg %p59
      %p401 = pneg %p56
      %s402 = smul.u32 %s26, 2
      %s403 = sadd.s32 %s402, %s27
      %s404 = smul.u32 4, %s403
      %p405 = scmp.lt.s32.totalorder %s404, 15
      %s406 = scalar_select %p405, %s404, 15
      %s407 = smul.addr %s406, 8
      %s408 = scalar_lea.vmem %s1, %s407
      %p409 = pneg %p89
      %p410 = pneg %p86
      %s411 = smul.u32 %s26, 2
      %s412 = sadd.s32 %s411, %s27
      %s413 = smul.u32 4, %s412
      %p414 = scmp.lt.s32.totalorder %s413, 15
      %s415 = scalar_select %p414, %s413, 15
      %s416 = smul.addr %s415, 2
      %s417 = smul.addr %s416, 8
      %s418 = scalar_lea.vmem %s2, %s417
      %p419 = pneg %p119
      %p420 = pneg %p116
      %p421 = pneg %p140
      %p422 = pneg %p137
      %p423 = pneg %p161
      %p424 = pneg %p158
      %p425 = pneg %p182
      %p426 = pneg %p179
      %p427 = pneg %p203
      %p428 = pneg %p200
      %p429 = pneg %p233
      %p430 = pneg %p230
      %s431 = smul.u32 %s26, 2
      %s432 = sadd.s32 %s431, %s27
      %s433 = smul.u32 4, %s432
      %p434 = scmp.lt.s32.totalorder %s433, 15
      %s435 = scalar_select %p434, %s433, 15
      %s436 = smul.addr %s435, 2
      %s437 = smul.addr %s436, 8
      %s438 = scalar_lea.vmem %s7, %s437
      %p439 = pneg %p263
      %p440 = pneg %p260
      %s441 = smul.u32 %s26, 2
      %s442 = sadd.s32 %s441, %s27
      %s443 = smul.u32 4, %s442
      %p444 = scmp.lt.s32.totalorder %s443, 15
      %s445 = scalar_select %p444, %s443, 15
      %s446 = smul.addr %s445, 2
      %s447 = smul.addr %s446, 8
      %s448 = scalar_lea.vmem %s8, %s447
      %p449 = pneg %p289
      %p450 = pneg %p286
      %p451 = scmp.lt.s32.totalorder %s26, 1
      %s452 = scalar_select %p451, %s26, 1
      %s453 = smul.addr %s452, 2
      %s454 = smul.addr %s453, 8
      %s455 = scalar_lea.vmem %s9, %s454
      %p456 = pneg %p315
      %p457 = pneg %p312
      %p458 = scmp.lt.s32.totalorder %s26, 1
      %s459 = scalar_select %p458, %s26, 1
      %s460 = smul.addr %s459, 2
      %s461 = smul.addr %s460, 8
      %s462 = scalar_lea.vmem %s10, %s461
      %s463 = smul.u32 %s26, 2
      %s464 = sadd.s32 %s463, %s27
      %s465 = smul.u32 4, %s464
      %p466 = scmp.lt.s32.totalorder %s465, 15
      %s467 = scalar_select %p466, %s465, 15
      %s468 = smul.addr %s467, 8
      %s469 = scalar_lea.vmem %s0, %s468
      %s470 = smul.u32 %s26, 2
      %s471 = sadd.s32 %s470, %s27
      %s472 = smul.u32 4, %s471
      %s473 = smul.u32 %s26, 2
      %s474 = sadd.s32 %s473, %s27
      %s475 = smul.u32 4, %s474
      %p476 = scmp.lt.s32.totalorder %s475, 15
      %s477 = scalar_select %p476, %s475, 15
      %s478 = smul.addr %s477, 8
      %s479 = scalar_lea.vmem %s1, %s478
      %s480 = smul.u32 %s26, 2
      %s481 = sadd.s32 %s480, %s27
      %s482 = smul.u32 4, %s481
      %s483 = smul.u32 %s26, 2
      %s484 = sadd.s32 %s483, %s27
      %s485 = smul.u32 4, %s484
      %p486 = scmp.lt.s32.totalorder %s485, 15
      %s487 = scalar_select %p486, %s485, 15
      %s488 = smul.addr %s487, 2
      %s489 = smul.addr %s488, 8
      %s490 = scalar_lea.vmem %s2, %s489
      %s491 = smul.u32 %s26, 2
      %s492 = sadd.s32 %s491, %s27
      %s493 = smul.u32 4, %s492
      %s494 = smul.u32 %s26, 2
      %s495 = sadd.s32 %s494, %s27
      %s496 = smul.u32 4, %s495
      %p497 = scmp.lt.s32.totalorder %s496, 15
      %s498 = scalar_select %p497, %s496, 15
      %s499 = smul.addr %s498, 2
      %s500 = smul.addr %s499, 8
      %s501 = scalar_lea.vmem %s7, %s500
      %s502 = smul.u32 %s26, 2
      %s503 = sadd.s32 %s502, %s27
      %s504 = smul.u32 4, %s503
      %s505 = smul.u32 %s26, 2
      %s506 = sadd.s32 %s505, %s27
      %s507 = smul.u32 4, %s506
      %p508 = scmp.lt.s32.totalorder %s507, 15
      %s509 = scalar_select %p508, %s507, 15
      %s510 = smul.addr %s509, 2
      %s511 = smul.addr %s510, 8
      %s512 = scalar_lea.vmem %s8, %s511
      %s513 = smul.u32 %s26, 2
      %s514 = sadd.s32 %s513, %s27
      %s515 = smul.u32 4, %s514
      %p516 = scmp.lt.s32.totalorder %s26, 1
      %s517 = scalar_select %p516, %s26, 1
      %s518 = smul.addr %s517, 2
      %s519 = smul.addr %s518, 8
      %s520 = scalar_lea.vmem %s9, %s519
      %p521 = scmp.lt.s32.totalorder %s26, 1
      %s522 = scalar_select %p521, %s26, 1
      %s523 = smul.addr %s522, 2
      %s524 = smul.addr %s523, 8
      %s525 = scalar_lea.vmem %s10, %s524
      %v526 = vld [vmem:[%s479] sm:$0xff]
      %v527 = vld [vmem:[%s479 + $0x8] sm:$0xff]
      %v528 = vld [vmem:[%s479 + $0x10] sm:$0xff]
      %v529 = vld [vmem:[%s479 + $0x18] sm:$0xff]
      %v530 = vld [vmem:[%s4] sm:$0xff]
      %v531 = vld [vmem:[%s4 + $0x8] sm:$0xff]
      %v532 = vld [vmem:[%s4 + $0x10] sm:$0xff]
      %v533 = vld [vmem:[%s5] sm:$0x1]
      %v535 = vlaneseq
      %v536 = vshrl.u32 %v535, 7
      %v537 = vsub.s32 0, %v536
      %v538 = vrot.slane %v533, %v537
      %vm540 = vcmask 195584
      %v542 = vsel %vm540, %v526, 0
      %v545 = vsel %vm540, %v527, 0
      %v548 = vsel %vm540, %v528, 0
      %v551 = vsel %vm540, %v529, 0
      %553 = vmatprep.subr.mxu0 0.0
      %554 = vmatpush1.msra.mxu0 %v530
      %555 = vmatprep.subr.mxu0 0.0
      %556 = vmatpush1.msra.mxu0 %v531
      %557 = vmatprep.subr.mxu0 0.0
      %558 = vmatpush1.msra.mxu0 %v532
      %559 = vmatprep.subr.mxu0 0.0
      %560 = vmatpush1.msra.mxu0 0.0
      %561 = vmatprep.subr.mxu0 0.0
      %562 = vmatpush1.msra.mxu0 0.0
      %563 = vmatprep.subr.mxu0 0.0
      %564 = vmatpush1.msra.mxu0 0.0
      %565 = vmatprep.subr.mxu0 0.0
      %566 = vmatpush1.msra.mxu0 0.0
      %567 = vmatprep.subr.mxu0 0.0
      %568 = vmatpush1.msra.mxu0 0.0
      %569 = vmatprep.subr.mxu0 0.0
      %570 = vmatpush1.msra.mxu0 0.0
      %571 = vmatprep.subr.mxu0 0.0
      %572 = vmatpush1.msra.mxu0 0.0
      %573 = vmatprep.subr.mxu0 0.0
      %574 = vmatpush1.msra.mxu0 0.0
      %575 = vmatprep.subr.mxu0 0.0
      %576 = vmatpush1.msra.mxu0 0.0
      %577 = vmatprep.subr.mxu0 0.0
      %578 = vmatpush1.msra.mxu0 0.0
      %579 = vmatprep.subr.mxu0 0.0
      %580 = vmatpush1.msra.mxu0 0.0
      %581 = vmatprep.subr.mxu0 0.0
      %582 = vmatpush1.msra.mxu0 0.0
      %583 = vmatprep.subr.mxu0 0.0
      %584 = vmatpush1.msra.mxu0 0.0
      %585 = vmatprep.subr.mxu0 0.0
      %586 = vmatpush1.msra.mxu0 0.0
      %587 = vmatprep.subr.mxu0 0.0
      %588 = vmatpush1.msra.mxu0 0.0
      %589 = vmatprep.subr.mxu0 0.0
      %590 = vmatpush1.msra.mxu0 0.0
      %591 = vmatprep.subr.mxu0 0.0
      %592 = vmatpush1.msra.mxu0 0.0
      %593 = vmatprep.subr.mxu0 0.0
      %594 = vmatpush1.msra.mxu0 0.0
      %595 = vmatprep.subr.mxu0 0.0
      %596 = vmatpush1.msra.mxu0 0.0
      %597 = vmatprep.subr.mxu0 0.0
      %598 = vmatpush1.msra.mxu0 0.0
      %599 = vmatprep.subr.mxu0 0.0
      %600 = vmatpush1.msra.mxu0 0.0
      %601 = vmatprep.subr.mxu0 0.0
      %602 = vmatpush1.msra.mxu0 0.0
      %603 = vmatprep.subr.mxu0 0.0
      %604 = vmatpush1.msra.mxu0 0.0
      %605 = vmatprep.subr.mxu0 0.0
      %606 = vmatpush1.msra.mxu0 0.0
      %607 = vmatprep.subr.mxu0 0.0
      %608 = vmatpush1.msra.mxu0 0.0
      %609 = vmatprep.subr.mxu0 0.0
      %610 = vmatpush1.msra.mxu0 0.0
      %611 = vmatprep.subr.mxu0 0.0
      %612 = vmatpush1.msra.mxu0 0.0
      %613 = vmatprep.subr.mxu0 0.0
      %614 = vmatpush1.msra.mxu0 0.0
      %615 = vmatprep.subr.mxu0 0.0
      %616 = vmatpush1.msra.mxu0 0.0
      %617 = vmatprep.mubr.f32.mxu0 0.0
      %618 = vmatmul.mubr.f32.gmra.mrb[0].mxu0 %v542
      %v619 = vpop.f32.mrb[0].mxu0
      %v620 = vadd.f32 %v538, %v619
      %v621 = vpop.f32.mrb[0].mxu0
      %622 = vmatprep.mubr.f32.mxu0 0.0
      %623 = vmatmul.mubr.f32.gmra.mrb[0].mxu0 %v545
      %v624 = vpop.f32.mrb[0].mxu0
      %v625 = vadd.f32 %v538, %v624
      %v626 = vpop.f32.mrb[0].mxu0
      %627 = vmatprep.mubr.f32.mxu0 0.0
      %628 = vmatmul.mubr.f32.gmra.mrb[0].mxu0 %v548
      %v629 = vpop.f32.mrb[0].mxu0
      %v630 = vadd.f32 %v538, %v629
      %v631 = vpop.f32.mrb[0].mxu0
      %632 = vmatprep.mubr.f32.mxu0 0.0
      %633 = vmatmul.mubr.f32.gmra.mrb[0].mxu0 %v551
      %v634 = vpop.f32.mrb[0].mxu0
      %v635 = vadd.f32 %v538, %v634
      %v636 = vpop.f32.mrb[0].mxu0
      %637 = vdwg.mxu0
      %v638 = vmax.f32 %v620, 0.0
      %v639 = vmax.f32 %v625, 0.0
      %v640 = vmax.f32 %v630, 0.0
      %v641 = vmax.f32 %v635, 0.0
      %v642 = vld [vmem:[%s6] sm:$0xff]
      %v643 = vld [vmem:[%s6 + $0x8] sm:$0xff]
      %v644 = vld [vmem:[%s6 + $0x10] sm:$0xff]
      %v645 = vld [vmem:[%s6 + $0x18] sm:$0xff]
      %v646 = vld [vmem:[%s6 + $0x20] sm:$0xff]
      %v647 = vld [vmem:[%s6 + $0x28] sm:$0xff]
      %v649 = vsel %vm540, %v638, 0
      %v652 = vsel %vm540, %v639, 0
      %v655 = vsel %vm540, %v640, 0
      %v658 = vsel %vm540, %v641, 0
      %660 = vmatprep.subr.mxu0 %v643
      %661 = vmatpush1.msra.mxu0 %v642
      %662 = vmatprep.subr.mxu0 %v645
      %663 = vmatpush1.msra.mxu0 %v644
      %664 = vmatprep.subr.mxu0 %v647
      %665 = vmatpush1.msra.mxu0 %v646
      %666 = vmatprep.subr.mxu0 0.0
      %667 = vmatpush1.msra.mxu0 0.0
      %668 = vmatprep.subr.mxu0 0.0
      %669 = vmatpush1.msra.mxu0 0.0
      %670 = vmatprep.subr.mxu0 0.0
      %671 = vmatpush1.msra.mxu0 0.0
      %672 = vmatprep.subr.mxu0 0.0
      %673 = vmatpush1.msra.mxu0 0.0
      %674 = vmatprep.subr.mxu0 0.0
      %675 = vmatpush1.msra.mxu0 0.0
      %676 = vmatprep.subr.mxu0 0.0
      %677 = vmatpush1.msra.mxu0 0.0
      %678 = vmatprep.subr.mxu0 0.0
      %679 = vmatpush1.msra.mxu0 0.0
      %680 = vmatprep.subr.mxu0 0.0
      %681 = vmatpush1.msra.mxu0 0.0
      %682 = vmatprep.subr.mxu0 0.0
      %683 = vmatpush1.msra.mxu0 0.0
      %684 = vmatprep.subr.mxu0 0.0
      %685 = vmatpush1.msra.mxu0 0.0
      %686 = vmatprep.subr.mxu0 0.0
      %687 = vmatpush1.msra.mxu0 0.0
      %688 = vmatprep.subr.mxu0 0.0
      %689 = vmatpush1.msra.mxu0 0.0
      %690 = vmatprep.subr.mxu0 0.0
      %691 = vmatpush1.msra.mxu0 0.0
      %692 = vmatprep.subr.mxu0 0.0
      %693 = vmatpush1.msra.mxu0 0.0
      %694 = vmatprep.subr.mxu0 0.0
      %695 = vmatpush1.msra.mxu0 0.0
      %696 = vmatprep.subr.mxu0 0.0
      %697 = vmatpush1.msra.mxu0 0.0
      %698 = vmatprep.subr.mxu0 0.0
      %699 = vmatpush1.msra.mxu0 0.0
      %700 = vmatprep.subr.mxu0 0.0
      %701 = vmatpush1.msra.mxu0 0.0
      %702 = vmatprep.subr.mxu0 0.0
      %703 = vmatpush1.msra.mxu0 0.0
      %704 = vmatprep.subr.mxu0 0.0
      %705 = vmatpush1.msra.mxu0 0.0
      %706 = vmatprep.subr.mxu0 0.0
      %707 = vmatpush1.msra.mxu0 0.0
      %708 = vmatprep.subr.mxu0 0.0
      %709 = vmatpush1.msra.mxu0 0.0
      %710 = vmatprep.subr.mxu0 0.0
      %711 = vmatpush1.msra.mxu0 0.0
      %712 = vmatprep.subr.mxu0 0.0
      %713 = vmatpush1.msra.mxu0 0.0
      %714 = vmatprep.subr.mxu0 0.0
      %715 = vmatpush1.msra.mxu0 0.0
      %716 = vmatprep.subr.mxu0 0.0
      %717 = vmatpush1.msra.mxu0 0.0
      %718 = vmatprep.subr.mxu0 0.0
      %719 = vmatpush1.msra.mxu0 0.0
      %720 = vmatprep.subr.mxu0 0.0
      %721 = vmatpush1.msra.mxu0 0.0
      %722 = vmatprep.subr.mxu0 0.0
      %723 = vmatpush1.msra.mxu0 0.0
      %724 = vmatprep.mubr.f32.mxu0 0.0
      %725 = vmatmul.mubr.f32.gmra.mrb[0].mxu0 %v649
      %v726 = vpop.f32.mrb[0].mxu0
      %v727 = vadd.f32 0.0, %v726
      %v728 = vpop.f32.mrb[0].mxu0
      %v729 = vadd.f32 0.0, %v728
      %730 = vmatprep.mubr.f32.mxu0 0.0
      %731 = vmatmul.mubr.f32.gmra.mrb[0].mxu0 %v652
      %v732 = vpop.f32.mrb[0].mxu0
      %v733 = vadd.f32 0.0, %v732
      %v734 = vpop.f32.mrb[0].mxu0
      %v735 = vadd.f32 0.0, %v734
      %736 = vmatprep.mubr.f32.mxu0 0.0
      %737 = vmatmul.mubr.f32.gmra.mrb[0].mxu0 %v655
      %v738 = vpop.f32.mrb[0].mxu0
      %v739 = vadd.f32 0.0, %v738
      %v740 = vpop.f32.mrb[0].mxu0
      %v741 = vadd.f32 0.0, %v740
      %742 = vmatprep.mubr.f32.mxu0 0.0
      %743 = vmatmul.mubr.f32.gmra.mrb[0].mxu0 %v658
      %v744 = vpop.f32.mrb[0].mxu0
      %v745 = vadd.f32 0.0, %v744
      %v746 = vpop.f32.mrb[0].mxu0
      %v747 = vadd.f32 0.0, %v746
      %748 = vdwg.mxu0
      %v749 = vld [vmem:[%s469] sm:$0xff]
      %v750 = vld [vmem:[%s469 + $0x8] sm:$0xff]
      %v751 = vld [vmem:[%s469 + $0x10] sm:$0xff]
      %v752 = vld [vmem:[%s469 + $0x18] sm:$0xff]
      %v753 = vld [vmem:[%s3] sm:$0xff]
      %v754 = vld [vmem:[%s3 + $0x8] sm:$0xff]
      %v755 = vld [vmem:[%s3 + $0x10] sm:$0xff]
      %v756 = vld [vmem:[%s3 + $0x18] sm:$0xff]
      %vm757 = vcmask 130048
      %v759 = vsel %vm757, %v749, 0
      %v762 = vsel %vm757, %v750, 0
      %v765 = vsel %vm757, %v751, 0
      %v768 = vsel %vm757, %v752, 0
      %770 = vmatprep.subr.mxu0 %v754
      %771 = vmatpush1.msra.mxu0 %v753
      %772 = vmatprep.subr.mxu0 %v756
      %773 = vmatpush1.msra.mxu0 %v755
      %774 = vmatprep.subr.mxu0 0.0
      %775 = vmatpush1.msra.mxu0 0.0
      %776 = vmatprep.subr.mxu0 0.0
      %777 = vmatpush1.msra.mxu0 0.0
      %778 = vmatprep.subr.mxu0 0.0
      %779 = vmatpush1.msra.mxu0 0.0
      %780 = vmatprep.subr.mxu0 0.0
      %781 = vmatpush1.msra.mxu0 0.0
      %782 = vmatprep.subr.mxu0 0.0
      %783 = vmatpush1.msra.mxu0 0.0
      %784 = vmatprep.subr.mxu0 0.0
      %785 = vmatpush1.msra.mxu0 0.0
      %786 = vmatprep.subr.mxu0 0.0
      %787 = vmatpush1.msra.mxu0 0.0
      %788 = vmatprep.subr.mxu0 0.0
      %789 = vmatpush1.msra.mxu0 0.0
      %790 = vmatprep.subr.mxu0 0.0
      %791 = vmatpush1.msra.mxu0 0.0
      %792 = vmatprep.subr.mxu0 0.0
      %793 = vmatpush1.msra.mxu0 0.0
      %794 = vmatprep.subr.mxu0 0.0
      %795 = vmatpush1.msra.mxu0 0.0
      %796 = vmatprep.subr.mxu0 0.0
      %797 = vmatpush1.msra.mxu0 0.0
      %798 = vmatprep.subr.mxu0 0.0
      %799 = vmatpush1.msra.mxu0 0.0
      %800 = vmatprep.subr.mxu0 0.0
      %801 = vmatpush1.msra.mxu0 0.0
      %802 = vmatprep.subr.mxu0 0.0
      %803 = vmatpush1.msra.mxu0 0.0
      %804 = vmatprep.subr.mxu0 0.0
      %805 = vmatpush1.msra.mxu0 0.0
      %806 = vmatprep.subr.mxu0 0.0
      %807 = vmatpush1.msra.mxu0 0.0
      %808 = vmatprep.subr.mxu0 0.0
      %809 = vmatpush1.msra.mxu0 0.0
      %810 = vmatprep.subr.mxu0 0.0
      %811 = vmatpush1.msra.mxu0 0.0
      %812 = vmatprep.subr.mxu0 0.0
      %813 = vmatpush1.msra.mxu0 0.0
      %814 = vmatprep.subr.mxu0 0.0
      %815 = vmatpush1.msra.mxu0 0.0
      %816 = vmatprep.subr.mxu0 0.0
      %817 = vmatpush1.msra.mxu0 0.0
      %818 = vmatprep.subr.mxu0 0.0
      %819 = vmatpush1.msra.mxu0 0.0
      %820 = vmatprep.subr.mxu0 0.0
      %821 = vmatpush1.msra.mxu0 0.0
      %822 = vmatprep.subr.mxu0 0.0
      %823 = vmatpush1.msra.mxu0 0.0
      %824 = vmatprep.subr.mxu0 0.0
      %825 = vmatpush1.msra.mxu0 0.0
      %826 = vmatprep.subr.mxu0 0.0
      %827 = vmatpush1.msra.mxu0 0.0
      %828 = vmatprep.subr.mxu0 0.0
      %829 = vmatpush1.msra.mxu0 0.0
      %830 = vmatprep.subr.mxu0 0.0
      %831 = vmatpush1.msra.mxu0 0.0
      %832 = vmatprep.subr.mxu0 0.0
      %833 = vmatpush1.msra.mxu0 0.0
      %834 = vmatprep.mubr.f32.mxu0 0.0
      %835 = vmatmul.mubr.f32.gmra.mrb[0].mxu0 %v759
      %v836 = vpop.f32.mrb[0].mxu0
      %v837 = vadd.f32 0.0, %v836
      %v838 = vpop.f32.mrb[0].mxu0
      %v839 = vadd.f32 0.0, %v838
      %840 = vmatprep.mubr.f32.mxu0 0.0
      %841 = vmatmul.mubr.f32.gmra.mrb[0].mxu0 %v762
      %v842 = vpop.f32.mrb[0].mxu0
      %v843 = vadd.f32 0.0, %v842
      %v844 = vpop.f32.mrb[0].mxu0
      %v845 = vadd.f32 0.0, %v844
      %846 = vmatprep.mubr.f32.mxu0 0.0
      %847 = vmatmul.mubr.f32.gmra.mrb[0].mxu0 %v765
      %v848 = vpop.f32.mrb[0].mxu0
      %v849 = vadd.f32 0.0, %v848
      %v850 = vpop.f32.mrb[0].mxu0
      %v851 = vadd.f32 0.0, %v850
      %852 = vmatprep.mubr.f32.mxu0 0.0
      %853 = vmatmul.mubr.f32.gmra.mrb[0].mxu0 %v768
      %v854 = vpop.f32.mrb[0].mxu0
      %v855 = vadd.f32 0.0, %v854
      %v856 = vpop.f32.mrb[0].mxu0
      %v857 = vadd.f32 0.0, %v856
      %858 = vdwg.mxu0
      %v859 = vld [vmem:[%s490] sm:$0xff]
      %v860 = vld [vmem:[%s490 + $0x8] sm:$0xff]
      %v861 = vld [vmem:[%s490 + $0x10] sm:$0xff]
      %v862 = vld [vmem:[%s490 + $0x18] sm:$0xff]
      %v863 = vld [vmem:[%s490 + $0x20] sm:$0xff]
      %v864 = vld [vmem:[%s490 + $0x28] sm:$0xff]
      %v865 = vld [vmem:[%s490 + $0x30] sm:$0xff]
      %v866 = vld [vmem:[%s490 + $0x38] sm:$0xff]
      %v867 = vsub.f32 %v837, %v859
      %v868 = vsub.f32 %v839, %v860
      %v869 = vsub.f32 %v843, %v861
      %v870 = vsub.f32 %v845, %v862
      %v871 = vsub.f32 %v849, %v863
      %v872 = vsub.f32 %v851, %v864
      %v873 = vsub.f32 %v855, %v865
      %v874 = vsub.f32 %v857, %v866
      %v875 = vadd.f32 %v867, %v727
      %v876 = vadd.f32 %v868, %v729
      %v877 = vadd.f32 %v869, %v733
      %v878 = vadd.f32 %v870, %v735
      %v879 = vadd.f32 %v871, %v739
      %v880 = vadd.f32 %v872, %v741
      %v881 = vadd.f32 %v873, %v745
      %v882 = vadd.f32 %v874, %v747
      %883 = vst [vmem:[%s512] sm:$0xff] %v727
      %884 = vst [vmem:[%s512 + $0x8] sm:$0xff] %v729
      %885 = vst [vmem:[%s512 + $0x10] sm:$0xff] %v733
      %886 = vst [vmem:[%s512 + $0x18] sm:$0xff] %v735
      %887 = vst [vmem:[%s512 + $0x20] sm:$0xff] %v739
      %888 = vst [vmem:[%s512 + $0x28] sm:$0xff] %v741
      %889 = vst [vmem:[%s512 + $0x30] sm:$0xff] %v745
      %890 = vst [vmem:[%s512 + $0x38] sm:$0xff] %v747
      %891 = vst [vmem:[%s501] sm:$0xff] %v875
      %892 = vst [vmem:[%s501 + $0x8] sm:$0xff] %v876
      %893 = vst [vmem:[%s501 + $0x10] sm:$0xff] %v877
      %894 = vst [vmem:[%s501 + $0x18] sm:$0xff] %v878
      %895 = vst [vmem:[%s501 + $0x20] sm:$0xff] %v879
      %896 = vst [vmem:[%s501 + $0x28] sm:$0xff] %v880
      %897 = vst [vmem:[%s501 + $0x30] sm:$0xff] %v881
      %898 = vst [vmem:[%s501 + $0x38] sm:$0xff] %v882
      %p899 = scmp.eq.s32.totalorder %s27, 0
      // Predicated region
      $region49: #{point_transformer_forward.5} parent=47 // pred_check
        %p900 = pneg %p899
      $region50: #{point_transformer_forward.5} parent=47 // pred_check_branch
        %902 = sbr.rel (%p900) target = $region52
      $region51: #{point_transformer_forward.5} parent=47 // pred_region
        %903 = vst [vmem:[%s520] sm:$0xff] 0.0
        %904 = vst [vmem:[%s520 + $0x8] sm:$0xff] 0.0
        %905 = vst [vmem:[%s525] sm:$0xff] 0.0
        %906 = vst [vmem:[%s525 + $0x8] sm:$0xff] 0.0
      $region52: #{point_transformer_forward.5} parent=47 // pred_fallthru
        _
      %v907 = vld [vmem:[%s520] sm:$0xff]
      %v908 = vld [vmem:[%s520 + $0x8] sm:$0xff]
      %v909 = vadd.f32 %v875, %v877
      %v910 = vadd.f32 %v909, %v879
      %v911 = vadd.f32 %v910, %v881
      %v912 = vrot.slane %v911, 4
      %v913 = vadd.f32 %v911, %v912
      %v914 = vrot.slane %v913, 2
      %v915 = vadd.f32 %v913, %v914
      %v916 = vrot.slane %v915, 1
      %v917 = vadd.f32 %v915, %v916
      %v918 = vadd.f32 %v876, %v878
      %v919 = vadd.f32 %v918, %v880
      %v920 = vadd.f32 %v919, %v882
      %v921 = vrot.slane %v920, 4
      %v922 = vadd.f32 %v920, %v921
      %v923 = vrot.slane %v922, 2
      %v924 = vadd.f32 %v922, %v923
      %v925 = vrot.slane %v924, 1
      %v926 = vadd.f32 %v924, %v925
      %v927 = vadd.f32 %v907, %v917
      %v928 = vadd.f32 %v908, %v926
      %929 = vst [vmem:[%s520] sm:$0xff] %v927
      %930 = vst [vmem:[%s520 + $0x8] sm:$0xff] %v928
      %v931 = vld [vmem:[%s525] sm:$0xff]
      %v932 = vld [vmem:[%s525 + $0x8] sm:$0xff]
      %v933 = vmul.f32 %v875, %v875
      %v934 = vmul.f32 %v876, %v876
      %v935 = vmul.f32 %v877, %v877
      %v936 = vmul.f32 %v878, %v878
      %v937 = vmul.f32 %v879, %v879
      %v938 = vmul.f32 %v880, %v880
      %v939 = vmul.f32 %v881, %v881
      %v940 = vmul.f32 %v882, %v882
      %v941 = vadd.f32 %v933, %v935
      %v942 = vadd.f32 %v941, %v937
      %v943 = vadd.f32 %v942, %v939
      %v944 = vrot.slane %v943, 4
      %v945 = vadd.f32 %v943, %v944
      %v946 = vrot.slane %v945, 2
      %v947 = vadd.f32 %v945, %v946
      %v948 = vrot.slane %v947, 1
      %v949 = vadd.f32 %v947, %v948
      %v950 = vadd.f32 %v934, %v936
      %v951 = vadd.f32 %v950, %v938
      %v952 = vadd.f32 %v951, %v940
      %v953 = vrot.slane %v952, 4
      %v954 = vadd.f32 %v952, %v953
      %v955 = vrot.slane %v954, 2
      %v956 = vadd.f32 %v954, %v955
      %v957 = vrot.slane %v956, 1
      %v958 = vadd.f32 %v956, %v957
      %v959 = vadd.f32 %v931, %v949
      %v960 = vadd.f32 %v932, %v958
      %961 = vst [vmem:[%s525] sm:$0xff] %v959
      %962 = vst [vmem:[%s525 + $0x8] sm:$0xff] %v960
      %s963 = smul.u32 %s26, 2
      %s964 = sadd.s32 %s963, %s27
      %s965 = smul.u32 4, %s964
      %p966 = scmp.lt.s32.totalorder %s965, 15
      %s967 = scalar_select %p966, %s965, 15
      %s968 = smul.addr %s967, 2
      %s969 = smul.addr %s968, 8
      %s970 = scalar_lea.vmem %s7, %s969
      %s971 = smul.u32 %s26, 2
      %s972 = sadd.s32 %s971, %s27
      %s973 = smul.u32 4, %s972
      %p974 = scmp.lt.s32.totalorder %s973, 15
      %s975 = scalar_select %p974, %s973, 15
      %s976 = smul.addr %s975, 2
      %s977 = smul.addr %s976, 8
      %s978 = scalar_lea.vmem %s8, %s977
      %p979 = scmp.lt.s32.totalorder %s26, 1
      %s980 = scalar_select %p979, %s26, 1
      %s981 = smul.addr %s980, 2
      %s982 = smul.addr %s981, 8
      %s983 = scalar_lea.vmem %s9, %s982
      %p984 = scmp.lt.s32.totalorder %s26, 1
      %s985 = scalar_select %p984, %s26, 1
      %s986 = smul.addr %s985, 2
      %s987 = smul.addr %s986, 8
      %s988 = scalar_lea.vmem %s10, %s987
      // Predicated region
      $region53: #{point_transformer_forward.5} parent=47 // pred_check
        %p989 = pneg %p230
      $region54: #{point_transformer_forward.5} parent=47 // pred_check_branch
        %991 = sbr.rel (%p989) target = $region56
      $region55: #{point_transformer_forward.5} parent=47 // pred_region
        %s992 = smul.u32 %s26, 2
        %s993 = sadd.s32 %s992, %s27
        %s994 = smul.u32 4, %s993
      $region56: #{point_transformer_forward.5} parent=47 // pred_fallthru
        _
      // Predicated region
      $region57: #{point_transformer_forward.5} parent=47 // pred_check
        %p995 = pneg %p260
      $region58: #{point_transformer_forward.5} parent=47 // pred_check_branch
        %997 = sbr.rel (%p995) target = $region60
      $region59: #{point_transformer_forward.5} parent=47 // pred_region
        %s998 = smul.u32 %s26, 2
        %s999 = sadd.s32 %s998, %s27
        %s1000 = smul.u32 4, %s999
      $region60: #{point_transformer_forward.5} parent=47 // pred_fallthru
        _
      // Predicated region
      $region61: #{point_transformer_forward.5} parent=47 // pred_check
        %p1001 = pneg %p286
      $region62: #{point_transformer_forward.5} parent=47 // pred_check_branch
        %1003 = sbr.rel (%p1001) target = $region64
      $region63: #{point_transformer_forward.5} parent=47 // pred_region
        _
      $region64: #{point_transformer_forward.5} parent=47 // pred_fallthru
        _
      // Predicated region
      $region65: #{point_transformer_forward.5} parent=47 // pred_check
        %p1004 = pneg %p312
      $region66: #{point_transformer_forward.5} parent=47 // pred_check_branch
        %1006 = sbr.rel (%p1004) target = $region68
      $region67: #{point_transformer_forward.5} parent=47 // pred_region
        _
      $region68: #{point_transformer_forward.5} parent=47 // pred_fallthru
        _
    $region48: #{point_transformer_forward.5} parent=5 // pred_fallthru
      _
    %p1007 = scmp.le.s32.totalorder 2, %s17
    // Predicated region
    $region69: #{point_transformer_forward.5} parent=5 // pred_check
      %p1008 = pneg %p1007
    $region70: #{point_transformer_forward.5} parent=5 // pred_check_branch
      %1010 = sbr.rel (%p1008) target = $region72
    $region71: #{point_transformer_forward.5} parent=5 // pred_region
      %s1011 = ssub.s32 %s17, 2
      // Predicated region
      $region73: #{point_transformer_forward.5} parent=71 // pred_check
        %p1012 = pneg %p236
      $region74: #{point_transformer_forward.5} parent=71 // pred_check_branch
        %1014 = sbr.rel (%p1012) target = $region76
      $region75: #{point_transformer_forward.5} parent=71 // pred_region
        %s1015 = smul.u32 %s28, 2
        %s1016 = sadd.s32 %s1015, %s29
        %s1017 = smul.u32 4, %s1016
        %p1018 = scmp.lt.s32.totalorder %s1017, 15
        %s1019 = scalar_select %p1018, %s1017, 15
        %s1020 = smul.addr %s1019, 2
        %s1021 = smul.addr %s1020, 8
        %s1022 = scalar_lea.vmem %s7, %s1021
      $region76: #{point_transformer_forward.5} parent=71 // pred_fallthru
        _
      // Predicated region
      $region77: #{point_transformer_forward.5} parent=71 // pred_check
        %p1023 = pneg %p266
      $region78: #{point_transformer_forward.5} parent=71 // pred_check_branch
        %1025 = sbr.rel (%p1023) target = $region80
      $region79: #{point_transformer_forward.5} parent=71 // pred_region
        %s1026 = smul.u32 %s28, 2
        %s1027 = sadd.s32 %s1026, %s29
        %s1028 = smul.u32 4, %s1027
        %p1029 = scmp.lt.s32.totalorder %s1028, 15
        %s1030 = scalar_select %p1029, %s1028, 15
        %s1031 = smul.addr %s1030, 2
        %s1032 = smul.addr %s1031, 8
        %s1033 = scalar_lea.vmem %s8, %s1032
      $region80: #{point_transformer_forward.5} parent=71 // pred_fallthru
        _
      // Predicated region
      $region81: #{point_transformer_forward.5} parent=71 // pred_check
        %p1034 = pneg %p292
      $region82: #{point_transformer_forward.5} parent=71 // pred_check_branch
        %1036 = sbr.rel (%p1034) target = $region84
      $region83: #{point_transformer_forward.5} parent=71 // pred_region
        %p1037 = scmp.lt.s32.totalorder %s28, 1
        %s1038 = scalar_select %p1037, %s28, 1
        %s1039 = smul.addr %s1038, 2
        %s1040 = smul.addr %s1039, 8
        %s1041 = scalar_lea.vmem %s9, %s1040
      $region84: #{point_transformer_forward.5} parent=71 // pred_fallthru
        _
      // Predicated region
      $region85: #{point_transformer_forward.5} parent=71 // pred_check
        %p1042 = pneg %p318
      $region86: #{point_transformer_forward.5} parent=71 // pred_check_branch
        %1044 = sbr.rel (%p1042) target = $region88
      $region87: #{point_transformer_forward.5} parent=71 // pred_region
        %p1045 = scmp.lt.s32.totalorder %s28, 1
        %s1046 = scalar_select %p1045, %s28, 1
        %s1047 = smul.addr %s1046, 2
        %s1048 = smul.addr %s1047, 8
        %s1049 = scalar_lea.vmem %s10, %s1048
      $region88: #{point_transformer_forward.5} parent=71 // pred_fallthru
        _
    $region72: #{point_transformer_forward.5} parent=5 // pred_fallthru
      _
  $region6: #{point_transformer_forward.5} parent=0 // loop_footer
    %s21 = sadd.s32 1, %s17
  $region7: #{point_transformer_forward.5} parent=0 // loop_footer_branch
    %16 = sbr.rel target = $region3
  $region8: #{point_transformer_forward.5} parent=0 // loop_exit
    _

// kernel: point_transformer_forward.6
$region0: #{point_transformer_forward.6}
  #allocation0 [shape = 'u32[]', space=smem, size = 0x4, offset = 0x4, fixed_abs, tag = 'smem constant byte address 0x4 - core index']
  #allocation1 [shape = 'u32[144,128]{1,0:T(1,128)}', space=vmem, size = 0x12000, scoped, tag = 'internal scratch']
  %s0 = inlined_call_operand.vmem [shape: f32[128,256], index: 0, kind: input, shape index: {}]
  %s1 = inlined_call_operand.vmem [shape: f32[1,256], index: 1, kind: input, shape index: {}]
  %s2 = inlined_call_operand.vmem [shape: f32[1,256], index: 2, kind: input, shape index: {}]
  %s3 = inlined_call_operand.vmem [shape: f32[256,256], index: 3, kind: input, shape index: {}]
  %s4 = inlined_call_operand.vmem [shape: f32[128,256], index: 4, kind: output, shape index: {0}]
  %s5 = inlined_call_operand.vmem [shape: f32[16,256], index: 5, kind: output, shape index: {1}]
  %s6 = inlined_call_operand.vmem [shape: f32[16,256], index: 6, kind: output, shape index: {2}]
  %7 = xla_tuple %s4, %s5, %s6
  %s8 = sld [smem:[#allocation0]]
  $region69: #{point_transformer_forward.6} parent=0
    _
  %s10 = ssub.s32 1, %s8
  %s11 = scalar_select 0, %s10, %s8
  loop: start=0, step=1, limit=6
  $region2: #{point_transformer_forward.6} parent=0 // loop_pre_header
    _
  $region3: #{point_transformer_forward.6} parent=0 // loop_header
    %s13 = sphi 0, %s17
    %p14 = scmp.ge.s32.totalorder %s13, 6
    %s20 = sphi 0, %s32
    %s21 = sphi 0, %s28
    %s22 = sphi 0, %s20
    %s23 = sphi 0, %s21
    %s24 = sphi 0, %s22
    %s25 = sphi 0, %s23
    %s39 = sphi 0, %s41
    %s42 = sphi 0, %s39
    %s43 = sphi 0, %s42
    %s59 = sphi 0, %s43
    %s63 = sphi 0, %s63
    %s65 = sphi 0, %s63
    %s66 = sphi 0, %s65
    %s80 = sphi 0, %s66
    %s84 = sphi 0, %s84
    %s86 = sphi 0, %s84
    %s87 = sphi 0, %s86
    %s101 = sphi 0, %s87
    %s105 = sphi 0, %s105
    %s107 = sphi 0, %s105
    %s108 = sphi 0, %s107
    %s122 = sphi 0, %s108
    %s132 = sphi 0, %s134
    %s135 = sphi 0, %s132
    %s136 = sphi 0, %s135
    %s152 = sphi 0, %s136
    %s158 = sphi 0, %s160
    %s161 = sphi 0, %s158
    %s162 = sphi 0, %s161
    %s178 = sphi 0, %s162
    %s184 = sphi 0, %s186
    %s187 = sphi 0, %s184
    %s188 = sphi 0, %s187
    %s204 = sphi 0, %s188
  $region4: #{point_transformer_forward.6} parent=0 // loop_header_branch
    %16 = sbr.rel (%p14) target = $region8
  $region5: #{point_transformer_forward.6} parent=0 // loop_body
    %s18 = ssub.s32 %s13, 1
    %s19 = ssub.s32 %s13, 2
    %s26 = sadd.s32 1, %s21
    %p27 = scmp.ge.s32.totalorder %s26, 2
    %s28 = scalar_select %p27, 0, %s26
    %s29 = sadd.s32 1, %s20
    %s30 = scalar_select %p27, %s29, %s20
    %p31 = scmp.ge.s32.totalorder %s30, 2
    %s32 = scalar_select %p31, 0, %s30
    %s33 = smul.u32 %s20, 2
    %s34 = sadd.s32 %s33, %s21
    %s35 = smul.u32 %s32, 2
    %s36 = sadd.s32 %s35, %s28
    %s37 = ssub.s32 %s34, %s36
    %p38 = scmp.eq.s32.totalorder %s37, 0
    %s40 = sadd.s32 %s39, 1
    %s41 = scalar_select %p38, %s39, %s40
    %p44 = pneg %p38
    %p45 = scmp.eq.s32.totalorder %s13, 3
    %p46 = por %p44, %p45
    %p47 = scmp.ne.s32.totalorder %s39, %s42
    %p48 = scmp.eq.s32.totalorder %s13, 0
    %p49 = por %p47, %p48
    %p50 = scmp.ne.s32.totalorder %s39, %s42
    %p51 = scmp.eq.s32.totalorder %s18, 3
    %p52 = por %p50, %p51
    %p53 = scmp.ne.s32.totalorder %s42, %s43
    %p54 = scmp.eq.s32.totalorder %s18, 0
    %p55 = por %p53, %p54
    %p56 = scmp.ne.s32.totalorder %s42, %s43
    %p57 = scmp.eq.s32.totalorder %s19, 3
    %p58 = por %p56, %p57
    %p60 = scmp.ne.s32.totalorder %s43, %s59
    %p61 = scmp.eq.s32.totalorder %s19, 0
    %p62 = por %p60, %p61
    %s64 = sadd.s32 %s63, 1
    %p67 = scmp.eq.s32.totalorder %s13, 3
    %p68 = scmp.ne.s32.totalorder %s63, %s65
    %p69 = scmp.eq.s32.totalorder %s13, 0
    %p70 = por %p68, %p69
    %p71 = scmp.ne.s32.totalorder %s63, %s65
    %p72 = scmp.eq.s32.totalorder %s18, 3
    %p73 = por %p71, %p72
    %p74 = scmp.ne.s32.totalorder %s65, %s66
    %p75 = scmp.eq.s32.totalorder %s18, 0
    %p76 = por %p74, %p75
    %p77 = scmp.ne.s32.totalorder %s65, %s66
    %p78 = scmp.eq.s32.totalorder %s19, 3
    %p79 = por %p77, %p78
    %p81 = scmp.ne.s32.totalorder %s66, %s80
    %p82 = scmp.eq.s32.totalorder %s19, 0
    %p83 = por %p81, %p82
    %s85 = sadd.s32 %s84, 1
    %p88 = scmp.eq.s32.totalorder %s13, 3
    %p89 = scmp.ne.s32.totalorder %s84, %s86
    %p90 = scmp.eq.s32.totalorder %s13, 0
    %p91 = por %p89, %p90
    %p92 = scmp.ne.s32.totalorder %s84, %s86
    %p93 = scmp.eq.s32.totalorder %s18, 3
    %p94 = por %p92, %p93
    %p95 = scmp.ne.s32.totalorder %s86, %s87
    %p96 = scmp.eq.s32.totalorder %s18, 0
    %p97 = por %p95, %p96
    %p98 = scmp.ne.s32.totalorder %s86, %s87
    %p99 = scmp.eq.s32.totalorder %s19, 3
    %p100 = por %p98, %p99
    %p102 = scmp.ne.s32.totalorder %s87, %s101
    %p103 = scmp.eq.s32.totalorder %s19, 0
    %p104 = por %p102, %p103
    %s106 = sadd.s32 %s105, 1
    %p109 = scmp.eq.s32.totalorder %s13, 3
    %p110 = scmp.ne.s32.totalorder %s105, %s107
    %p111 = scmp.eq.s32.totalorder %s13, 0
    %p112 = por %p110, %p111
    %p113 = scmp.ne.s32.totalorder %s105, %s107
    %p114 = scmp.eq.s32.totalorder %s18, 3
    %p115 = por %p113, %p114
    %p116 = scmp.ne.s32.totalorder %s107, %s108
    %p117 = scmp.eq.s32.totalorder %s18, 0
    %p118 = por %p116, %p117
    %p119 = scmp.ne.s32.totalorder %s107, %s108
    %p120 = scmp.eq.s32.totalorder %s19, 3
    %p121 = por %p119, %p120
    %p123 = scmp.ne.s32.totalorder %s108, %s122
    %p124 = scmp.eq.s32.totalorder %s19, 0
    %p125 = por %p123, %p124
    %s126 = smul.u32 %s20, 2
    %s127 = sadd.s32 %s126, %s21
    %s128 = smul.u32 %s32, 2
    %s129 = sadd.s32 %s128, %s28
    %s130 = ssub.s32 %s127, %s129
    %p131 = scmp.eq.s32.totalorder %s130, 0
    %s133 = sadd.s32 %s132, 1
    %s134 = scalar_select %p131, %s132, %s133
    %p137 = pneg %p131
    %p138 = scmp.eq.s32.totalorder %s13, 3
    %p139 = por %p137, %p138
    %p140 = scmp.ne.s32.totalorder %s132, %s135
    %p141 = scmp.eq.s32.totalorder %s13, 0
    %p142 = por %p140, %p141
    %p143 = scmp.ne.s32.totalorder %s132, %s135
    %p144 = scmp.eq.s32.totalorder %s18, 3
    %p145 = por %p143, %p144
    %p146 = scmp.ne.s32.totalorder %s135, %s136
    %p147 = scmp.eq.s32.totalorder %s18, 0
    %p148 = por %p146, %p147
    %p149 = scmp.ne.s32.totalorder %s135, %s136
    %p150 = scmp.eq.s32.totalorder %s19, 3
    %p151 = por %p149, %p150
    %p153 = scmp.ne.s32.totalorder %s136, %s152
    %p154 = scmp.eq.s32.totalorder %s19, 0
    %p155 = por %p153, %p154
    %s156 = ssub.s32 %s20, %s32
    %p157 = scmp.eq.s32.totalorder %s156, 0
    %s159 = sadd.s32 %s158, 1
    %s160 = scalar_select %p157, %s158, %s159
    %p163 = pneg %p157
    %p164 = scmp.eq.s32.totalorder %s13, 3
    %p165 = por %p163, %p164
    %p166 = scmp.ne.s32.totalorder %s158, %s161
    %p167 = scmp.eq.s32.totalorder %s13, 0
    %p168 = por %p166, %p167
    %p169 = scmp.ne.s32.totalorder %s158, %s161
    %p170 = scmp.eq.s32.totalorder %s18, 3
    %p171 = por %p169, %p170
    %p172 = scmp.ne.s32.totalorder %s161, %s162
    %p173 = scmp.eq.s32.totalorder %s18, 0
    %p174 = por %p172, %p173
    %p175 = scmp.ne.s32.totalorder %s161, %s162
    %p176 = scmp.eq.s32.totalorder %s19, 3
    %p177 = por %p175, %p176
    %p179 = scmp.ne.s32.totalorder %s162, %s178
    %p180 = scmp.eq.s32.totalorder %s19, 0
    %p181 = por %p179, %p180
    %s182 = ssub.s32 %s20, %s32
    %p183 = scmp.eq.s32.totalorder %s182, 0
    %s185 = sadd.s32 %s184, 1
    %s186 = scalar_select %p183, %s184, %s185
    %p189 = pneg %p183
    %p190 = scmp.eq.s32.totalorder %s13, 3
    %p191 = por %p189, %p190
    %p192 = scmp.ne.s32.totalorder %s184, %s187
    %p193 = scmp.eq.s32.totalorder %s13, 0
    %p194 = por %p192, %p193
    %p195 = scmp.ne.s32.totalorder %s184, %s187
    %p196 = scmp.eq.s32.totalorder %s18, 3
    %p197 = por %p195, %p196
    %p198 = scmp.ne.s32.totalorder %s187, %s188
    %p199 = scmp.eq.s32.totalorder %s18, 0
    %p200 = por %p198, %p199
    %p201 = scmp.ne.s32.totalorder %s187, %s188
    %p202 = scmp.eq.s32.totalorder %s19, 3
    %p203 = por %p201, %p202
    %p205 = scmp.ne.s32.totalorder %s188, %s204
    %p206 = scmp.eq.s32.totalorder %s19, 0
    %p207 = por %p205, %p206
    %p208 = scmp.le.s32.totalorder 1, %s13
    %p209 = scmp.lt.s32.totalorder %s13, 5
    %p210 = pnand %p208, %p209
    %p211 = pneg %p210
    // Predicated region
    $region9: #{point_transformer_forward.6} parent=5 // pred_check
      _
    $region10: #{point_transformer_forward.6} parent=5 // pred_check_branch
      %213 = sbr.rel (%p210) target = $region12
    $region11: #{point_transformer_forward.6} parent=5 // pred_region
      %s214 = ssub.s32 %s13, 1
      // Predicated region
      $region13: #{point_transformer_forward.6} parent=11 // pred_check
        %p215 = pneg %p76
      $region14: #{point_transformer_forward.6} parent=11 // pred_check_branch
        %217 = sbr.rel (%p215) target = $region16
      $region15: #{point_transformer_forward.6} parent=11 // pred_region
        _
      $region16: #{point_transformer_forward.6} parent=11 // pred_fallthru
        _
      // Predicated region
      $region17: #{point_transformer_forward.6} parent=11 // pred_check
        %p218 = pneg %p97
      $region18: #{point_transformer_forward.6} parent=11 // pred_check_branch
        %220 = sbr.rel (%p218) target = $region20
      $region19: #{point_transformer_forward.6} parent=11 // pred_region
        _
      $region20: #{point_transformer_forward.6} parent=11 // pred_fallthru
        _
      // Predicated region
      $region21: #{point_transformer_forward.6} parent=11 // pred_check
        %p221 = pneg %p118
      $region22: #{point_transformer_forward.6} parent=11 // pred_check_branch
        %223 = sbr.rel (%p221) target = $region24
      $region23: #{point_transformer_forward.6} parent=11 // pred_region
        _
      $region24: #{point_transformer_forward.6} parent=11 // pred_fallthru
        _
    $region12: #{point_transformer_forward.6} parent=5 // pred_fallthru
      _
    %p224 = scmp.lt.s32.totalorder %s13, 4
    // Predicated region
    $region25: #{point_transformer_forward.6} parent=5 // pred_check
      %p225 = pneg %p224
    $region26: #{point_transformer_forward.6} parent=5 // pred_check_branch
      %227 = sbr.rel (%p225) target = $region28
    $region27: #{point_transformer_forward.6} parent=5 // pred_region
      // Predicated region
      $region29: #{point_transformer_forward.6} parent=27 // pred_check
        %p228 = pneg %p49
      $region30: #{point_transformer_forward.6} parent=27 // pred_check_branch
        %230 = sbr.rel (%p228) target = $region32
      $region31: #{point_transformer_forward.6} parent=27 // pred_region
        %s231 = smul.u32 %s20, 2
        %s232 = sadd.s32 %s231, %s21
        %s233 = smul.u32 4, %s232
        %p234 = scmp.lt.s32.totalorder %s233, 15
        %s235 = scalar_select %p234, %s233, 15
        %s236 = smul.addr %s235, 2
        %s237 = smul.addr %s236, 8
        %s238 = scalar_lea.vmem %s0, %s237
        %s239 = smul.u32 %s20, 2
        %s240 = sadd.s32 %s239, %s21
        %s241 = smul.u32 4, %s240
      $region32: #{point_transformer_forward.6} parent=27 // pred_fallthru
        _
    $region28: #{point_transformer_forward.6} parent=5 // pred_fallthru
      _
    %p242 = scmp.le.s32.totalorder 1, %s13
    %p243 = scmp.lt.s32.totalorder %s13, 5
    %p244 = pnand %p242, %p243
    %p245 = pneg %p244
    // Predicated region
    $region33: #{point_transformer_forward.6} parent=5 // pred_check
      _
    $region34: #{point_transformer_forward.6} parent=5 // pred_check_branch
      %247 = sbr.rel (%p244) target = $region36
    $region35: #{point_transformer_forward.6} parent=5 // pred_region
      %s248 = ssub.s32 %s13, 1
      %s249 = smul.u32 %s22, 2
      %s250 = sadd.s32 %s249, %s23
      %s251 = smul.u32 4, %s250
      %p252 = scmp.lt.s32.totalorder %s251, 15
      %s253 = scalar_select %p252, %s251, 15
      %s254 = smul.addr %s253, 2
      %s255 = smul.addr %s254, 8
      %s256 = scalar_lea.vmem %s0, %s255
      %p257 = pneg %p55
      %p258 = pneg %p52
      %p259 = pneg %p76
      %p260 = pneg %p73
      %p261 = pneg %p97
      %p262 = pneg %p94
      %p263 = pneg %p118
      %p264 = pneg %p115
      %p265 = pneg %p148
      %p266 = pneg %p145
      %s267 = smul.u32 %s22, 2
      %s268 = sadd.s32 %s267, %s23
      %s269 = smul.u32 4, %s268
      %p270 = scmp.lt.s32.totalorder %s269, 15
      %s271 = scalar_select %p270, %s269, 15
      %s272 = smul.addr %s271, 2
      %s273 = smul.addr %s272, 8
      %s274 = scalar_lea.vmem %s4, %s273
      %p275 = pneg %p174
      %p276 = pneg %p171
      %p277 = scmp.lt.s32.totalorder %s22, 1
      %s278 = scalar_select %p277, %s22, 1
      %s279 = smul.addr %s278, 2
      %s280 = smul.addr %s279, 8
      %s281 = scalar_lea.vmem %s5, %s280
      %p282 = pneg %p200
      %p283 = pneg %p197
      %p284 = scmp.lt.s32.totalorder %s22, 1
      %s285 = scalar_select %p284, %s22, 1
      %s286 = smul.addr %s285, 2
      %s287 = smul.addr %s286, 8
      %s288 = scalar_lea.vmem %s6, %s287
      %s289 = smul.u32 %s22, 2
      %s290 = sadd.s32 %s289, %s23
      %s291 = smul.u32 4, %s290
      %p292 = scmp.lt.s32.totalorder %s291, 15
      %s293 = scalar_select %p292, %s291, 15
      %s294 = smul.addr %s293, 2
      %s295 = smul.addr %s294, 8
      %s296 = scalar_lea.vmem %s0, %s295
      %s297 = smul.u32 %s22, 2
      %s298 = sadd.s32 %s297, %s23
      %s299 = smul.u32 4, %s298
      %s300 = smul.u32 %s22, 2
      %s301 = sadd.s32 %s300, %s23
      %s302 = smul.u32 4, %s301
      %p303 = scmp.lt.s32.totalorder %s302, 15
      %s304 = scalar_select %p303, %s302, 15
      %s305 = smul.addr %s304, 2
      %s306 = smul.addr %s305, 8
      %s307 = scalar_lea.vmem %s4, %s306
      %s308 = smul.u32 %s22, 2
      %s309 = sadd.s32 %s308, %s23
      %s310 = smul.u32 4, %s309
      %p311 = scmp.lt.s32.totalorder %s22, 1
      %s312 = scalar_select %p311, %s22, 1
      %s313 = smul.addr %s312, 2
      %s314 = smul.addr %s313, 8
      %s315 = scalar_lea.vmem %s5, %s314
      %p316 = scmp.lt.s32.totalorder %s22, 1
      %s317 = scalar_select %p316, %s22, 1
      %s318 = smul.addr %s317, 2
      %s319 = smul.addr %s318, 8
      %s320 = scalar_lea.vmem %s6, %s319
      %v321 = vld [vmem:[%s296] sm:$0xff]
      %v322 = vld [vmem:[%s296 + $0x8] sm:$0xff]
      %v323 = vld [vmem:[%s296 + $0x10] sm:$0xff]
      %v324 = vld [vmem:[%s296 + $0x18] sm:$0xff]
      %v325 = vld [vmem:[%s296 + $0x20] sm:$0xff]
      %v326 = vld [vmem:[%s296 + $0x28] sm:$0xff]
      %v327 = vld [vmem:[%s296 + $0x30] sm:$0xff]
      %v328 = vld [vmem:[%s296 + $0x38] sm:$0xff]
      %v329 = vld [vmem:[%s1] sm:$0x3]
      %v331 = vlaneseq
      %v332 = vshrl.u32 %v331, 7
      %v333 = vsub.s32 0, %v332
      %v334 = vrot.slane %v329, %v333
      %v335 = vlaneseq
      %v336 = vshrl.u32 %v335, 7
      %v337 = vsub.s32 1, %v336
      %v338 = vrot.slane %v329, %v337
      %v341 = vmul.f32 %v321, %v334
      %v342 = vmul.f32 %v322, %v338
      %v343 = vmul.f32 %v323, %v334
      %v344 = vmul.f32 %v324, %v338
      %v345 = vmul.f32 %v325, %v334
      %v346 = vmul.f32 %v326, %v338
      %v347 = vmul.f32 %v327, %v334
      %v348 = vmul.f32 %v328, %v338
      %v349 = vld [vmem:[%s2] sm:$0x3]
      %v351 = vlaneseq
      %v352 = vshrl.u32 %v351, 7
      %v353 = vsub.s32 0, %v352
      %v354 = vrot.slane %v349, %v353
      %v355 = vlaneseq
      %v356 = vshrl.u32 %v355, 7
      %v357 = vsub.s32 1, %v356
      %v358 = vrot.slane %v349, %v357
      %v361 = vadd.f32 %v341, %v354
      %v362 = vadd.f32 %v342, %v358
      %v363 = vadd.f32 %v343, %v354
      %v364 = vadd.f32 %v344, %v358
      %v365 = vadd.f32 %v345, %v354
      %v366 = vadd.f32 %v346, %v358
      %v367 = vadd.f32 %v347, %v354
      %v368 = vadd.f32 %v348, %v358
      %v369 = vmax.f32 %v361, 0.0
      %v370 = vmax.f32 %v362, 0.0
      %v371 = vmax.f32 %v363, 0.0
      %v372 = vmax.f32 %v364, 0.0
      %v373 = vmax.f32 %v365, 0.0
      %v374 = vmax.f32 %v366, 0.0
      %v375 = vmax.f32 %v367, 0.0
      %v376 = vmax.f32 %v368, 0.0
      %v377 = vld [vmem:[%s3] sm:$0xff]
      %v378 = vld [vmem:[%s3 + $0x8] sm:$0xff]
      %v379 = vld [vmem:[%s3 + $0x10] sm:$0xff]
      %v380 = vld [vmem:[%s3 + $0x18] sm:$0xff]
      %v381 = vld [vmem:[%s3 + $0x20] sm:$0xff]
      %v382 = vld [vmem:[%s3 + $0x28] sm:$0xff]
      %v383 = vld [vmem:[%s3 + $0x30] sm:$0xff]
      %v384 = vld [vmem:[%s3 + $0x38] sm:$0xff]
      %v385 = vld [vmem:[%s3 + $0x40] sm:$0xff]
      %v386 = vld [vmem:[%s3 + $0x48] sm:$0xff]
      %v387 = vld [vmem:[%s3 + $0x50] sm:$0xff]
      %v388 = vld [vmem:[%s3 + $0x58] sm:$0xff]
      %v389 = vld [vmem:[%s3 + $0x60] sm:$0xff]
      %v390 = vld [vmem:[%s3 + $0x68] sm:$0xff]
      %v391 = vld [vmem:[%s3 + $0x70] sm:$0xff]
      %v392 = vld [vmem:[%s3 + $0x78] sm:$0xff]
      %v393 = vld [vmem:[%s3 + $0x80] sm:$0xff]
      %v394 = vld [vmem:[%s3 + $0x88] sm:$0xff]
      %v395 = vld [vmem:[%s3 + $0x90] sm:$0xff]
      %v396 = vld [vmem:[%s3 + $0x98] sm:$0xff]
      %v397 = vld [vmem:[%s3 + $0xa0] sm:$0xff]
      %v398 = vld [vmem:[%s3 + $0xa8] sm:$0xff]
      %v399 = vld [vmem:[%s3 + $0xb0] sm:$0xff]
      %v400 = vld [vmem:[%s3 + $0xb8] sm:$0xff]
      %v401 = vld [vmem:[%s3 + $0xc0] sm:$0xff]
      %v402 = vld [vmem:[%s3 + $0xc8] sm:$0xff]
      %v403 = vld [vmem:[%s3 + $0xd0] sm:$0xff]
      %v404 = vld [vmem:[%s3 + $0xd8] sm:$0xff]
      %v405 = vld [vmem:[%s3 + $0xe0] sm:$0xff]
      %v406 = vld [vmem:[%s3 + $0xe8] sm:$0xff]
      %v407 = vld [vmem:[%s3 + $0xf0] sm:$0xff]
      %v408 = vld [vmem:[%s3 + $0xf8] sm:$0xff]
      %v409 = vld [vmem:[%s3 + $0x100] sm:$0xff]
      %v410 = vld [vmem:[%s3 + $0x108] sm:$0xff]
      %v411 = vld [vmem:[%s3 + $0x110] sm:$0xff]
      %v412 = vld [vmem:[%s3 + $0x118] sm:$0xff]
      %v413 = vld [vmem:[%s3 + $0x120] sm:$0xff]
      %v414 = vld [vmem:[%s3 + $0x128] sm:$0xff]
      %v415 = vld [vmem:[%s3 + $0x130] sm:$0xff]
      %v416 = vld [vmem:[%s3 + $0x138] sm:$0xff]
      %v417 = vld [vmem:[%s3 + $0x140] sm:$0xff]
      %v418 = vld [vmem:[%s3 + $0x148] sm:$0xff]
      %v419 = vld [vmem:[%s3 + $0x150] sm:$0xff]
      %v420 = vld [vmem:[%s3 + $0x158] sm:$0xff]
      %v421 = vld [vmem:[%s3 + $0x160] sm:$0xff]
      %v422 = vld [vmem:[%s3 + $0x168] sm:$0xff]
      %v423 = vld [vmem:[%s3 + $0x170] sm:$0xff]
      %v424 = vld [vmem:[%s3 + $0x178] sm:$0xff]
      %v425 = vld [vmem:[%s3 + $0x180] sm:$0xff]
      %v426 = vld [vmem:[%s3 + $0x188] sm:$0xff]
      %v427 = vld [vmem:[%s3 + $0x190] sm:$0xff]
      %v428 = vld [vmem:[%s3 + $0x198] sm:$0xff]
      %v429 = vld [vmem:[%s3 + $0x1a0] sm:$0xff]
      %v430 = vld [vmem:[%s3 + $0x1a8] sm:$0xff]
      %v431 = vld [vmem:[%s3 + $0x1b0] sm:$0xff]
      %v432 = vld [vmem:[%s3 + $0x1b8] sm:$0xff]
      %v433 = vld [vmem:[%s3 + $0x1c0] sm:$0xff]
      %v434 = vld [vmem:[%s3 + $0x1c8] sm:$0xff]
      %v435 = vld [vmem:[%s3 + $0x1d0] sm:$0xff]
      %v436 = vld [vmem:[%s3 + $0x1d8] sm:$0xff]
      %v437 = vld [vmem:[%s3 + $0x1e0] sm:$0xff]
      %v438 = vld [vmem:[%s3 + $0x1e8] sm:$0xff]
      %v439 = vld [vmem:[%s3 + $0x1f0] sm:$0xff]
      %v440 = vld [vmem:[%s3 + $0x1f8] sm:$0xff]
      %441 = vmatprep.subr.mxu0 %v378
      %442 = vmatpush1.msra.mxu0 %v377
      %443 = vmatprep.subr.mxu0 %v380
      %444 = vmatpush1.msra.mxu0 %v379
      %445 = vmatprep.subr.mxu0 %v382
      %446 = vmatpush1.msra.mxu0 %v381
      %447 = vmatprep.subr.mxu0 %v384
      %448 = vmatpush1.msra.mxu0 %v383
      %449 = vmatprep.subr.mxu0 %v386
      %450 = vmatpush1.msra.mxu0 %v385
      %451 = vmatprep.subr.mxu0 %v388
      %452 = vmatpush1.msra.mxu0 %v387
      %453 = vmatprep.subr.mxu0 %v390
      %454 = vmatpush1.msra.mxu0 %v389
      %455 = vmatprep.subr.mxu0 %v392
      %456 = vmatpush1.msra.mxu0 %v391
      %457 = vmatprep.subr.mxu0 %v394
      %458 = vmatpush1.msra.mxu0 %v393
      %459 = vmatprep.subr.mxu0 %v396
      %460 = vmatpush1.msra.mxu0 %v395
      %461 = vmatprep.subr.mxu0 %v398
      %462 = vmatpush1.msra.mxu0 %v397
      %463 = vmatprep.subr.mxu0 %v400
      %464 = vmatpush1.msra.mxu0 %v399
      %465 = vmatprep.subr.mxu0 %v402
      %466 = vmatpush1.msra.mxu0 %v401
      %467 = vmatprep.subr.mxu0 %v404
      %468 = vmatpush1.msra.mxu0 %v403
      %469 = vmatprep.subr.mxu0 %v406
      %470 = vmatpush1.msra.mxu0 %v405
      %471 = vmatprep.subr.mxu0 %v408
      %472 = vmatpush1.msra.mxu0 %v407
      %473 = vmatprep.subr.mxu0 %v410
      %474 = vmatpush1.msra.mxu0 %v409
      %475 = vmatprep.subr.mxu0 %v412
      %476 = vmatpush1.msra.mxu0 %v411
      %477 = vmatprep.subr.mxu0 %v414
      %478 = vmatpush1.msra.mxu0 %v413
      %479 = vmatprep.subr.mxu0 %v416
      %480 = vmatpush1.msra.mxu0 %v415
      %481 = vmatprep.subr.mxu0 %v418
      %482 = vmatpush1.msra.mxu0 %v417
      %483 = vmatprep.subr.mxu0 %v420
      %484 = vmatpush1.msra.mxu0 %v419
      %485 = vmatprep.subr.mxu0 %v422
      %486 = vmatpush1.msra.mxu0 %v421
      %487 = vmatprep.subr.mxu0 %v424
      %488 = vmatpush1.msra.mxu0 %v423
      %489 = vmatprep.subr.mxu0 %v426
      %490 = vmatpush1.msra.mxu0 %v425
      %491 = vmatprep.subr.mxu0 %v428
      %492 = vmatpush1.msra.mxu0 %v427
      %493 = vmatprep.subr.mxu0 %v430
      %494 = vmatpush1.msra.mxu0 %v429
      %495 = vmatprep.subr.mxu0 %v432
      %496 = vmatpush1.msra.mxu0 %v431
      %497 = vmatprep.subr.mxu0 %v434
      %498 = vmatpush1.msra.mxu0 %v433
      %499 = vmatprep.subr.mxu0 %v436
      %500 = vmatpush1.msra.mxu0 %v435
      %501 = vmatprep.subr.mxu0 %v438
      %502 = vmatpush1.msra.mxu0 %v437
      %503 = vmatprep.subr.mxu0 %v440
      %504 = vmatpush1.msra.mxu0 %v439
      %505 = vmatprep.mubr.f32.mxu0 %v370
      %506 = vmatmul.mubr.f32.gmra.mrb[0].mxu0 %v369
      %v507 = vpop.f32.mrb[0].mxu0
      %v508 = vadd.f32 0.0, %v507
      %v509 = vpop.f32.mrb[0].mxu0
      %v510 = vadd.f32 0.0, %v509
      %511 = vmatprep.mubr.f32.mxu0 %v372
      %512 = vmatmul.mubr.f32.gmra.mrb[0].mxu0 %v371
      %v513 = vpop.f32.mrb[0].mxu0
      %v514 = vadd.f32 0.0, %v513
      %v515 = vpop.f32.mrb[0].mxu0
      %v516 = vadd.f32 0.0, %v515
      %517 = vmatprep.mubr.f32.mxu0 %v374
      %518 = vmatmul.mubr.f32.gmra.mrb[0].mxu0 %v373
      %v519 = vpop.f32.mrb[0].mxu0
      %v520 = vadd.f32 0.0, %v519
      %v521 = vpop.f32.mrb[0].mxu0
      %v522 = vadd.f32 0.0, %v521
      %523 = vmatprep.mubr.f32.mxu0 %v376
      %524 = vmatmul.mubr.f32.gmra.mrb[0].mxu0 %v375
      %v525 = vpop.f32.mrb[0].mxu0
      %v526 = vadd.f32 0.0, %v525
      %v527 = vpop.f32.mrb[0].mxu0
      %v528 = vadd.f32 0.0, %v527
      %529 = vdwg.mxu0
      %530 = vst [vmem:[%s307] sm:$0xff] %v508
      %531 = vst [vmem:[%s307 + $0x8] sm:$0xff] %v510
      %532 = vst [vmem:[%s307 + $0x10] sm:$0xff] %v514
      %533 = vst [vmem:[%s307 + $0x18] sm:$0xff] %v516
      %534 = vst [vmem:[%s307 + $0x20] sm:$0xff] %v520
      %535 = vst [vmem:[%s307 + $0x28] sm:$0xff] %v522
      %536 = vst [vmem:[%s307 + $0x30] sm:$0xff] %v526
      %537 = vst [vmem:[%s307 + $0x38] sm:$0xff] %v528
      %p538 = scmp.eq.s32.totalorder %s23, 0
      // Predicated region
      $region37: #{point_transformer_forward.6} parent=35 // pred_check
        %p539 = pneg %p538
      $region38: #{point_transformer_forward.6} parent=35 // pred_check_branch
        %541 = sbr.rel (%p539) target = $region40
      $region39: #{point_transformer_forward.6} parent=35 // pred_region
        %542 = vst [vmem:[%s315] sm:$0xff] 0.0
        %543 = vst [vmem:[%s315 + $0x8] sm:$0xff] 0.0
        %544 = vst [vmem:[%s320] sm:$0xff] 0.0
        %545 = vst [vmem:[%s320 + $0x8] sm:$0xff] 0.0
      $region40: #{point_transformer_forward.6} parent=35 // pred_fallthru
        _
      %v546 = vld [vmem:[%s315] sm:$0xff]
      %v547 = vld [vmem:[%s315 + $0x8] sm:$0xff]
      %v548 = vadd.f32 %v508, %v514
      %v549 = vadd.f32 %v548, %v520
      %v550 = vadd.f32 %v549, %v526
      %v551 = vrot.slane %v550, 4
      %v552 = vadd.f32 %v550, %v551
      %v553 = vrot.slane %v552, 2
      %v554 = vadd.f32 %v552, %v553
      %v555 = vrot.slane %v554, 1
      %v556 = vadd.f32 %v554, %v555
      %v557 = vadd.f32 %v510, %v516
      %v558 = vadd.f32 %v557, %v522
      %v559 = vadd.f32 %v558, %v528
      %v560 = vrot.slane %v559, 4
      %v561 = vadd.f32 %v559, %v560
      %v562 = vrot.slane %v561, 2
      %v563 = vadd.f32 %v561, %v562
      %v564 = vrot.slane %v563, 1
      %v565 = vadd.f32 %v563, %v564
      %v566 = vadd.f32 %v546, %v556
      %v567 = vadd.f32 %v547, %v565
      %568 = vst [vmem:[%s315] sm:$0xff] %v566
      %569 = vst [vmem:[%s315 + $0x8] sm:$0xff] %v567
      %v570 = vld [vmem:[%s320] sm:$0xff]
      %v571 = vld [vmem:[%s320 + $0x8] sm:$0xff]
      %v572 = vmul.f32 %v508, %v508
      %v573 = vmul.f32 %v510, %v510
      %v574 = vmul.f32 %v514, %v514
      %v575 = vmul.f32 %v516, %v516
      %v576 = vmul.f32 %v520, %v520
      %v577 = vmul.f32 %v522, %v522
      %v578 = vmul.f32 %v526, %v526
      %v579 = vmul.f32 %v528, %v528
      %v580 = vadd.f32 %v572, %v574
      %v581 = vadd.f32 %v580, %v576
      %v582 = vadd.f32 %v581, %v578
      %v583 = vrot.slane %v582, 4
      %v584 = vadd.f32 %v582, %v583
      %v585 = vrot.slane %v584, 2
      %v586 = vadd.f32 %v584, %v585
      %v587 = vrot.slane %v586, 1
      %v588 = vadd.f32 %v586, %v587
      %v589 = vadd.f32 %v573, %v575
      %v590 = vadd.f32 %v589, %v577
      %v591 = vadd.f32 %v590, %v579
      %v592 = vrot.slane %v591, 4
      %v593 = vadd.f32 %v591, %v592
      %v594 = vrot.slane %v593, 2
      %v595 = vadd.f32 %v593, %v594
      %v596 = vrot.slane %v595, 1
      %v597 = vadd.f32 %v595, %v596
      %v598 = vadd.f32 %v570, %v588
      %v599 = vadd.f32 %v571, %v597
      %600 = vst [vmem:[%s320] sm:$0xff] %v598
      %601 = vst [vmem:[%s320 + $0x8] sm:$0xff] %v599
      %s602 = smul.u32 %s22, 2
      %s603 = sadd.s32 %s602, %s23
      %s604 = smul.u32 4, %s603
      %p605 = scmp.lt.s32.totalorder %s604, 15
      %s606 = scalar_select %p605, %s604, 15
      %s607 = smul.addr %s606, 2
      %s608 = smul.addr %s607, 8
      %s609 = scalar_lea.vmem %s4, %s608
      %p610 = scmp.lt.s32.totalorder %s22, 1
      %s611 = scalar_select %p610, %s22, 1
      %s612 = smul.addr %s611, 2
      %s613 = smul.addr %s612, 8
      %s614 = scalar_lea.vmem %s5, %s613
      %p615 = scmp.lt.s32.totalorder %s22, 1
      %s616 = scalar_select %p615, %s22, 1
      %s617 = smul.addr %s616, 2
      %s618 = smul.addr %s617, 8
      %s619 = scalar_lea.vmem %s6, %s618
      // Predicated region
      $region41: #{point_transformer_forward.6} parent=35 // pred_check
        %p620 = pneg %p145
      $region42: #{point_transformer_forward.6} parent=35 // pred_check_branch
        %622 = sbr.rel (%p620) target = $region44
      $region43: #{point_transformer_forward.6} parent=35 // pred_region
        %s623 = smul.u32 %s22, 2
        %s624 = sadd.s32 %s623, %s23
        %s625 = smul.u32 4, %s624
      $region44: #{point_transformer_forward.6} parent=35 // pred_fallthru
        _
      // Predicated region
      $region45: #{point_transformer_forward.6} parent=35 // pred_check
        %p626 = pneg %p171
      $region46: #{point_transformer_forward.6} parent=35 // pred_check_branch
        %628 = sbr.rel (%p626) target = $region48
      $region47: #{point_transformer_forward.6} parent=35 // pred_region
        _
      $region48: #{point_transformer_forward.6} parent=35 // pred_fallthru
        _
      // Predicated region
      $region49: #{point_transformer_forward.6} parent=35 // pred_check
        %p629 = pneg %p197
      $region50: #{point_transformer_forward.6} parent=35 // pred_check_branch
        %631 = sbr.rel (%p629) target = $region52
      $region51: #{point_transformer_forward.6} parent=35 // pred_region
        _
      $region52: #{point_transformer_forward.6} parent=35 // pred_fallthru
        _
    $region36: #{point_transformer_forward.6} parent=5 // pred_fallthru
      _
    %p632 = scmp.le.s32.totalorder 2, %s13
    // Predicated region
    $region53: #{point_transformer_forward.6} parent=5 // pred_check
      %p633 = pneg %p632
    $region54: #{point_transformer_forward.6} parent=5 // pred_check_branch
      %635 = sbr.rel (%p633) target = $region56
    $region55: #{point_transformer_forward.6} parent=5 // pred_region
      %s636 = ssub.s32 %s13, 2
      // Predicated region
      $region57: #{point_transformer_forward.6} parent=55 // pred_check
        %p637 = pneg %p151
      $region58: #{point_transformer_forward.6} parent=55 // pred_check_branch
        %639 = sbr.rel (%p637) target = $region60
      $region59: #{point_transformer_forward.6} parent=55 // pred_region
        %s640 = smul.u32 %s24, 2
        %s641 = sadd.s32 %s640, %s25
        %s642 = smul.u32 4, %s641
        %p643 = scmp.lt.s32.totalorder %s642, 15
        %s644 = scalar_select %p643, %s642, 15
        %s645 = smul.addr %s644, 2
        %s646 = smul.addr %s645, 8
        %s647 = scalar_lea.vmem %s4, %s646
      $region60: #{point_transformer_forward.6} parent=55 // pred_fallthru
        _
      // Predicated region
      $region61: #{point_transformer_forward.6} parent=55 // pred_check
        %p648 = pneg %p177
      $region62: #{point_transformer_forward.6} parent=55 // pred_check_branch
        %650 = sbr.rel (%p648) target = $region64
      $region63: #{point_transformer_forward.6} parent=55 // pred_region
        %p651 = scmp.lt.s32.totalorder %s24, 1
        %s652 = scalar_select %p651, %s24, 1
        %s653 = smul.addr %s652, 2
        %s654 = smul.addr %s653, 8
        %s655 = scalar_lea.vmem %s5, %s654
      $region64: #{point_transformer_forward.6} parent=55 // pred_fallthru
        _
      // Predicated region
      $region65: #{point_transformer_forward.6} parent=55 // pred_check
        %p656 = pneg %p203
      $region66: #{point_transformer_forward.6} parent=55 // pred_check_branch
        %658 = sbr.rel (%p656) target = $region68
      $region67: #{point_transformer_forward.6} parent=55 // pred_region
        %p659 = scmp.lt.s32.totalorder %s24, 1
        %s660 = scalar_select %p659, %s24, 1
        %s661 = smul.addr %s660, 2
        %s662 = smul.addr %s661, 8
        %s663 = scalar_lea.vmem %s6, %s662
      $region68: #{point_transformer_forward.6} parent=55 // pred_fallthru
        _
    $region56: #{point_transformer_forward.6} parent=5 // pred_fallthru
      _
  $region6: #{point_transformer_forward.6} parent=0 // loop_footer
    %s17 = sadd.s32 1, %s13
  $region7: #{point_transformer_forward.6} parent=0 // loop_footer_branch
    %12 = sbr.rel target = $region3
  $region8: #{point_transformer_forward.6} parent=0 // loop_exit
    _

// kernel: point_transformer_forward.7
$region0: #{point_transformer_forward.7}
  #allocation0 [shape = 'u32[]', space=smem, size = 0x4, offset = 0x4, fixed_abs, tag = 'smem constant byte address 0x4 - core index']
  #allocation1 [shape = 'u32[144,128]{1,0:T(1,128)}', space=vmem, size = 0x12000, scoped, tag = 'internal scratch']
  %s0 = inlined_call_operand.vmem [shape: f32[128,256], index: 0, kind: input, shape index: {}]
  %s1 = inlined_call_operand.vmem [shape: f32[128,256], index: 1, kind: input, shape index: {}]
  %s2 = inlined_call_operand.vmem [shape: f32[128,256], index: 2, kind: input, shape index: {}]
  %s3 = inlined_call_operand.vmem [shape: f32[1,256], index: 3, kind: input, shape index: {}]
  %s4 = inlined_call_operand.vmem [shape: f32[1,256], index: 4, kind: input, shape index: {}]
  %s5 = inlined_call_operand.vmem [shape: f32[256,256], index: 5, kind: input, shape index: {}]
  %s6 = inlined_call_operand.vmem [shape: f32[1,256], index: 6, kind: input, shape index: {}]
  %s7 = inlined_call_operand.vmem [shape: f32[128,256], index: 7, kind: output, shape index: {}]
  %s8 = sld [smem:[#allocation0]]
  $region61: #{point_transformer_forward.7} parent=0
    _
  %s10 = ssub.s32 1, %s8
  %s11 = scalar_select 0, %s10, %s8
  loop: start=0, step=1, limit=6
  $region2: #{point_transformer_forward.7} parent=0 // loop_pre_header
    _
  $region3: #{point_transformer_forward.7} parent=0 // loop_header
    %s13 = sphi 0, %s17
    %p14 = scmp.ge.s32.totalorder %s13, 6
    %s23 = sphi 0, %s25
    %s26 = sphi 0, %s23
    %s27 = sphi 0, %s26
    %s43 = sphi 0, %s27
    %s49 = sphi 0, %s51
    %s52 = sphi 0, %s49
    %s53 = sphi 0, %s52
    %s69 = sphi 0, %s53
    %s75 = sphi 0, %s77
    %s78 = sphi 0, %s75
    %s79 = sphi 0, %s78
    %s95 = sphi 0, %s79
    %s99 = sphi 0, %s99
    %s101 = sphi 0, %s99
    %s102 = sphi 0, %s101
    %s116 = sphi 0, %s102
    %s120 = sphi 0, %s120
    %s122 = sphi 0, %s120
    %s123 = sphi 0, %s122
    %s137 = sphi 0, %s123
    %s141 = sphi 0, %s141
    %s143 = sphi 0, %s141
    %s144 = sphi 0, %s143
    %s158 = sphi 0, %s144
    %s162 = sphi 0, %s162
    %s164 = sphi 0, %s162
    %s165 = sphi 0, %s164
    %s179 = sphi 0, %s165
    %s185 = sphi 0, %s187
    %s188 = sphi 0, %s185
    %s189 = sphi 0, %s188
    %s205 = sphi 0, %s189
  $region4: #{point_transformer_forward.7} parent=0 // loop_header_branch
    %16 = sbr.rel (%p14) target = $region8
  $region5: #{point_transformer_forward.7} parent=0 // loop_body
    %s18 = ssub.s32 %s13, 1
    %s19 = ssub.s32 %s13, 2
    %s20 = sadd.s32 %s13, 1
    %s21 = ssub.s32 %s13, %s20
    %p22 = scmp.eq.s32.totalorder %s21, 0
    %s24 = sadd.s32 %s23, 1
    %s25 = scalar_select %p22, %s23, %s24
    %p28 = pneg %p22
    %p29 = scmp.eq.s32.totalorder %s13, 3
    %p30 = por %p28, %p29
    %p31 = scmp.ne.s32.totalorder %s23, %s26
    %p32 = scmp.eq.s32.totalorder %s13, 0
    %p33 = por %p31, %p32
    %p34 = scmp.ne.s32.totalorder %s23, %s26
    %p35 = scmp.eq.s32.totalorder %s18, 3
    %p36 = por %p34, %p35
    %p37 = scmp.ne.s32.totalorder %s26, %s27
    %p38 = scmp.eq.s32.totalorder %s18, 0
    %p39 = por %p37, %p38
    %p40 = scmp.ne.s32.totalorder %s26, %s27
    %p41 = scmp.eq.s32.totalorder %s19, 3
    %p42 = por %p40, %p41
    %p44 = scmp.ne.s32.totalorder %s27, %s43
    %p45 = scmp.eq.s32.totalorder %s19, 0
    %p46 = por %p44, %p45
    %s47 = ssub.s32 %s13, %s20
    %p48 = scmp.eq.s32.totalorder %s47, 0
    %s50 = sadd.s32 %s49, 1
    %s51 = scalar_select %p48, %s49, %s50
    %p54 = pneg %p48
    %p55 = scmp.eq.s32.totalorder %s13, 3
    %p56 = por %p54, %p55
    %p57 = scmp.ne.s32.totalorder %s49, %s52
    %p58 = scmp.eq.s32.totalorder %s13, 0
    %p59 = por %p57, %p58
    %p60 = scmp.ne.s32.totalorder %s49, %s52
    %p61 = scmp.eq.s32.totalorder %s18, 3
    %p62 = por %p60, %p61
    %p63 = scmp.ne.s32.totalorder %s52, %s53
    %p64 = scmp.eq.s32.totalorder %s18, 0
    %p65 = por %p63, %p64
    %p66 = scmp.ne.s32.totalorder %s52, %s53
    %p67 = scmp.eq.s32.totalorder %s19, 3
    %p68 = por %p66, %p67
    %p70 = scmp.ne.s32.totalorder %s53, %s69
    %p71 = scmp.eq.s32.totalorder %s19, 0
    %p72 = por %p70, %p71
    %s73 = ssub.s32 %s13, %s20
    %p74 = scmp.eq.s32.totalorder %s73, 0
    %s76 = sadd.s32 %s75, 1
    %s77 = scalar_select %p74, %s75, %s76
    %p80 = pneg %p74
    %p81 = scmp.eq.s32.totalorder %s13, 3
    %p82 = por %p80, %p81
    %p83 = scmp.ne.s32.totalorder %s75, %s78
    %p84 = scmp.eq.s32.totalorder %s13, 0
    %p85 = por %p83, %p84
    %p86 = scmp.ne.s32.totalorder %s75, %s78
    %p87 = scmp.eq.s32.totalorder %s18, 3
    %p88 = por %p86, %p87
    %p89 = scmp.ne.s32.totalorder %s78, %s79
    %p90 = scmp.eq.s32.totalorder %s18, 0
    %p91 = por %p89, %p90
    %p92 = scmp.ne.s32.totalorder %s78, %s79
    %p93 = scmp.eq.s32.totalorder %s19, 3
    %p94 = por %p92, %p93
    %p96 = scmp.ne.s32.totalorder %s79, %s95
    %p97 = scmp.eq.s32.totalorder %s19, 0
    %p98 = por %p96, %p97
    %s100 = sadd.s32 %s99, 1
    %p103 = scmp.eq.s32.totalorder %s13, 3
    %p104 = scmp.ne.s32.totalorder %s99, %s101
    %p105 = scmp.eq.s32.totalorder %s13, 0
    %p106 = por %p104, %p105
    %p107 = scmp.ne.s32.totalorder %s99, %s101
    %p108 = scmp.eq.s32.totalorder %s18, 3
    %p109 = por %p107, %p108
    %p110 = scmp.ne.s32.totalorder %s101, %s102
    %p111 = scmp.eq.s32.totalorder %s18, 0
    %p112 = por %p110, %p111
    %p113 = scmp.ne.s32.totalorder %s101, %s102
    %p114 = scmp.eq.s32.totalorder %s19, 3
    %p115 = por %p113, %p114
    %p117 = scmp.ne.s32.totalorder %s102, %s116
    %p118 = scmp.eq.s32.totalorder %s19, 0
    %p119 = por %p117, %p118
    %s121 = sadd.s32 %s120, 1
    %p124 = scmp.eq.s32.totalorder %s13, 3
    %p125 = scmp.ne.s32.totalorder %s120, %s122
    %p126 = scmp.eq.s32.totalorder %s13, 0
    %p127 = por %p125, %p126
    %p128 = scmp.ne.s32.totalorder %s120, %s122
    %p129 = scmp.eq.s32.totalorder %s18, 3
    %p130 = por %p128, %p129
    %p131 = scmp.ne.s32.totalorder %s122, %s123
    %p132 = scmp.eq.s32.totalorder %s18, 0
    %p133 = por %p131, %p132
    %p134 = scmp.ne.s32.totalorder %s122, %s123
    %p135 = scmp.eq.s32.totalorder %s19, 3
    %p136 = por %p134, %p135
    %p138 = scmp.ne.s32.totalorder %s123, %s137
    %p139 = scmp.eq.s32.totalorder %s19, 0
    %p140 = por %p138, %p139
    %s142 = sadd.s32 %s141, 1
    %p145 = scmp.eq.s32.totalorder %s13, 3
    %p146 = scmp.ne.s32.totalorder %s141, %s143
    %p147 = scmp.eq.s32.totalorder %s13, 0
    %p148 = por %p146, %p147
    %p149 = scmp.ne.s32.totalorder %s141, %s143
    %p150 = scmp.eq.s32.totalorder %s18, 3
    %p151 = por %p149, %p150
    %p152 = scmp.ne.s32.totalorder %s143, %s144
    %p153 = scmp.eq.s32.totalorder %s18, 0
    %p154 = por %p152, %p153
    %p155 = scmp.ne.s32.totalorder %s143, %s144
    %p156 = scmp.eq.s32.totalorder %s19, 3
    %p157 = por %p155, %p156
    %p159 = scmp.ne.s32.totalorder %s144, %s158
    %p160 = scmp.eq.s32.totalorder %s19, 0
    %p161 = por %p159, %p160
    %s163 = sadd.s32 %s162, 1
    %p166 = scmp.eq.s32.totalorder %s13, 3
    %p167 = scmp.ne.s32.totalorder %s162, %s164
    %p168 = scmp.eq.s32.totalorder %s13, 0
    %p169 = por %p167, %p168
    %p170 = scmp.ne.s32.totalorder %s162, %s164
    %p171 = scmp.eq.s32.totalorder %s18, 3
    %p172 = por %p170, %p171
    %p173 = scmp.ne.s32.totalorder %s164, %s165
    %p174 = scmp.eq.s32.totalorder %s18, 0
    %p175 = por %p173, %p174
    %p176 = scmp.ne.s32.totalorder %s164, %s165
    %p177 = scmp.eq.s32.totalorder %s19, 3
    %p178 = por %p176, %p177
    %p180 = scmp.ne.s32.totalorder %s165, %s179
    %p181 = scmp.eq.s32.totalorder %s19, 0
    %p182 = por %p180, %p181
    %s183 = ssub.s32 %s13, %s20
    %p184 = scmp.eq.s32.totalorder %s183, 0
    %s186 = sadd.s32 %s185, 1
    %s187 = scalar_select %p184, %s185, %s186
    %p190 = pneg %p184
    %p191 = scmp.eq.s32.totalorder %s13, 3
    %p192 = por %p190, %p191
    %p193 = scmp.ne.s32.totalorder %s185, %s188
    %p194 = scmp.eq.s32.totalorder %s13, 0
    %p195 = por %p193, %p194
    %p196 = scmp.ne.s32.totalorder %s185, %s188
    %p197 = scmp.eq.s32.totalorder %s18, 3
    %p198 = por %p196, %p197
    %p199 = scmp.ne.s32.totalorder %s188, %s189
    %p200 = scmp.eq.s32.totalorder %s18, 0
    %p201 = por %p199, %p200
    %p202 = scmp.ne.s32.totalorder %s188, %s189
    %p203 = scmp.eq.s32.totalorder %s19, 3
    %p204 = por %p202, %p203
    %p206 = scmp.ne.s32.totalorder %s189, %s205
    %p207 = scmp.eq.s32.totalorder %s19, 0
    %p208 = por %p206, %p207
    %p209 = scmp.le.s32.totalorder 1, %s13
    %p210 = scmp.lt.s32.totalorder %s13, 5
    %p211 = pnand %p209, %p210
    %p212 = pneg %p211
    // Predicated region
    $region9: #{point_transformer_forward.7} parent=5 // pred_check
      _
    $region10: #{point_transformer_forward.7} parent=5 // pred_check_branch
      %214 = sbr.rel (%p211) target = $region12
    $region11: #{point_transformer_forward.7} parent=5 // pred_region
      %s215 = ssub.s32 %s13, 1
      // Predicated region
      $region13: #{point_transformer_forward.7} parent=11 // pred_check
        %p216 = pneg %p112
      $region14: #{point_transformer_forward.7} parent=11 // pred_check_branch
        %218 = sbr.rel (%p216) target = $region16
      $region15: #{point_transformer_forward.7} parent=11 // pred_region
        _
      $region16: #{point_transformer_forward.7} parent=11 // pred_fallthru
        _
      // Predicated region
      $region17: #{point_transformer_forward.7} parent=11 // pred_check
        %p219 = pneg %p133
      $region18: #{point_transformer_forward.7} parent=11 // pred_check_branch
        %221 = sbr.rel (%p219) target = $region20
      $region19: #{point_transformer_forward.7} parent=11 // pred_region
        _
      $region20: #{point_transformer_forward.7} parent=11 // pred_fallthru
        _
      // Predicated region
      $region21: #{point_transformer_forward.7} parent=11 // pred_check
        %p222 = pneg %p154
      $region22: #{point_transformer_forward.7} parent=11 // pred_check_branch
        %224 = sbr.rel (%p222) target = $region24
      $region23: #{point_transformer_forward.7} parent=11 // pred_region
        _
      $region24: #{point_transformer_forward.7} parent=11 // pred_fallthru
        _
      // Predicated region
      $region25: #{point_transformer_forward.7} parent=11 // pred_check
        %p225 = pneg %p175
      $region26: #{point_transformer_forward.7} parent=11 // pred_check_branch
        %227 = sbr.rel (%p225) target = $region28
      $region27: #{point_transformer_forward.7} parent=11 // pred_region
        _
      $region28: #{point_transformer_forward.7} parent=11 // pred_fallthru
        _
    $region12: #{point_transformer_forward.7} parent=5 // pred_fallthru
      _
    %p228 = scmp.lt.s32.totalorder %s13, 4
    // Predicated region
    $region29: #{point_transformer_forward.7} parent=5 // pred_check
      %p229 = pneg %p228
    $region30: #{point_transformer_forward.7} parent=5 // pred_check_branch
      %231 = sbr.rel (%p229) target = $region32
    $region31: #{point_transformer_forward.7} parent=5 // pred_region
      // Predicated region
      $region33: #{point_transformer_forward.7} parent=31 // pred_check
        %p232 = pneg %p33
      $region34: #{point_transformer_forward.7} parent=31 // pred_check_branch
        %234 = sbr.rel (%p232) target = $region36
      $region35: #{point_transformer_forward.7} parent=31 // pred_region
        %s235 = smul.u32 4, %s13
        %p236 = scmp.lt.s32.totalorder %s235, 15
        %s237 = scalar_select %p236, %s235, 15
        %s238 = smul.addr %s237, 2
        %s239 = smul.addr %s238, 8
        %s240 = scalar_lea.vmem %s0, %s239
        %s241 = smul.u32 4, %s13
      $region36: #{point_transformer_forward.7} parent=31 // pred_fallthru
        _
      // Predicated region
      $region37: #{point_transformer_forward.7} parent=31 // pred_check
        %p242 = pneg %p59
      $region38: #{point_transformer_forward.7} parent=31 // pred_check_branch
        %244 = sbr.rel (%p242) target = $region40
      $region39: #{point_transformer_forward.7} parent=31 // pred_region
        %s245 = smul.u32 4, %s13
        %p246 = scmp.lt.s32.totalorder %s245, 15
        %s247 = scalar_select %p246, %s245, 15
        %s248 = smul.addr %s247, 2
        %s249 = smul.addr %s248, 8
        %s250 = scalar_lea.vmem %s1, %s249
        %s251 = smul.u32 4, %s13
      $region40: #{point_transformer_forward.7} parent=31 // pred_fallthru
        _
      // Predicated region
      $region41: #{point_transformer_forward.7} parent=31 // pred_check
        %p252 = pneg %p85
      $region42: #{point_transformer_forward.7} parent=31 // pred_check_branch
        %254 = sbr.rel (%p252) target = $region44
      $region43: #{point_transformer_forward.7} parent=31 // pred_region
        %s255 = smul.u32 4, %s13
        %p256 = scmp.lt.s32.totalorder %s255, 15
        %s257 = scalar_select %p256, %s255, 15
        %s258 = smul.addr %s257, 2
        %s259 = smul.addr %s258, 8
        %s260 = scalar_lea.vmem %s2, %s259
        %s261 = smul.u32 4, %s13
      $region44: #{point_transformer_forward.7} parent=31 // pred_fallthru
        _
    $region32: #{point_transformer_forward.7} parent=5 // pred_fallthru
      _
    %p262 = scmp.le.s32.totalorder 1, %s13
    %p263 = scmp.lt.s32.totalorder %s13, 5
    %p264 = pnand %p262, %p263
    %p265 = pneg %p264
    // Predicated region
    $region45: #{point_transformer_forward.7} parent=5 // pred_check
      _
    $region46: #{point_transformer_forward.7} parent=5 // pred_check_branch
      %267 = sbr.rel (%p264) target = $region48
    $region47: #{point_transformer_forward.7} parent=5 // pred_region
      %s268 = ssub.s32 %s13, 1
      %s269 = smul.u32 4, %s18
      %p270 = scmp.lt.s32.totalorder %s269, 15
      %s271 = scalar_select %p270, %s269, 15
      %s272 = smul.addr %s271, 2
      %s273 = smul.addr %s272, 8
      %s274 = scalar_lea.vmem %s0, %s273
      %p275 = pneg %p39
      %p276 = pneg %p36
      %s277 = smul.u32 4, %s18
      %p278 = scmp.lt.s32.totalorder %s277, 15
      %s279 = scalar_select %p278, %s277, 15
      %s280 = smul.addr %s279, 2
      %s281 = smul.addr %s280, 8
      %s282 = scalar_lea.vmem %s1, %s281
      %p283 = pneg %p65
      %p284 = pneg %p62
      %s285 = smul.u32 4, %s18
      %p286 = scmp.lt.s32.totalorder %s285, 15
      %s287 = scalar_select %p286, %s285, 15
      %s288 = smul.addr %s287, 2
      %s289 = smul.addr %s288, 8
      %s290 = scalar_lea.vmem %s2, %s289
      %p291 = pneg %p91
      %p292 = pneg %p88
      %p293 = pneg %p112
      %p294 = pneg %p109
      %p295 = pneg %p133
      %p296 = pneg %p130
      %p297 = pneg %p154
      %p298 = pneg %p151
      %p299 = pneg %p175
      %p300 = pneg %p172
      %p301 = pneg %p201
      %p302 = pneg %p198
      %s303 = smul.u32 4, %s18
      %p304 = scmp.lt.s32.totalorder %s303, 15
      %s305 = scalar_select %p304, %s303, 15
      %s306 = smul.addr %s305, 2
      %s307 = smul.addr %s306, 8
      %s308 = scalar_lea.vmem %s7, %s307
      %s309 = smul.u32 4, %s18
      %p310 = scmp.lt.s32.totalorder %s309, 15
      %s311 = scalar_select %p310, %s309, 15
      %s312 = smul.addr %s311, 2
      %s313 = smul.addr %s312, 8
      %s314 = scalar_lea.vmem %s0, %s313
      %s315 = smul.u32 4, %s18
      %s316 = smul.u32 4, %s18
      %p317 = scmp.lt.s32.totalorder %s316, 15
      %s318 = scalar_select %p317, %s316, 15
      %s319 = smul.addr %s318, 2
      %s320 = smul.addr %s319, 8
      %s321 = scalar_lea.vmem %s1, %s320
      %s322 = smul.u32 4, %s18
      %s323 = smul.u32 4, %s18
      %p324 = scmp.lt.s32.totalorder %s323, 15
      %s325 = scalar_select %p324, %s323, 15
      %s326 = smul.addr %s325, 2
      %s327 = smul.addr %s326, 8
      %s328 = scalar_lea.vmem %s2, %s327
      %s329 = smul.u32 4, %s18
      %s330 = smul.u32 4, %s18
      %p331 = scmp.lt.s32.totalorder %s330, 15
      %s332 = scalar_select %p331, %s330, 15
      %s333 = smul.addr %s332, 2
      %s334 = smul.addr %s333, 8
      %s335 = scalar_lea.vmem %s7, %s334
      %s336 = smul.u32 4, %s18
      %v337 = vld [vmem:[%s314] sm:$0xff]
      %v338 = vld [vmem:[%s314 + $0x8] sm:$0xff]
      %v339 = vld [vmem:[%s314 + $0x10] sm:$0xff]
      %v340 = vld [vmem:[%s314 + $0x18] sm:$0xff]
      %v341 = vld [vmem:[%s314 + $0x20] sm:$0xff]
      %v342 = vld [vmem:[%s314 + $0x28] sm:$0xff]
      %v343 = vld [vmem:[%s314 + $0x30] sm:$0xff]
      %v344 = vld [vmem:[%s314 + $0x38] sm:$0xff]
      %v345 = vld [vmem:[%s3] sm:$0x3]
      %v347 = vlaneseq
      %v348 = vshrl.u32 %v347, 7
      %v349 = vsub.s32 0, %v348
      %v350 = vrot.slane %v345, %v349
      %v351 = vlaneseq
      %v352 = vshrl.u32 %v351, 7
      %v353 = vsub.s32 1, %v352
      %v354 = vrot.slane %v345, %v353
      %v357 = vmul.f32 %v337, %v350
      %v358 = vmul.f32 %v338, %v354
      %v359 = vmul.f32 %v339, %v350
      %v360 = vmul.f32 %v340, %v354
      %v361 = vmul.f32 %v341, %v350
      %v362 = vmul.f32 %v342, %v354
      %v363 = vmul.f32 %v343, %v350
      %v364 = vmul.f32 %v344, %v354
      %v365 = vld [vmem:[%s4] sm:$0x3]
      %v367 = vlaneseq
      %v368 = vshrl.u32 %v367, 7
      %v369 = vsub.s32 0, %v368
      %v370 = vrot.slane %v365, %v369
      %v371 = vlaneseq
      %v372 = vshrl.u32 %v371, 7
      %v373 = vsub.s32 1, %v372
      %v374 = vrot.slane %v365, %v373
      %v377 = vadd.f32 %v357, %v370
      %v378 = vadd.f32 %v358, %v374
      %v379 = vadd.f32 %v359, %v370
      %v380 = vadd.f32 %v360, %v374
      %v381 = vadd.f32 %v361, %v370
      %v382 = vadd.f32 %v362, %v374
      %v383 = vadd.f32 %v363, %v370
      %v384 = vadd.f32 %v364, %v374
      %v385 = vmax.f32 %v377, 0.0
      %v386 = vmax.f32 %v378, 0.0
      %v387 = vmax.f32 %v379, 0.0
      %v388 = vmax.f32 %v380, 0.0
      %v389 = vmax.f32 %v381, 0.0
      %v390 = vmax.f32 %v382, 0.0
      %v391 = vmax.f32 %v383, 0.0
      %v392 = vmax.f32 %v384, 0.0
      %v393 = vld [vmem:[%s5] sm:$0xff]
      %v394 = vld [vmem:[%s5 + $0x8] sm:$0xff]
      %v395 = vld [vmem:[%s5 + $0x10] sm:$0xff]
      %v396 = vld [vmem:[%s5 + $0x18] sm:$0xff]
      %v397 = vld [vmem:[%s5 + $0x20] sm:$0xff]
      %v398 = vld [vmem:[%s5 + $0x28] sm:$0xff]
      %v399 = vld [vmem:[%s5 + $0x30] sm:$0xff]
      %v400 = vld [vmem:[%s5 + $0x38] sm:$0xff]
      %v401 = vld [vmem:[%s5 + $0x40] sm:$0xff]
      %v402 = vld [vmem:[%s5 + $0x48] sm:$0xff]
      %v403 = vld [vmem:[%s5 + $0x50] sm:$0xff]
      %v404 = vld [vmem:[%s5 + $0x58] sm:$0xff]
      %v405 = vld [vmem:[%s5 + $0x60] sm:$0xff]
      %v406 = vld [vmem:[%s5 + $0x68] sm:$0xff]
      %v407 = vld [vmem:[%s5 + $0x70] sm:$0xff]
      %v408 = vld [vmem:[%s5 + $0x78] sm:$0xff]
      %v409 = vld [vmem:[%s5 + $0x80] sm:$0xff]
      %v410 = vld [vmem:[%s5 + $0x88] sm:$0xff]
      %v411 = vld [vmem:[%s5 + $0x90] sm:$0xff]
      %v412 = vld [vmem:[%s5 + $0x98] sm:$0xff]
      %v413 = vld [vmem:[%s5 + $0xa0] sm:$0xff]
      %v414 = vld [vmem:[%s5 + $0xa8] sm:$0xff]
      %v415 = vld [vmem:[%s5 + $0xb0] sm:$0xff]
      %v416 = vld [vmem:[%s5 + $0xb8] sm:$0xff]
      %v417 = vld [vmem:[%s5 + $0xc0] sm:$0xff]
      %v418 = vld [vmem:[%s5 + $0xc8] sm:$0xff]
      %v419 = vld [vmem:[%s5 + $0xd0] sm:$0xff]
      %v420 = vld [vmem:[%s5 + $0xd8] sm:$0xff]
      %v421 = vld [vmem:[%s5 + $0xe0] sm:$0xff]
      %v422 = vld [vmem:[%s5 + $0xe8] sm:$0xff]
      %v423 = vld [vmem:[%s5 + $0xf0] sm:$0xff]
      %v424 = vld [vmem:[%s5 + $0xf8] sm:$0xff]
      %v425 = vld [vmem:[%s5 + $0x100] sm:$0xff]
      %v426 = vld [vmem:[%s5 + $0x108] sm:$0xff]
      %v427 = vld [vmem:[%s5 + $0x110] sm:$0xff]
      %v428 = vld [vmem:[%s5 + $0x118] sm:$0xff]
      %v429 = vld [vmem:[%s5 + $0x120] sm:$0xff]
      %v430 = vld [vmem:[%s5 + $0x128] sm:$0xff]
      %v431 = vld [vmem:[%s5 + $0x130] sm:$0xff]
      %v432 = vld [vmem:[%s5 + $0x138] sm:$0xff]
      %v433 = vld [vmem:[%s5 + $0x140] sm:$0xff]
      %v434 = vld [vmem:[%s5 + $0x148] sm:$0xff]
      %v435 = vld [vmem:[%s5 + $0x150] sm:$0xff]
      %v436 = vld [vmem:[%s5 + $0x158] sm:$0xff]
      %v437 = vld [vmem:[%s5 + $0x160] sm:$0xff]
      %v438 = vld [vmem:[%s5 + $0x168] sm:$0xff]
      %v439 = vld [vmem:[%s5 + $0x170] sm:$0xff]
      %v440 = vld [vmem:[%s5 + $0x178] sm:$0xff]
      %v441 = vld [vmem:[%s5 + $0x180] sm:$0xff]
      %v442 = vld [vmem:[%s5 + $0x188] sm:$0xff]
      %v443 = vld [vmem:[%s5 + $0x190] sm:$0xff]
      %v444 = vld [vmem:[%s5 + $0x198] sm:$0xff]
      %v445 = vld [vmem:[%s5 + $0x1a0] sm:$0xff]
      %v446 = vld [vmem:[%s5 + $0x1a8] sm:$0xff]
      %v447 = vld [vmem:[%s5 + $0x1b0] sm:$0xff]
      %v448 = vld [vmem:[%s5 + $0x1b8] sm:$0xff]
      %v449 = vld [vmem:[%s5 + $0x1c0] sm:$0xff]
      %v450 = vld [vmem:[%s5 + $0x1c8] sm:$0xff]
      %v451 = vld [vmem:[%s5 + $0x1d0] sm:$0xff]
      %v452 = vld [vmem:[%s5 + $0x1d8] sm:$0xff]
      %v453 = vld [vmem:[%s5 + $0x1e0] sm:$0xff]
      %v454 = vld [vmem:[%s5 + $0x1e8] sm:$0xff]
      %v455 = vld [vmem:[%s5 + $0x1f0] sm:$0xff]
      %v456 = vld [vmem:[%s5 + $0x1f8] sm:$0xff]
      %v457 = vld [vmem:[%s6] sm:$0x3]
      %v459 = vlaneseq
      %v460 = vshrl.u32 %v459, 7
      %v461 = vsub.s32 0, %v460
      %v462 = vrot.slane %v457, %v461
      %v463 = vlaneseq
      %v464 = vshrl.u32 %v463, 7
      %v465 = vsub.s32 1, %v464
      %v466 = vrot.slane %v457, %v465
      %469 = vmatprep.subr.mxu0 %v394
      %470 = vmatpush1.msra.mxu0 %v393
      %471 = vmatprep.subr.mxu0 %v396
      %472 = vmatpush1.msra.mxu0 %v395
      %473 = vmatprep.subr.mxu0 %v398
      %474 = vmatpush1.msra.mxu0 %v397
      %475 = vmatprep.subr.mxu0 %v400
      %476 = vmatpush1.msra.mxu0 %v399
      %477 = vmatprep.subr.mxu0 %v402
      %478 = vmatpush1.msra.mxu0 %v401
      %479 = vmatprep.subr.mxu0 %v404
      %480 = vmatpush1.msra.mxu0 %v403
      %481 = vmatprep.subr.mxu0 %v406
      %482 = vmatpush1.msra.mxu0 %v405
      %483 = vmatprep.subr.mxu0 %v408
      %484 = vmatpush1.msra.mxu0 %v407
      %485 = vmatprep.subr.mxu0 %v410
      %486 = vmatpush1.msra.mxu0 %v409
      %487 = vmatprep.subr.mxu0 %v412
      %488 = vmatpush1.msra.mxu0 %v411
      %489 = vmatprep.subr.mxu0 %v414
      %490 = vmatpush1.msra.mxu0 %v413
      %491 = vmatprep.subr.mxu0 %v416
      %492 = vmatpush1.msra.mxu0 %v415
      %493 = vmatprep.subr.mxu0 %v418
      %494 = vmatpush1.msra.mxu0 %v417
      %495 = vmatprep.subr.mxu0 %v420
      %496 = vmatpush1.msra.mxu0 %v419
      %497 = vmatprep.subr.mxu0 %v422
      %498 = vmatpush1.msra.mxu0 %v421
      %499 = vmatprep.subr.mxu0 %v424
      %500 = vmatpush1.msra.mxu0 %v423
      %501 = vmatprep.subr.mxu0 %v426
      %502 = vmatpush1.msra.mxu0 %v425
      %503 = vmatprep.subr.mxu0 %v428
      %504 = vmatpush1.msra.mxu0 %v427
      %505 = vmatprep.subr.mxu0 %v430
      %506 = vmatpush1.msra.mxu0 %v429
      %507 = vmatprep.subr.mxu0 %v432
      %508 = vmatpush1.msra.mxu0 %v431
      %509 = vmatprep.subr.mxu0 %v434
      %510 = vmatpush1.msra.mxu0 %v433
      %511 = vmatprep.subr.mxu0 %v436
      %512 = vmatpush1.msra.mxu0 %v435
      %513 = vmatprep.subr.mxu0 %v438
      %514 = vmatpush1.msra.mxu0 %v437
      %515 = vmatprep.subr.mxu0 %v440
      %516 = vmatpush1.msra.mxu0 %v439
      %517 = vmatprep.subr.mxu0 %v442
      %518 = vmatpush1.msra.mxu0 %v441
      %519 = vmatprep.subr.mxu0 %v444
      %520 = vmatpush1.msra.mxu0 %v443
      %521 = vmatprep.subr.mxu0 %v446
      %522 = vmatpush1.msra.mxu0 %v445
      %523 = vmatprep.subr.mxu0 %v448
      %524 = vmatpush1.msra.mxu0 %v447
      %525 = vmatprep.subr.mxu0 %v450
      %526 = vmatpush1.msra.mxu0 %v449
      %527 = vmatprep.subr.mxu0 %v452
      %528 = vmatpush1.msra.mxu0 %v451
      %529 = vmatprep.subr.mxu0 %v454
      %530 = vmatpush1.msra.mxu0 %v453
      %531 = vmatprep.subr.mxu0 %v456
      %532 = vmatpush1.msra.mxu0 %v455
      %533 = vmatprep.mubr.f32.mxu0 %v386
      %534 = vmatmul.mubr.f32.gmra.mrb[0].mxu0 %v385
      %v535 = vpop.f32.mrb[0].mxu0
      %v536 = vadd.f32 %v462, %v535
      %v537 = vpop.f32.mrb[0].mxu0
      %v538 = vadd.f32 %v466, %v537
      %539 = vmatprep.mubr.f32.mxu0 %v388
      %540 = vmatmul.mubr.f32.gmra.mrb[0].mxu0 %v387
      %v541 = vpop.f32.mrb[0].mxu0
      %v542 = vadd.f32 %v462, %v541
      %v543 = vpop.f32.mrb[0].mxu0
      %v544 = vadd.f32 %v466, %v543
      %545 = vmatprep.mubr.f32.mxu0 %v390
      %546 = vmatmul.mubr.f32.gmra.mrb[0].mxu0 %v389
      %v547 = vpop.f32.mrb[0].mxu0
      %v548 = vadd.f32 %v462, %v547
      %v549 = vpop.f32.mrb[0].mxu0
      %v550 = vadd.f32 %v466, %v549
      %551 = vmatprep.mubr.f32.mxu0 %v392
      %552 = vmatmul.mubr.f32.gmra.mrb[0].mxu0 %v391
      %v553 = vpop.f32.mrb[0].mxu0
      %v554 = vadd.f32 %v462, %v553
      %v555 = vpop.f32.mrb[0].mxu0
      %v556 = vadd.f32 %v466, %v555
      %557 = vdwg.mxu0
      %558 = vrot.lane.b32.xlu0 %v536, 32
      %v559 = vpop.permute.xlu0 %558
      %560 = vrot.lane.b32.xlu0 %v542, 32
      %v561 = vpop.permute.xlu0 %560
      %562 = vrot.lane.b32.xlu0 %v548, 32
      %v563 = vpop.permute.xlu0 %562
      %564 = vrot.lane.b32.xlu0 %v554, 32
      %v565 = vpop.permute.xlu0 %564
      %566 = vrot.lane.b32.xlu0 %v538, 32
      %v567 = vpop.permute.xlu0 %566
      %568 = vrot.lane.b32.xlu0 %v544, 32
      %v569 = vpop.permute.xlu0 %568
      %570 = vrot.lane.b32.xlu0 %v550, 32
      %v571 = vpop.permute.xlu0 %570
      %572 = vrot.lane.b32.xlu0 %v556, 32
      %v573 = vpop.permute.xlu0 %572
      %v574 = vlaneseq
      %v575 = vand.u32 %v574, 127
      %vm576 = vcmp.lt.s32.totalorder %v575, 32
      %v577 = vsel %vm576, %v559, %v567
      %v578 = vsel %vm576, %v561, %v569
      %v579 = vsel %vm576, %v563, %v571
      %v580 = vsel %vm576, %v565, %v573
      %v581 = vsel %vm576, %v567, %v559
      %v582 = vsel %vm576, %v569, %v561
      %v583 = vsel %vm576, %v571, %v563
      %v584 = vsel %vm576, %v573, %v565
      %v585 = vmax.f32 %v536, %v581
      %v586 = vmax.f32 %v538, %v577
      %v587 = vmax.f32 %v542, %v582
      %v588 = vmax.f32 %v544, %v578
      %v589 = vmax.f32 %v548, %v583
      %v590 = vmax.f32 %v550, %v579
      %v591 = vmax.f32 %v554, %v584
      %v592 = vmax.f32 %v556, %v580
      %593 = vrot.lane.b32.xlu0 %v585, 64
      %v594 = vpop.permute.xlu0 %593
      %595 = vrot.lane.b32.xlu0 %v587, 64
      %v596 = vpop.permute.xlu0 %595
      %597 = vrot.lane.b32.xlu0 %v589, 64
      %v598 = vpop.permute.xlu0 %597
      %599 = vrot.lane.b32.xlu0 %v591, 64
      %v600 = vpop.permute.xlu0 %599
      %601 = vrot.lane.b32.xlu0 %v586, 64
      %v602 = vpop.permute.xlu0 %601
      %603 = vrot.lane.b32.xlu0 %v588, 64
      %v604 = vpop.permute.xlu0 %603
      %605 = vrot.lane.b32.xlu0 %v590, 64
      %v606 = vpop.permute.xlu0 %605
      %607 = vrot.lane.b32.xlu0 %v592, 64
      %v608 = vpop.permute.xlu0 %607
      %vm609 = vcmp.lt.s32.totalorder %v575, 64
      %v610 = vsel %vm609, %v594, %v602
      %v611 = vsel %vm609, %v596, %v604
      %v612 = vsel %vm609, %v598, %v606
      %v613 = vsel %vm609, %v600, %v608
      %v614 = vsel %vm609, %v602, %v594
      %v615 = vsel %vm609, %v604, %v596
      %v616 = vsel %vm609, %v606, %v598
      %v617 = vsel %vm609, %v608, %v600
      %v618 = vmax.f32 %v585, %v614
      %v619 = vmax.f32 %v586, %v610
      %v620 = vmax.f32 %v587, %v615
      %v621 = vmax.f32 %v588, %v611
      %v622 = vmax.f32 %v589, %v616
      %v623 = vmax.f32 %v590, %v612
      %v624 = vmax.f32 %v591, %v617
      %v625 = vmax.f32 %v592, %v613
      %v626 = vmax.f32 %v618, %v619
      %v627 = vmax.f32 %v620, %v621
      %v628 = vmax.f32 %v622, %v623
      %v629 = vmax.f32 %v624, %v625
      %v630 = vsub.f32 %v536, %v626
      %v631 = vsub.f32 %v538, %v626
      %v632 = vsub.f32 %v542, %v627
      %v633 = vsub.f32 %v544, %v627
      %v634 = vsub.f32 %v548, %v628
      %v635 = vsub.f32 %v550, %v628
      %v636 = vsub.f32 %v554, %v629
      %v637 = vsub.f32 %v556, %v629
      %v638 = vmul.f32 %v630, 1.442695
      %v639 = vpow.pop %v638
      %v640 = vmul.f32 %v631, 1.442695
      %v641 = vpow.pop %v640
      %v642 = vmul.f32 %v632, 1.442695
      %v643 = vpow.pop %v642
      %v644 = vmul.f32 %v633, 1.442695
      %v645 = vpow.pop %v644
      %v646 = vmul.f32 %v634, 1.442695
      %v647 = vpow.pop %v646
      %v648 = vmul.f32 %v635, 1.442695
      %v649 = vpow.pop %v648
      %v650 = vmul.f32 %v636, 1.442695
      %v651 = vpow.pop %v650
      %v652 = vmul.f32 %v637, 1.442695
      %v653 = vpow.pop %v652
      %654 = vrot.lane.b32.xlu0 %v639, 32
      %v655 = vpop.permute.xlu0 %654
      %656 = vrot.lane.b32.xlu0 %v643, 32
      %v657 = vpop.permute.xlu0 %656
      %658 = vrot.lane.b32.xlu0 %v647, 32
      %v659 = vpop.permute.xlu0 %658
      %660 = vrot.lane.b32.xlu0 %v651, 32
      %v661 = vpop.permute.xlu0 %660
      %662 = vrot.lane.b32.xlu0 %v641, 32
      %v663 = vpop.permute.xlu0 %662
      %664 = vrot.lane.b32.xlu0 %v645, 32
      %v665 = vpop.permute.xlu0 %664
      %666 = vrot.lane.b32.xlu0 %v649, 32
      %v667 = vpop.permute.xlu0 %666
      %668 = vrot.lane.b32.xlu0 %v653, 32
      %v669 = vpop.permute.xlu0 %668
      %v670 = vsel %vm576, %v655, %v663
      %v671 = vsel %vm576, %v657, %v665
      %v672 = vsel %vm576, %v659, %v667
      %v673 = vsel %vm576, %v661, %v669
      %v674 = vsel %vm576, %v663, %v655
      %v675 = vsel %vm576, %v665, %v657
      %v676 = vsel %vm576, %v667, %v659
      %v677 = vsel %vm576, %v669, %v661
      %v678 = vadd.f32 %v639, %v674
      %v679 = vadd.f32 %v641, %v670
      %v680 = vadd.f32 %v643, %v675
      %v681 = vadd.f32 %v645, %v671
      %v682 = vadd.f32 %v647, %v676
      %v683 = vadd.f32 %v649, %v672
      %v684 = vadd.f32 %v651, %v677
      %v685 = vadd.f32 %v653, %v673
      %686 = vrot.lane.b32.xlu0 %v678, 64
      %v687 = vpop.permute.xlu0 %686
      %688 = vrot.lane.b32.xlu0 %v680, 64
      %v689 = vpop.permute.xlu0 %688
      %690 = vrot.lane.b32.xlu0 %v682, 64
      %v691 = vpop.permute.xlu0 %690
      %692 = vrot.lane.b32.xlu0 %v684, 64
      %v693 = vpop.permute.xlu0 %692
      %694 = vrot.lane.b32.xlu0 %v679, 64
      %v695 = vpop.permute.xlu0 %694
      %696 = vrot.lane.b32.xlu0 %v681, 64
      %v697 = vpop.permute.xlu0 %696
      %698 = vrot.lane.b32.xlu0 %v683, 64
      %v699 = vpop.permute.xlu0 %698
      %700 = vrot.lane.b32.xlu0 %v685, 64
      %v701 = vpop.permute.xlu0 %700
      %v702 = vsel %vm609, %v687, %v695
      %v703 = vsel %vm609, %v689, %v697
      %v704 = vsel %vm609, %v691, %v699
      %v705 = vsel %vm609, %v693, %v701
      %v706 = vsel %vm609, %v695, %v687
      %v707 = vsel %vm609, %v697, %v689
      %v708 = vsel %vm609, %v699, %v691
      %v709 = vsel %vm609, %v701, %v693
      %v710 = vadd.f32 %v678, %v706
      %v711 = vadd.f32 %v679, %v702
      %v712 = vadd.f32 %v680, %v707
      %v713 = vadd.f32 %v681, %v703
      %v714 = vadd.f32 %v682, %v708
      %v715 = vadd.f32 %v683, %v704
      %v716 = vadd.f32 %v684, %v709
      %v717 = vadd.f32 %v685, %v705
      %v718 = vadd.f32 %v710, %v711
      %v719 = vadd.f32 %v712, %v713
      %v720 = vadd.f32 %v714, %v715
      %v721 = vadd.f32 %v716, %v717
      %v722 = vrcp.pop %v718
      %v723 = vrcp.pop %v719
      %v724 = vrcp.pop %v720
      %v725 = vrcp.pop %v721
      %v726 = vmul.f32 %v639, %v722
      %v727 = vmul.f32 %v641, %v722
      %v728 = vmul.f32 %v643, %v723
      %v729 = vmul.f32 %v645, %v723
      %v730 = vmul.f32 %v647, %v724
      %v731 = vmul.f32 %v649, %v724
      %v732 = vmul.f32 %v651, %v725
      %v733 = vmul.f32 %v653, %v725
      %v734 = vld [vmem:[%s328] sm:$0xff]
      %v735 = vld [vmem:[%s328 + $0x8] sm:$0xff]
      %v736 = vld [vmem:[%s328 + $0x10] sm:$0xff]
      %v737 = vld [vmem:[%s328 + $0x18] sm:$0xff]
      %v738 = vld [vmem:[%s328 + $0x20] sm:$0xff]
      %v739 = vld [vmem:[%s328 + $0x28] sm:$0xff]
      %v740 = vld [vmem:[%s328 + $0x30] sm:$0xff]
      %v741 = vld [vmem:[%s328 + $0x38] sm:$0xff]
      %v742 = vld [vmem:[%s321] sm:$0xff]
      %v743 = vld [vmem:[%s321 + $0x8] sm:$0xff]
      %v744 = vld [vmem:[%s321 + $0x10] sm:$0xff]
      %v745 = vld [vmem:[%s321 + $0x18] sm:$0xff]
      %v746 = vld [vmem:[%s321 + $0x20] sm:$0xff]
      %v747 = vld [vmem:[%s321 + $0x28] sm:$0xff]
      %v748 = vld [vmem:[%s321 + $0x30] sm:$0xff]
      %v749 = vld [vmem:[%s321 + $0x38] sm:$0xff]
      %v750 = vadd.f32 %v734, %v742
      %v751 = vadd.f32 %v735, %v743
      %v752 = vadd.f32 %v736, %v744
      %v753 = vadd.f32 %v737, %v745
      %v754 = vadd.f32 %v738, %v746
      %v755 = vadd.f32 %v739, %v747
      %v756 = vadd.f32 %v740, %v748
      %v757 = vadd.f32 %v741, %v749
      %v758 = vmul.f32 %v726, %v750
      %v759 = vmul.f32 %v727, %v751
      %v760 = vmul.f32 %v728, %v752
      %v761 = vmul.f32 %v729, %v753
      %v762 = vmul.f32 %v730, %v754
      %v763 = vmul.f32 %v731, %v755
      %v764 = vmul.f32 %v732, %v756
      %v765 = vmul.f32 %v733, %v757
      %766 = vrot.lane.b32.xlu0 %v758, 32
      %v767 = vpop.permute.xlu0 %766
      %768 = vrot.lane.b32.xlu0 %v760, 32
      %v769 = vpop.permute.xlu0 %768
      %770 = vrot.lane.b32.xlu0 %v762, 32
      %v771 = vpop.permute.xlu0 %770
      %772 = vrot.lane.b32.xlu0 %v764, 32
      %v773 = vpop.permute.xlu0 %772
      %774 = vrot.lane.b32.xlu0 %v759, 32
      %v775 = vpop.permute.xlu0 %774
      %776 = vrot.lane.b32.xlu0 %v761, 32
      %v777 = vpop.permute.xlu0 %776
      %778 = vrot.lane.b32.xlu0 %v763, 32
      %v779 = vpop.permute.xlu0 %778
      %780 = vrot.lane.b32.xlu0 %v765, 32
      %v781 = vpop.permute.xlu0 %780
      %v782 = vsel %vm576, %v767, %v775
      %v783 = vsel %vm576, %v769, %v777
      %v784 = vsel %vm576, %v771, %v779
      %v785 = vsel %vm576, %v773, %v781
      %v786 = vsel %vm576, %v775, %v767
      %v787 = vsel %vm576, %v777, %v769
      %v788 = vsel %vm576, %v779, %v771
      %v789 = vsel %vm576, %v781, %v773
      %v790 = vadd.f32 %v758, %v786
      %v791 = vadd.f32 %v759, %v782
      %v792 = vadd.f32 %v760, %v787
      %v793 = vadd.f32 %v761, %v783
      %v794 = vadd.f32 %v762, %v788
      %v795 = vadd.f32 %v763, %v784
      %v796 = vadd.f32 %v764, %v789
      %v797 = vadd.f32 %v765, %v785
      %798 = vrot.lane.b32.xlu0 %v790, 64
      %v799 = vpop.permute.xlu0 %798
      %800 = vrot.lane.b32.xlu0 %v792, 64
      %v801 = vpop.permute.xlu0 %800
      %802 = vrot.lane.b32.xlu0 %v794, 64
      %v803 = vpop.permute.xlu0 %802
      %804 = vrot.lane.b32.xlu0 %v796, 64
      %v805 = vpop.permute.xlu0 %804
      %806 = vrot.lane.b32.xlu0 %v791, 64
      %v807 = vpop.permute.xlu0 %806
      %808 = vrot.lane.b32.xlu0 %v793, 64
      %v809 = vpop.permute.xlu0 %808
      %810 = vrot.lane.b32.xlu0 %v795, 64
      %v811 = vpop.permute.xlu0 %810
      %812 = vrot.lane.b32.xlu0 %v797, 64
      %v813 = vpop.permute.xlu0 %812
      %v814 = vsel %vm609, %v799, %v807
      %v815 = vsel %vm609, %v801, %v809
      %v816 = vsel %vm609, %v803, %v811
      %v817 = vsel %vm609, %v805, %v813
      %v818 = vsel %vm609, %v807, %v799
      %v819 = vsel %vm609, %v809, %v801
      %v820 = vsel %vm609, %v811, %v803
      %v821 = vsel %vm609, %v813, %v805
      %v822 = vadd.f32 %v790, %v818
      %v823 = vadd.f32 %v791, %v814
      %v824 = vadd.f32 %v792, %v819
      %v825 = vadd.f32 %v793, %v815
      %v826 = vadd.f32 %v794, %v820
      %v827 = vadd.f32 %v795, %v816
      %v828 = vadd.f32 %v796, %v821
      %v829 = vadd.f32 %v797, %v817
      %v830 = vadd.f32 %v822, %v823
      %v831 = vadd.f32 %v824, %v825
      %v832 = vadd.f32 %v826, %v827
      %v833 = vadd.f32 %v828, %v829
      %834 = vst [vmem:[%s335] sm:$0xff] %v830
      %835 = vst [vmem:[%s335 + $0x8] sm:$0xff] %v830
      %836 = vst [vmem:[%s335 + $0x10] sm:$0xff] %v831
      %837 = vst [vmem:[%s335 + $0x18] sm:$0xff] %v831
      %838 = vst [vmem:[%s335 + $0x20] sm:$0xff] %v832
      %839 = vst [vmem:[%s335 + $0x28] sm:$0xff] %v832
      %840 = vst [vmem:[%s335 + $0x30] sm:$0xff] %v833
      %841 = vst [vmem:[%s335 + $0x38] sm:$0xff] %v833
      %s842 = smul.u32 4, %s18
      %p843 = scmp.lt.s32.totalorder %s842, 15
      %s844 = scalar_select %p843, %s842, 15
      %s845 = smul.addr %s844, 2
      %s846 = smul.addr %s845, 8
      %s847 = scalar_lea.vmem %s7, %s846
      // Predicated region
      $region49: #{point_transformer_forward.7} parent=47 // pred_check
        %p848 = pneg %p198
      $region50: #{point_transformer_forward.7} parent=47 // pred_check_branch
        %850 = sbr.rel (%p848) target = $region52
      $region51: #{point_transformer_forward.7} parent=47 // pred_region
        %s851 = smul.u32 4, %s18
      $region52: #{point_transformer_forward.7} parent=47 // pred_fallthru
        _
    $region48: #{point_transformer_forward.7} parent=5 // pred_fallthru
      _
    %p852 = scmp.le.s32.totalorder 2, %s13
    // Predicated region
    $region53: #{point_transformer_forward.7} parent=5 // pred_check
      %p853 = pneg %p852
    $region54: #{point_transformer_forward.7} parent=5 // pred_check_branch
      %855 = sbr.rel (%p853) target = $region56
    $region55: #{point_transformer_forward.7} parent=5 // pred_region
      %s856 = ssub.s32 %s13, 2
      // Predicated region
      $region57: #{point_transformer_forward.7} parent=55 // pred_check
        %p857 = pneg %p204
      $region58: #{point_transformer_forward.7} parent=55 // pred_check_branch
        %859 = sbr.rel (%p857) target = $region60
      $region59: #{point_transformer_forward.7} parent=55 // pred_region
        %s860 = smul.u32 4, %s19
        %p861 = scmp.lt.s32.totalorder %s860, 15
        %s862 = scalar_select %p861, %s860, 15
        %s863 = smul.addr %s862, 2
        %s864 = smul.addr %s863, 8
        %s865 = scalar_lea.vmem %s7, %s864
      $region60: #{point_transformer_forward.7} parent=55 // pred_fallthru
        _
    $region56: #{point_transformer_forward.7} parent=5 // pred_fallthru
      _
  $region6: #{point_transformer_forward.7} parent=0 // loop_footer
    %s17 = sadd.s32 1, %s13
  $region7: #{point_transformer_forward.7} parent=0 // loop_footer_branch
    %12 = sbr.rel target = $region3
  $region8: #{point_transformer_forward.7} parent=0 // loop_exit
    _

</llo_original>
